<compile_context>
chip_gen: v6e
topology: v6e:2x2x1
jax: 0.10.0
libtpu: 0.0.40
codegen_flags: <defaults>
</compile_context>

<pallas_src>
import functools
import math

import jax
import jax.numpy as jnp
import numpy as np
from jax import lax
from jax.experimental import pallas as pl
from jax.experimental.pallas import tpu as pltpu


# ---------------------------------------------------------------------------
# Helpers
# ---------------------------------------------------------------------------
def _pick_tile(dim, cap, unit):
    """Largest unit-multiple divisor of `dim` that is <= cap, else full extent."""
    if dim <= cap:
        return dim
    start = cap - (cap % unit)
    for t in range(start, 0, -unit):
        if dim % t == 0:
            return t
    return dim  # full extent is always layout-legal


def _vmem_limit_bytes():
    """~3/4 of this chip's VMEM (v5e/v6e: 128 MiB, v7x: 64 MiB), capped at 100 MiB."""
    capacity = 64 * 1024 * 1024  # conservative fallback (v7x-sized)
    try:
        info = pltpu.get_tpu_info()
        capacity = int(getattr(info, "vmem_capacity_bytes", capacity))
    except Exception:
        pass
    return min((capacity * 3) // 4, 100 * 1024 * 1024)


# ---------------------------------------------------------------------------
# Linear kernels:  y[b, s] = x[b] @ W[s] + bias[s]     (bf16 MXU, f32 accumulate)
# ---------------------------------------------------------------------------
def _linear_kernel_fullk(x_ref, w_ref, b_ref, o_ref):
    # x_ref: (1, tl, Cin)  w_ref: (1, Cin, tn)  b_ref: (1, 1, tn)  o_ref: (1, 1, tl, tn)
    acc = lax.dot_general(
        x_ref[0].astype(jnp.bfloat16), w_ref[0].astype(jnp.bfloat16),
        (((1,), (0,)), ((), ())), preferred_element_type=jnp.float32)
    o_ref[0, 0] = (acc + b_ref[0].astype(jnp.float32)).astype(o_ref.dtype)


def _linear_kernel_ktiled(x_ref, w_ref, b_ref, o_ref, acc_ref):
    # Large-Cin fallback: K axis innermost ("arbitrary"), f32 VMEM accumulator.
    @pl.when(pl.program_id(4) == 0)
    def _init():
        acc_ref[...] = jnp.zeros_like(acc_ref)

    acc_ref[...] += lax.dot_general(
        x_ref[0].astype(jnp.bfloat16), w_ref[0].astype(jnp.bfloat16),
        (((1,), (0,)), ((), ())), preferred_element_type=jnp.float32)

    @pl.when(pl.program_id(4) == pl.num_programs(4) - 1)
    def _finalize():
        o_ref[0, 0] = (acc_ref[...] + b_ref[0].astype(jnp.float32)).astype(o_ref.dtype)


def linear_pallas(x, w, b, *, out_dtype, vmem_limit,
                  tl_cap=512, tn_cap=1536, tk_cap=2048):
    """x: (B, L, Cin); w: (S, Cin, Cout) pre-transposed (bf16); b: (S, 1, Cout) f32.

    Returns (B, S, L, Cout) in out_dtype."""
    B, L, Cin = x.shape
    S, _, Cout = w.shape
    tl = _pick_tile(L, tl_cap, 8)
    tn = _pick_tile(Cout, tn_cap, 128)
    out_shape = jax.ShapeDtypeStruct((B, S, L, Cout), out_dtype)

    if Cin <= tk_cap:
        # Full-K contraction; grid ordered (s, n, b, i) so the weight tile's block
        # index is constant across (b, i) -> each weight tile streams from HBM once.
        grid = (S, Cout // tn, B, L // tl)
        return pl.pallas_call(
            _linear_kernel_fullk,
            out_shape=out_shape,
            grid=grid,
            in_specs=[
                pl.BlockSpec((1, tl, Cin), lambda s, n, bb, i: (bb, i, 0)),
                pl.BlockSpec((1, Cin, tn), lambda s, n, bb, i: (s, 0, n)),
                pl.BlockSpec((1, 1, tn), lambda s, n, bb, i: (s, 0, n)),
            ],
            out_specs=pl.BlockSpec((1, 1, tl, tn),
                                   lambda s, n, bb, i: (bb, s, i, n)),
            compiler_params=pltpu.CompilerParams(
                dimension_semantics=("parallel",) * 4,
                vmem_limit_bytes=vmem_limit,
            ),
        )(x, w, b)

    # Large-Cin fallback: K-tiled with an f32 VMEM accumulator.
    tk = _pick_tile(Cin, tk_cap, 128)
    grid = (S, Cout // tn, B, L // tl, Cin // tk)
    return pl.pallas_call(
        _linear_kernel_ktiled,
        out_shape=out_shape,
        grid=grid,
        in_specs=[
            pl.BlockSpec((1, tl, tk), lambda s, n, bb, i, kk: (bb, i, kk)),
            pl.BlockSpec((1, tk, tn), lambda s, n, bb, i, kk: (s, kk, n)),
            pl.BlockSpec((1, 1, tn), lambda s, n, bb, i, kk: (s, 0, n)),
        ],
        out_specs=pl.BlockSpec((1, 1, tl, tn),
                               lambda s, n, bb, i, kk: (bb, s, i, n)),
        scratch_shapes=[pltpu.VMEM((tl, tn), jnp.float32)],
        compiler_params=pltpu.CompilerParams(
            dimension_semantics=("parallel",) * 4 + ("arbitrary",),
            vmem_limit_bytes=vmem_limit,
        ),
    )(x, w, b)


# ---------------------------------------------------------------------------
# Flash-style attention kernel with per-head QK-RMSNorm.
#   grid = (B, L/tq, L/tkv); kv axis innermost, "arbitrary".
#   q_ref: (1, 1, tq, C) bf16   k_ref/v_ref: (1, 1, tkv, C) bf16
#   o_ref: (1, tq, C) bf16      qrn_ref: (1, tq, H)   krn_ref: (1, tkv, H)
#   scratch: m/l (tq, H) f32, acc (tq, C) f32
# ---------------------------------------------------------------------------
def _flash_attn_kernel(q_ref, k_ref, v_ref, qw_ref, kw_ref,
                       o_ref, qrn_ref, krn_ref,
                       m_ref, l_ref, acc_ref,
                       *, num_heads, eps, scale):
    kvi = pl.program_id(2)
    n_kv = pl.num_programs(2)
    H = num_heads
    C = q_ref.shape[-1]
    D = C // H

    @pl.when(kvi == 0)
    def _init():
        m_ref[...] = jnp.full(m_ref.shape, -jnp.inf, dtype=m_ref.dtype)
        l_ref[...] = jnp.zeros_like(l_ref)
        acc_ref[...] = jnp.zeros_like(acc_ref)

    qw = qw_ref[...].astype(jnp.float32)          # (1, D)
    kw = kw_ref[...].astype(jnp.float32)

    for h in range(H):                            # static unroll; writes in place
        sl = slice(h * D, (h + 1) * D)

        # Per-head RMSNorm in f32 (VPU); inputs arrive as bf16.
        qh = q_ref[0, 0, :, sl].astype(jnp.float32)            # (tq, D)
        kh = k_ref[0, 0, :, sl].astype(jnp.float32)            # (tkv, D)
        qn = qh * lax.rsqrt(jnp.mean(qh * qh, axis=-1, keepdims=True) + eps) * qw
        kn = kh * lax.rsqrt(jnp.mean(kh * kh, axis=-1, keepdims=True) + eps) * kw

        # Diagnostics: per-row L2 norms of the normalized q/k (tiny side outputs,
        # written every step so the per-kv-chunk krn block is always valid).
        qrn_ref[0, :, h:h + 1] = jnp.sqrt(jnp.sum(qn * qn, axis=-1, keepdims=True))
        krn_ref[0, :, h:h + 1] = jnp.sqrt(jnp.sum(kn * kn, axis=-1, keepdims=True))

        # bf16 MXU operands, f32 accumulation; fold 1/sqrt(D) into the q operand.
        qs = (qn * scale).astype(jnp.bfloat16)
        ks = kn.astype(jnp.bfloat16)
        vs = v_ref[0, 0, :, sl].astype(jnp.bfloat16)           # (tkv, D)

        s = lax.dot_general(qs, ks, (((1,), (1,)), ((), ())),
                            preferred_element_type=jnp.float32)  # (tq, tkv)

        # Online-softmax update for this head's kv chunk.
        m_prev = m_ref[:, h:h + 1]                              # (tq, 1)
        m_new = jnp.maximum(m_prev, jnp.max(s, axis=-1, keepdims=True))
        alpha = jnp.exp(m_prev - m_new)
        p = jnp.exp(s - m_new)
        l_ref[:, h:h + 1] = alpha * l_ref[:, h:h + 1] + jnp.sum(p, axis=-1,
                                                                keepdims=True)
        acc_ref[:, sl] = alpha * acc_ref[:, sl] + jnp.dot(
            p.astype(jnp.bfloat16), vs, preferred_element_type=jnp.float32)
        m_ref[:, h:h + 1] = m_new

    @pl.when(kvi == n_kv - 1)
    def _finalize():
        for h in range(H):
            sl = slice(h * D, (h + 1) * D)
            # Normalize the (tq, D) output (not the (tq, tkv) matrix); EUP reciprocal.
            inv = pl.reciprocal(l_ref[:, h:h + 1], approx=True)
            o_ref[0, :, sl] = (acc_ref[:, sl] * inv).astype(o_ref.dtype)


def attention_pallas(qkv, q_w, k_w, *, num_heads, eps, vmem_limit,
                     tq_cap=256, tkv_cap=512):
    """qkv: (B, 3, L, C) bf16 from the fused projection.

    Returns (o bf16 (B,L,C), q row-norms (B,L,H), k row-norms (B,L,H))."""
    B, _, L, C = qkv.shape
    H = num_heads
    D = C // H
    tq = _pick_tile(L, tq_cap, 8)
    tkv = _pick_tile(L, tkv_cap, 128)
    grid = (B, L // tq, L // tkv)

    kern = functools.partial(_flash_attn_kernel, num_heads=H, eps=eps,
                             scale=1.0 / math.sqrt(D))
    return pl.pallas_call(
        kern,
        out_shape=(jax.ShapeDtypeStruct((B, L, C), jnp.bfloat16),
                   jax.ShapeDtypeStruct((B, L, H), jnp.float32),
                   jax.ShapeDtypeStruct((B, L, H), jnp.float32)),
        grid=grid,
        in_specs=[
            pl.BlockSpec((1, 1, tq, C), lambda b, qi, kvi: (b, 0, qi, 0)),   # q slab
            pl.BlockSpec((1, 1, tkv, C), lambda b, qi, kvi: (b, 1, kvi, 0)),  # k slab
            pl.BlockSpec((1, 1, tkv, C), lambda b, qi, kvi: (b, 2, kvi, 0)),  # v slab
            pl.BlockSpec((1, D), lambda b, qi, kvi: (0, 0)),
            pl.BlockSpec((1, D), lambda b, qi, kvi: (0, 0)),
        ],
        out_specs=(
            pl.BlockSpec((1, tq, C), lambda b, qi, kvi: (b, qi, 0)),
            pl.BlockSpec((1, tq, H), lambda b, qi, kvi: (b, qi, 0)),
            pl.BlockSpec((1, tkv, H), lambda b, qi, kvi: (b, kvi, 0)),
        ),
        scratch_shapes=[
            pltpu.VMEM((tq, H), jnp.float32),   # running row max, per head
            pltpu.VMEM((tq, H), jnp.float32),   # running row sum, per head
            pltpu.VMEM((tq, C), jnp.float32),   # output accumulator, all heads
        ],
        compiler_params=pltpu.CompilerParams(
            dimension_semantics=("parallel", "parallel", "arbitrary"),
            vmem_limit_bytes=vmem_limit,
        ),
    )(qkv, qkv, qkv,
      q_w.reshape(1, D).astype(jnp.float32),
      k_w.reshape(1, D).astype(jnp.float32))


# ---------------------------------------------------------------------------
# Full forward pass (mirrors the PyTorch module)
# ---------------------------------------------------------------------------
def attention_forward(x, params, num_heads, eps=1e-6, *,
                      attn_tq_cap=256, attn_tkv_cap=512):
    B, L, C = x.shape
    H = num_heads

    vmem_limit = _vmem_limit_bytes()

    # One-time weight reorganisation (amortised across calls):
    #  * qkv weight (3C, C) -> (3, Cin, Cout) so q/k/v land in separate slabs of a
    #    (B, 3, L, C) output the attention kernel indexes via BlockSpec index_maps.
    #  * all weights pre-transposed to (Cin, Cout) and stored in bf16 (half the
    #    DMA, single-pass MXU); biases stay f32 (added to the f32 accumulator).
    w_qkv = jnp.transpose(params["w_qkv"].reshape(3, C, C), (0, 2, 1)).astype(jnp.bfloat16)
    b_qkv = params["b_qkv"].reshape(3, 1, C).astype(jnp.float32)
    w_proj = jnp.transpose(params["w_proj"]).reshape(1, C, C).astype(jnp.bfloat16)
    b_proj = params["b_proj"].reshape(1, 1, C).astype(jnp.float32)

    x_bf = x.astype(jnp.bfloat16)

    qkv = linear_pallas(x_bf, w_qkv, b_qkv, out_dtype=jnp.bfloat16,
                        vmem_limit=vmem_limit)                       # (B, 3, L, C) bf16

    o, qrn, krn = attention_pallas(qkv, params["q_norm_w"], params["k_norm_w"],
                                   num_heads=H, eps=eps, vmem_limit=vmem_limit,
                                   tq_cap=attn_tq_cap, tkv_cap=attn_tkv_cap)

    out = linear_pallas(o, w_proj, b_proj, out_dtype=jnp.float32,
                        vmem_limit=vmem_limit).reshape(B, L, C)      # (B, L, C) f32

    # Diagnostic magnitudes (the torch.no_grad block): tiny reductions over the
    # in-kernel per-row norms (no full qn/kn tensors ever touch HBM).
    q_mag = jnp.mean(qrn)
    k_mag = jnp.mean(krn)
    attn_mag = jnp.mean(jnp.sqrt(jnp.sum(out * out, axis=-1)))
    return out, q_mag, k_mag, attn_mag


# ---------------------------------------------------------------------------
# Pure-JAX reference (correctness check)
# ---------------------------------------------------------------------------
def attention_reference(x, params, num_heads, eps=1e-6):
    B, L, C = x.shape
    H = num_heads
    D = C // H
    hp = jax.lax.Precision.HIGHEST
    qkv = jnp.einsum("blc,oc->blo", x, params["w_qkv"], precision=hp) + params["b_qkv"]
    qkv = qkv.reshape(B, L, 3, H, D)
    q, k, v = qkv[:, :, 0], qkv[:, :, 1], qkv[:, :, 2]

    def rms(t, w):
        return t * lax.rsqrt(jnp.mean(t * t, axis=-1, keepdims=True) + eps) * w

    q = rms(q, params["q_norm_w"])
    k = rms(k, params["k_norm_w"])
    q = q.transpose(0, 2, 1, 3)
    k = k.transpose(0, 2, 1, 3)
    v = v.transpose(0, 2, 1, 3)
    s = jnp.einsum("bhld,bhmd->bhlm", q, k, precision=hp) / math.sqrt(D)
    p = jax.nn.softmax(s, axis=-1)
    o = jnp.einsum("bhlm,bhmd->bhld", p, v, precision=hp)
    xo = o.transpose(0, 2, 1, 3).reshape(B, L, C)
    xo = jnp.einsum("blc,oc->blo", xo, params["w_proj"], precision=hp) + params["b_proj"]
    q_mag = jnp.mean(jnp.linalg.norm(q, axis=-1))
    k_mag = jnp.mean(jnp.linalg.norm(k, axis=-1))
    attn_mag = jnp.mean(jnp.linalg.norm(xo, axis=-1))
    return xo, q_mag, k_mag, attn_mag


# ---------------------------------------------------------------------------
if __name__ == "__main__":
    def run_case(B, L, C, H, seed, **fwd_kwargs):
        D = C // H
        key = jax.random.PRNGKey(seed)
        kx, k1, k2, k3, k4, k5, k6 = jax.random.split(key, 7)
        x = jax.random.normal(kx, (B, L, C), dtype=jnp.float32)

        params = dict(
            w_qkv=jax.random.normal(k1, (3 * C, C), jnp.float32) / math.sqrt(C),
            b_qkv=0.01 * jax.random.normal(k2, (3 * C,), jnp.float32),
            w_proj=jax.random.normal(k3, (C, C), jnp.float32) / math.sqrt(C),
            b_proj=0.01 * jax.random.normal(k4, (C,), jnp.float32),
            q_norm_w=1.0 + 0.1 * jax.random.normal(k5, (D,), jnp.float32),
            k_norm_w=1.0 + 0.1 * jax.random.normal(k6, (D,), jnp.float32),
        )

        fwd = jax.jit(functools.partial(attention_forward, num_heads=H, **fwd_kwargs))
        out, q_mag, k_mag, attn_mag = jax.block_until_ready(fwd(x, params))

        ref_out, ref_q, ref_k, ref_a = attention_reference(x, params, H)
        # bf16-class pipeline (bf16 weights/activations on the MXU, f32 elementwise
        # and accumulation) vs a HIGHEST-precision f32 reference -> 5e-2 tolerance.
        np.testing.assert_allclose(np.asarray(out), np.asarray(ref_out),
                                   atol=5e-2, rtol=5e-2)
        np.testing.assert_allclose(np.asarray([q_mag, k_mag, attn_mag]),
                                   np.asarray([ref_q, ref_k, ref_a]),
                                   atol=5e-2, rtol=5e-2)

    # Small sanity shapes (below hardware tiles).
    run_case(B=2, L=8, C=32, H=4, seed=0)
    # Moderate shapes that exercise multiple q tiles and kv chunks (the flash
    # online-softmax path), full 128-lane layouts and multi-step pipelining.
    run_case(B=2, L=256, C=128, H=2, seed=1, attn_tq_cap=64, attn_tkv_cap=128)

    print("KERNEL_OK")
</pallas_src>

<mosaic_0001>
module attributes {stable_mosaic.version = 11 : i64} {
  func.func @_linear_kernel_fullk(%arg0: i32, %arg1: i32, %arg2: i32, %arg3: i32, %arg4: memref<1x8x32xbf16, #tpu.memory_space<vmem>>, %arg5: memref<1x32x32xbf16, #tpu.memory_space<vmem>>, %arg6: memref<1x1x32xf32, #tpu.memory_space<vmem>>, %arg7: memref<1x1x8x32xbf16, #tpu.memory_space<vmem>>) attributes {dimension_semantics = [#tpu.dimension_semantics<parallel>, #tpu.dimension_semantics<parallel>, #tpu.dimension_semantics<parallel>, #tpu.dimension_semantics<parallel>], iteration_bounds = array<i64: 3, 1, 2, 1>, scalar_prefetch = 0 : i64, scratch_operands = 0 : i64, tpu.core_type = #tpu.core_type<tc>, window_params = [{transform_indices = @transform_0, window_bounds = array<i64: 1, 8, 32>}, {transform_indices = @transform_1, window_bounds = array<i64: 1, 32, 32>}, {transform_indices = @transform_2, window_bounds = array<i64: 1, 1, 32>}, {transform_indices = @transform_3, window_bounds = array<i64: 1, 1, 8, 32>}]} {
    %c0 = arith.constant 0 : index
    %c0_0 = arith.constant 0 : index
    %c0_1 = arith.constant 0 : index
    %0 = vector.load %arg4[%c0, %c0_0, %c0_1] : memref<1x8x32xbf16, #tpu.memory_space<vmem>>, vector<1x8x32xbf16>
    %1 = vector.shape_cast %0 : vector<1x8x32xbf16> to vector<8x32xbf16>
    %c0_2 = arith.constant 0 : index
    %c0_3 = arith.constant 0 : index
    %c0_4 = arith.constant 0 : index
    %2 = vector.load %arg5[%c0_2, %c0_3, %c0_4] : memref<1x32x32xbf16, #tpu.memory_space<vmem>>, vector<1x32x32xbf16>
    %3 = vector.shape_cast %2 : vector<1x32x32xbf16> to vector<32x32xbf16>
    %cst = arith.constant dense<0.000000e+00> : vector<8x32xf32>
    %4 = tpu.matmul %1, %3, %cst {dimension_numbers = #tpu.dot_dimension_numbers<[1], [0], [0], [1], [0, 0, 1, 1], [], []>} : vector<8x32xbf16>, vector<32x32xbf16>, vector<8x32xf32> -> vector<8x32xf32>
    %c0_5 = arith.constant 0 : index
    %c0_6 = arith.constant 0 : index
    %c0_7 = arith.constant 0 : index
    %5 = vector.load %arg6[%c0_5, %c0_6, %c0_7] : memref<1x1x32xf32, #tpu.memory_space<vmem>>, vector<1x1x32xf32>
    %6 = vector.shape_cast %5 : vector<1x1x32xf32> to vector<1x32xf32>
    %7 = vector.broadcast %6 : vector<1x32xf32> to vector<8x32xf32>
    %8 = arith.addf %4, %7 : vector<8x32xf32>
    %9 = arith.truncf %8 : vector<8x32xf32> to vector<8x32xbf16>
    %c0_8 = arith.constant 0 : index
    %c0_9 = arith.constant 0 : index
    %c0_10 = arith.constant 0 : index
    %c0_11 = arith.constant 0 : index
    %10 = vector.load %arg7[%c0_8, %c0_9, %c0_10, %c0_11] : memref<1x1x8x32xbf16, #tpu.memory_space<vmem>>, vector<1x1x8x32xbf16>
    %11 = vector.shape_cast %10 : vector<1x1x8x32xbf16> to vector<8x32xbf16>
    %12 = vector.shape_cast %9 : vector<8x32xbf16> to vector<1x1x8x32xbf16>
    tpu.vector_store %arg7[%c0_8, %c0_9, %c0_10, %c0_11], %12 {strides = array<i32>} : memref<1x1x8x32xbf16, #tpu.memory_space<vmem>>, vector<1x1x8x32xbf16>,
    return
  }
  func.func @transform_0(%arg0: i32, %arg1: i32, %arg2: i32, %arg3: i32) -> (i32, i32, i32) {
    %c0_i32 = arith.constant 0 : i32
    %c0_i32_0 = arith.constant 0 : i32
    return %arg2, %arg3, %c0_i32 : i32, i32, i32
  }
  func.func @transform_1(%arg0: i32, %arg1: i32, %arg2: i32, %arg3: i32) -> (i32, i32, i32) {
    %c0_i32 = arith.constant 0 : i32
    %c0_i32_0 = arith.constant 0 : i32
    return %arg0, %c0_i32, %arg1 : i32, i32, i32
  }
  func.func @transform_2(%arg0: i32, %arg1: i32, %arg2: i32, %arg3: i32) -> (i32, i32, i32) {
    %c0_i32 = arith.constant 0 : i32
    %c0_i32_0 = arith.constant 0 : i32
    return %arg0, %c0_i32, %arg1 : i32, i32, i32
  }
  func.func @transform_3(%arg0: i32, %arg1: i32, %arg2: i32, %arg3: i32) -> (i32, i32, i32, i32) {
    %c0_i32 = arith.constant 0 : i32
    return %arg2, %arg0, %arg3, %arg1 : i32, i32, i32, i32
  }
}

module attributes {stable_mosaic.version = 11 : i64} {
  func.func @_linear_kernel_fullk(%arg0: i32, %arg1: i32, %arg2: i32, %arg3: i32, %arg4: memref<1x8x32xbf16, #tpu.memory_space<vmem>>, %arg5: memref<1x32x32xbf16, #tpu.memory_space<vmem>>, %arg6: memref<1x1x32xf32, #tpu.memory_space<vmem>>, %arg7: memref<1x1x8x32xf32, #tpu.memory_space<vmem>>) attributes {dimension_semantics = [#tpu.dimension_semantics<parallel>, #tpu.dimension_semantics<parallel>, #tpu.dimension_semantics<parallel>, #tpu.dimension_semantics<parallel>], iteration_bounds = array<i64: 1, 1, 2, 1>, scalar_prefetch = 0 : i64, scratch_operands = 0 : i64, tpu.core_type = #tpu.core_type<tc>, window_params = [{transform_indices = @transform_0, window_bounds = array<i64: 1, 8, 32>}, {transform_indices = @transform_1, window_bounds = array<i64: 1, 32, 32>}, {transform_indices = @transform_2, window_bounds = array<i64: 1, 1, 32>}, {transform_indices = @transform_3, window_bounds = array<i64: 1, 1, 8, 32>}]} {
    %c0 = arith.constant 0 : index
    %c0_0 = arith.constant 0 : index
    %c0_1 = arith.constant 0 : index
    %0 = vector.load %arg4[%c0, %c0_0, %c0_1] : memref<1x8x32xbf16, #tpu.memory_space<vmem>>, vector<1x8x32xbf16>
    %1 = vector.shape_cast %0 : vector<1x8x32xbf16> to vector<8x32xbf16>
    %c0_2 = arith.constant 0 : index
    %c0_3 = arith.constant 0 : index
    %c0_4 = arith.constant 0 : index
    %2 = vector.load %arg5[%c0_2, %c0_3, %c0_4] : memref<1x32x32xbf16, #tpu.memory_space<vmem>>, vector<1x32x32xbf16>
    %3 = vector.shape_cast %2 : vector<1x32x32xbf16> to vector<32x32xbf16>
    %cst = arith.constant dense<0.000000e+00> : vector<8x32xf32>
    %4 = tpu.matmul %1, %3, %cst {dimension_numbers = #tpu.dot_dimension_numbers<[1], [0], [0], [1], [0, 0, 1, 1], [], []>} : vector<8x32xbf16>, vector<32x32xbf16>, vector<8x32xf32> -> vector<8x32xf32>
    %c0_5 = arith.constant 0 : index
    %c0_6 = arith.constant 0 : index
    %c0_7 = arith.constant 0 : index
    %5 = vector.load %arg6[%c0_5, %c0_6, %c0_7] : memref<1x1x32xf32, #tpu.memory_space<vmem>>, vector<1x1x32xf32>
    %6 = vector.shape_cast %5 : vector<1x1x32xf32> to vector<1x32xf32>
    %7 = vector.broadcast %6 : vector<1x32xf32> to vector<8x32xf32>
    %8 = arith.addf %4, %7 : vector<8x32xf32>
    %c0_8 = arith.constant 0 : index
    %c0_9 = arith.constant 0 : index
    %c0_10 = arith.constant 0 : index
    %c0_11 = arith.constant 0 : index
    %9 = vector.load %arg7[%c0_8, %c0_9, %c0_10, %c0_11] : memref<1x1x8x32xf32, #tpu.memory_space<vmem>>, vector<1x1x8x32xf32>
    %10 = vector.shape_cast %9 : vector<1x1x8x32xf32> to vector<8x32xf32>
    %11 = vector.shape_cast %8 : vector<8x32xf32> to vector<1x1x8x32xf32>
    tpu.vector_store %arg7[%c0_8, %c0_9, %c0_10, %c0_11], %11 {strides = array<i32>} : memref<1x1x8x32xf32, #tpu.memory_space<vmem>>, vector<1x1x8x32xf32>,
    return
  }
  func.func @transform_0(%arg0: i32, %arg1: i32, %arg2: i32, %arg3: i32) -> (i32, i32, i32) {
    %c0_i32 = arith.constant 0 : i32
    %c0_i32_0 = arith.constant 0 : i32
    return %arg2, %arg3, %c0_i32 : i32, i32, i32
  }
  func.func @transform_1(%arg0: i32, %arg1: i32, %arg2: i32, %arg3: i32) -> (i32, i32, i32) {
    %c0_i32 = arith.constant 0 : i32
    %c0_i32_0 = arith.constant 0 : i32
    return %arg0, %c0_i32, %arg1 : i32, i32, i32
  }
  func.func @transform_2(%arg0: i32, %arg1: i32, %arg2: i32, %arg3: i32) -> (i32, i32, i32) {
    %c0_i32 = arith.constant 0 : i32
    %c0_i32_0 = arith.constant 0 : i32
    return %arg0, %c0_i32, %arg1 : i32, i32, i32
  }
  func.func @transform_3(%arg0: i32, %arg1: i32, %arg2: i32, %arg3: i32) -> (i32, i32, i32, i32) {
    %c0_i32 = arith.constant 0 : i32
    return %arg2, %arg0, %arg3, %arg1 : i32, i32, i32, i32
  }
}

module attributes {stable_mosaic.version = 11 : i64} {
  func.func @_flash_attn_kernel(%arg0: i32, %arg1: i32, %arg2: i32, %arg3: memref<1x1x8x32xbf16, #tpu.memory_space<vmem>>, %arg4: memref<1x1x8x32xbf16, #tpu.memory_space<vmem>>, %arg5: memref<1x1x8x32xbf16, #tpu.memory_space<vmem>>, %arg6: memref<1x8xf32, #tpu.memory_space<vmem>>, %arg7: memref<1x8xf32, #tpu.memory_space<vmem>>, %arg8: memref<1x8x32xbf16, #tpu.memory_space<vmem>>, %arg9: memref<1x8x4xf32, #tpu.memory_space<vmem>>, %arg10: memref<1x8x4xf32, #tpu.memory_space<vmem>>, %arg11: memref<8x4xf32, #tpu.memory_space<vmem>>, %arg12: memref<8x4xf32, #tpu.memory_space<vmem>>, %arg13: memref<8x32xf32, #tpu.memory_space<vmem>>) attributes {dimension_semantics = [#tpu.dimension_semantics<parallel>, #tpu.dimension_semantics<parallel>, #tpu.dimension_semantics<arbitrary>], iteration_bounds = array<i64: 2, 1, 1>, scalar_prefetch = 0 : i64, scratch_operands = 3 : i64, tpu.core_type = #tpu.core_type<tc>, window_params = [{transform_indices = @transform_0, window_bounds = array<i64: 1, 1, 8, 32>}, {transform_indices = @transform_1, window_bounds = array<i64: 1, 1, 8, 32>}, {transform_indices = @transform_2, window_bounds = array<i64: 1, 1, 8, 32>}, {pipeline_mode = #tpu.pipeline_mode<synchronous>, transform_indices = @transform_3, window_bounds = array<i64: 1, 8>}, {pipeline_mode = #tpu.pipeline_mode<synchronous>, transform_indices = @transform_4, window_bounds = array<i64: 1, 8>}, {transform_indices = @transform_5, window_bounds = array<i64: 1, 8, 32>}, {transform_indices = @transform_6, window_bounds = array<i64: 1, 8, 4>}, {transform_indices = @transform_7, window_bounds = array<i64: 1, 8, 4>}]} {
    %c0_i32 = arith.constant 0 : i32
    %0 = arith.cmpi eq, %arg2, %c0_i32 : i32
    %1 = arith.extui %0 : i1 to i32
    %c0_i32_0 = arith.constant 0 : i32
    %2 = arith.cmpi ne, %1, %c0_i32_0 : i32
    scf.if %2 {
      %cst_171 = arith.constant 0xFF800000 : f32
      %304 = vector.broadcast %cst_171 : f32 to vector<8x4xf32>
      %c0_172 = arith.constant 0 : index
      %c0_173 = arith.constant 0 : index
      %305 = vector.load %arg11[%c0_172, %c0_173] : memref<8x4xf32, #tpu.memory_space<vmem>>, vector<8x4xf32>
      tpu.vector_store %arg11[%c0_172, %c0_173], %304 {strides = array<i32>} : memref<8x4xf32, #tpu.memory_space<vmem>>, vector<8x4xf32>,
      %cst_174 = arith.constant 0.000000e+00 : f32
      %306 = vector.broadcast %cst_174 : f32 to vector<8x4xf32>
      %c0_175 = arith.constant 0 : index
      %c0_176 = arith.constant 0 : index
      %307 = vector.load %arg12[%c0_175, %c0_176] : memref<8x4xf32, #tpu.memory_space<vmem>>, vector<8x4xf32>
      tpu.vector_store %arg12[%c0_175, %c0_176], %306 {strides = array<i32>} : memref<8x4xf32, #tpu.memory_space<vmem>>, vector<8x4xf32>,
      %cst_177 = arith.constant 0.000000e+00 : f32
      %308 = vector.broadcast %cst_177 : f32 to vector<8x32xf32>
      %c0_178 = arith.constant 0 : index
      %c0_179 = arith.constant 0 : index
      %309 = vector.load %arg13[%c0_178, %c0_179] : memref<8x32xf32, #tpu.memory_space<vmem>>, vector<8x32xf32>
      tpu.vector_store %arg13[%c0_178, %c0_179], %308 {strides = array<i32>} : memref<8x32xf32, #tpu.memory_space<vmem>>, vector<8x32xf32>,
    } else {
    }
    %c0 = arith.constant 0 : index
    %c0_1 = arith.constant 0 : index
    %3 = vector.load %arg6[%c0, %c0_1] : memref<1x8xf32, #tpu.memory_space<vmem>>, vector<1x8xf32>
    %c0_2 = arith.constant 0 : index
    %c0_3 = arith.constant 0 : index
    %4 = vector.load %arg7[%c0_2, %c0_3] : memref<1x8xf32, #tpu.memory_space<vmem>>, vector<1x8xf32>
    %c0_4 = arith.constant 0 : index
    %c0_5 = arith.constant 0 : index
    %c0_6 = arith.constant 0 : index
    %c0_7 = arith.constant 0 : index
    %5 = vector.load %arg3[%c0_4, %c0_5, %c0_6, %c0_7] : memref<1x1x8x32xbf16, #tpu.memory_space<vmem>>, vector<1x1x8x8xbf16>
    %6 = vector.shape_cast %5 : vector<1x1x8x8xbf16> to vector<8x8xbf16>
    %7 = arith.extf %6 : vector<8x8xbf16> to vector<8x8xf32>
    %c0_8 = arith.constant 0 : index
    %c0_9 = arith.constant 0 : index
    %c0_10 = arith.constant 0 : index
    %c0_11 = arith.constant 0 : index
    %8 = vector.load %arg4[%c0_8, %c0_9, %c0_10, %c0_11] : memref<1x1x8x32xbf16, #tpu.memory_space<vmem>>, vector<1x1x8x8xbf16>
    %9 = vector.shape_cast %8 : vector<1x1x8x8xbf16> to vector<8x8xbf16>
    %10 = arith.extf %9 : vector<8x8xbf16> to vector<8x8xf32>
    %11 = arith.mulf %7, %7 : vector<8x8xf32>
    %cst = arith.constant dense<0.000000e+00> : vector<8xf32>
    %12 = vector.multi_reduction <add>, %11, %cst [1] : vector<8x8xf32> to vector<8xf32>
    %13 = vector.shape_cast %12 : vector<8xf32> to vector<8x1xf32>
    %cst_12 = arith.constant 8.000000e+00 : f32
    %14 = vector.broadcast %cst_12 : f32 to vector<8x1xf32>
    %15 = arith.divf %13, %14 : vector<8x1xf32>
    %cst_13 = arith.constant 9.99999997E-7 : f32
    %16 = vector.broadcast %cst_13 : f32 to vector<8x1xf32>
    %17 = arith.addf %15, %16 : vector<8x1xf32>
    %18 = math.rsqrt %17 : vector<8x1xf32>
    %19 = vector.broadcast %18 : vector<8x1xf32> to vector<8x8xf32>
    %20 = arith.mulf %7, %19 : vector<8x8xf32>
    %21 = vector.broadcast %3 : vector<1x8xf32> to vector<8x8xf32>
    %22 = arith.mulf %20, %21 : vector<8x8xf32>
    %23 = arith.mulf %10, %10 : vector<8x8xf32>
    %cst_14 = arith.constant dense<0.000000e+00> : vector<8xf32>
    %24 = vector.multi_reduction <add>, %23, %cst_14 [1] : vector<8x8xf32> to vector<8xf32>
    %25 = vector.shape_cast %24 : vector<8xf32> to vector<8x1xf32>
    %cst_15 = arith.constant 8.000000e+00 : f32
    %26 = vector.broadcast %cst_15 : f32 to vector<8x1xf32>
    %27 = arith.divf %25, %26 : vector<8x1xf32>
    %cst_16 = arith.constant 9.99999997E-7 : f32
    %28 = vector.broadcast %cst_16 : f32 to vector<8x1xf32>
    %29 = arith.addf %27, %28 : vector<8x1xf32>
    %30 = math.rsqrt %29 : vector<8x1xf32>
    %31 = vector.broadcast %30 : vector<8x1xf32> to vector<8x8xf32>
    %32 = arith.mulf %10, %31 : vector<8x8xf32>
    %33 = vector.broadcast %4 : vector<1x8xf32> to vector<8x8xf32>
    %34 = arith.mulf %32, %33 : vector<8x8xf32>
    %35 = arith.mulf %22, %22 : vector<8x8xf32>
    %cst_17 = arith.constant dense<0.000000e+00> : vector<8xf32>
    %36 = vector.multi_reduction <add>, %35, %cst_17 [1] : vector<8x8xf32> to vector<8xf32>
    %37 = vector.shape_cast %36 : vector<8xf32> to vector<8x1xf32>
    %38 = math.sqrt %37 : vector<8x1xf32>
    %c0_18 = arith.constant 0 : index
    %c0_19 = arith.constant 0 : index
    %c0_20 = arith.constant 0 : index
    %39 = vector.load %arg9[%c0_18, %c0_19, %c0_20] : memref<1x8x4xf32, #tpu.memory_space<vmem>>, vector<1x8x1xf32>
    %40 = vector.shape_cast %39 : vector<1x8x1xf32> to vector<8x1xf32>
    %41 = vector.shape_cast %38 : vector<8x1xf32> to vector<1x8x1xf32>
    tpu.vector_store %arg9[%c0_18, %c0_19, %c0_20], %41 {strides = array<i32>} : memref<1x8x4xf32, #tpu.memory_space<vmem>>, vector<1x8x1xf32>,
    %42 = arith.mulf %34, %34 : vector<8x8xf32>
    %cst_21 = arith.constant dense<0.000000e+00> : vector<8xf32>
    %43 = vector.multi_reduction <add>, %42, %cst_21 [1] : vector<8x8xf32> to vector<8xf32>
    %44 = vector.shape_cast %43 : vector<8xf32> to vector<8x1xf32>
    %45 = math.sqrt %44 : vector<8x1xf32>
    %c0_22 = arith.constant 0 : index
    %c0_23 = arith.constant 0 : index
    %c0_24 = arith.constant 0 : index
    %46 = vector.load %arg10[%c0_22, %c0_23, %c0_24] : memref<1x8x4xf32, #tpu.memory_space<vmem>>, vector<1x8x1xf32>
    %47 = vector.shape_cast %46 : vector<1x8x1xf32> to vector<8x1xf32>
    %48 = vector.shape_cast %45 : vector<8x1xf32> to vector<1x8x1xf32>
    tpu.vector_store %arg10[%c0_22, %c0_23, %c0_24], %48 {strides = array<i32>} : memref<1x8x4xf32, #tpu.memory_space<vmem>>, vector<1x8x1xf32>,
    %cst_25 = arith.constant 0.353553385 : f32
    %49 = vector.broadcast %cst_25 : f32 to vector<8x8xf32>
    %50 = arith.mulf %22, %49 : vector<8x8xf32>
    %51 = arith.truncf %50 : vector<8x8xf32> to vector<8x8xbf16>
    %52 = arith.truncf %34 : vector<8x8xf32> to vector<8x8xbf16>
    %c0_26 = arith.constant 0 : index
    %c0_27 = arith.constant 0 : index
    %c0_28 = arith.constant 0 : index
    %c0_29 = arith.constant 0 : index
    %53 = vector.load %arg5[%c0_26, %c0_27, %c0_28, %c0_29] : memref<1x1x8x32xbf16, #tpu.memory_space<vmem>>, vector<1x1x8x8xbf16>
    %54 = vector.shape_cast %53 : vector<1x1x8x8xbf16> to vector<8x8xbf16>
    %cst_30 = arith.constant dense<0.000000e+00> : vector<8x8xf32>
    %55 = tpu.matmul %51, %52, %cst_30 {dimension_numbers = #tpu.dot_dimension_numbers<[1], [1], [0], [0], [0, 0, 1, 0], [], []>} : vector<8x8xbf16>, vector<8x8xbf16>, vector<8x8xf32> -> vector<8x8xf32>
    %c0_31 = arith.constant 0 : index
    %c0_32 = arith.constant 0 : index
    %56 = vector.load %arg11[%c0_31, %c0_32] : memref<8x4xf32, #tpu.memory_space<vmem>>, vector<8x1xf32>
    %cst_33 = arith.constant dense<0xFF800000> : vector<8xf32>
    %57 = vector.multi_reduction <maximumf>, %55, %cst_33 [1] : vector<8x8xf32> to vector<8xf32>
    %58 = vector.shape_cast %57 : vector<8xf32> to vector<8x1xf32>
    %59 = arith.maximumf %56, %58 : vector<8x1xf32>
    %60 = arith.subf %56, %59 : vector<8x1xf32>
    %61 = math.exp %60 : vector<8x1xf32>
    %62 = vector.broadcast %59 : vector<8x1xf32> to vector<8x8xf32>
    %63 = arith.subf %55, %62 : vector<8x8xf32>
    %64 = math.exp %63 : vector<8x8xf32>
    %c0_34 = arith.constant 0 : index
    %c0_35 = arith.constant 0 : index
    %65 = vector.load %arg12[%c0_34, %c0_35] : memref<8x4xf32, #tpu.memory_space<vmem>>, vector<8x1xf32>
    %66 = arith.mulf %61, %65 : vector<8x1xf32>
    %cst_36 = arith.constant dense<0.000000e+00> : vector<8xf32>
    %67 = vector.multi_reduction <add>, %64, %cst_36 [1] : vector<8x8xf32> to vector<8xf32>
    %68 = vector.shape_cast %67 : vector<8xf32> to vector<8x1xf32>
    %69 = arith.addf %66, %68 : vector<8x1xf32>
    %c0_37 = arith.constant 0 : index
    %c0_38 = arith.constant 0 : index
    %70 = vector.load %arg12[%c0_37, %c0_38] : memref<8x4xf32, #tpu.memory_space<vmem>>, vector<8x1xf32>
    tpu.vector_store %arg12[%c0_37, %c0_38], %69 {strides = array<i32>} : memref<8x4xf32, #tpu.memory_space<vmem>>, vector<8x1xf32>,
    %c0_39 = arith.constant 0 : index
    %c0_40 = arith.constant 0 : index
    %71 = vector.load %arg13[%c0_39, %c0_40] : memref<8x32xf32, #tpu.memory_space<vmem>>, vector<8x8xf32>
    %72 = vector.broadcast %61 : vector<8x1xf32> to vector<8x8xf32>
    %73 = arith.mulf %72, %71 : vector<8x8xf32>
    %74 = arith.truncf %64 : vector<8x8xf32> to vector<8x8xbf16>
    %cst_41 = arith.constant dense<0.000000e+00> : vector<8x8xf32>
    %75 = tpu.matmul %74, %54, %cst_41 {dimension_numbers = #tpu.dot_dimension_numbers<[1], [0], [0], [1], [0, 0, 1, 1], [], []>} : vector<8x8xbf16>, vector<8x8xbf16>, vector<8x8xf32> -> vector<8x8xf32>
    %76 = arith.addf %73, %75 : vector<8x8xf32>
    %c0_42 = arith.constant 0 : index
    %c0_43 = arith.constant 0 : index
    %77 = vector.load %arg13[%c0_42, %c0_43] : memref<8x32xf32, #tpu.memory_space<vmem>>, vector<8x8xf32>
    tpu.vector_store %arg13[%c0_42, %c0_43], %76 {strides = array<i32>} : memref<8x32xf32, #tpu.memory_space<vmem>>, vector<8x8xf32>,
    %c0_44 = arith.constant 0 : index
    %c0_45 = arith.constant 0 : index
    %78 = vector.load %arg11[%c0_44, %c0_45] : memref<8x4xf32, #tpu.memory_space<vmem>>, vector<8x1xf32>
    tpu.vector_store %arg11[%c0_44, %c0_45], %59 {strides = array<i32>} : memref<8x4xf32, #tpu.memory_space<vmem>>, vector<8x1xf32>,
    %c0_46 = arith.constant 0 : index
    %c0_47 = arith.constant 0 : index
    %c0_48 = arith.constant 0 : index
    %c8 = arith.constant 8 : index
    %79 = vector.load %arg3[%c0_46, %c0_47, %c0_48, %c8] : memref<1x1x8x32xbf16, #tpu.memory_space<vmem>>, vector<1x1x8x8xbf16>
    %80 = vector.shape_cast %79 : vector<1x1x8x8xbf16> to vector<8x8xbf16>
    %81 = arith.extf %80 : vector<8x8xbf16> to vector<8x8xf32>
    %c0_49 = arith.constant 0 : index
    %c0_50 = arith.constant 0 : index
    %c0_51 = arith.constant 0 : index
    %c8_52 = arith.constant 8 : index
    %82 = vector.load %arg4[%c0_49, %c0_50, %c0_51, %c8_52] : memref<1x1x8x32xbf16, #tpu.memory_space<vmem>>, vector<1x1x8x8xbf16>
    %83 = vector.shape_cast %82 : vector<1x1x8x8xbf16> to vector<8x8xbf16>
    %84 = arith.extf %83 : vector<8x8xbf16> to vector<8x8xf32>
    %85 = arith.mulf %81, %81 : vector<8x8xf32>
    %cst_53 = arith.constant dense<0.000000e+00> : vector<8xf32>
    %86 = vector.multi_reduction <add>, %85, %cst_53 [1] : vector<8x8xf32> to vector<8xf32>
    %87 = vector.shape_cast %86 : vector<8xf32> to vector<8x1xf32>
    %cst_54 = arith.constant 8.000000e+00 : f32
    %88 = vector.broadcast %cst_54 : f32 to vector<8x1xf32>
    %89 = arith.divf %87, %88 : vector<8x1xf32>
    %cst_55 = arith.constant 9.99999997E-7 : f32
    %90 = vector.broadcast %cst_55 : f32 to vector<8x1xf32>
    %91 = arith.addf %89, %90 : vector<8x1xf32>
    %92 = math.rsqrt %91 : vector<8x1xf32>
    %93 = vector.broadcast %92 : vector<8x1xf32> to vector<8x8xf32>
    %94 = arith.mulf %81, %93 : vector<8x8xf32>
    %95 = vector.broadcast %3 : vector<1x8xf32> to vector<8x8xf32>
    %96 = arith.mulf %94, %95 : vector<8x8xf32>
    %97 = arith.mulf %84, %84 : vector<8x8xf32>
    %cst_56 = arith.constant dense<0.000000e+00> : vector<8xf32>
    %98 = vector.multi_reduction <add>, %97, %cst_56 [1] : vector<8x8xf32> to vector<8xf32>
    %99 = vector.shape_cast %98 : vector<8xf32> to vector<8x1xf32>
    %cst_57 = arith.constant 8.000000e+00 : f32
    %100 = vector.broadcast %cst_57 : f32 to vector<8x1xf32>
    %101 = arith.divf %99, %100 : vector<8x1xf32>
    %cst_58 = arith.constant 9.99999997E-7 : f32
    %102 = vector.broadcast %cst_58 : f32 to vector<8x1xf32>
    %103 = arith.addf %101, %102 : vector<8x1xf32>
    %104 = math.rsqrt %103 : vector<8x1xf32>
    %105 = vector.broadcast %104 : vector<8x1xf32> to vector<8x8xf32>
    %106 = arith.mulf %84, %105 : vector<8x8xf32>
    %107 = vector.broadcast %4 : vector<1x8xf32> to vector<8x8xf32>
    %108 = arith.mulf %106, %107 : vector<8x8xf32>
    %109 = arith.mulf %96, %96 : vector<8x8xf32>
    %cst_59 = arith.constant dense<0.000000e+00> : vector<8xf32>
    %110 = vector.multi_reduction <add>, %109, %cst_59 [1] : vector<8x8xf32> to vector<8xf32>
    %111 = vector.shape_cast %110 : vector<8xf32> to vector<8x1xf32>
    %112 = math.sqrt %111 : vector<8x1xf32>
    %c0_60 = arith.constant 0 : index
    %c0_61 = arith.constant 0 : index
    %c1 = arith.constant 1 : index
    %113 = vector.load %arg9[%c0_60, %c0_61, %c1] : memref<1x8x4xf32, #tpu.memory_space<vmem>>, vector<1x8x1xf32>
    %114 = vector.shape_cast %113 : vector<1x8x1xf32> to vector<8x1xf32>
    %115 = vector.shape_cast %112 : vector<8x1xf32> to vector<1x8x1xf32>
    tpu.vector_store %arg9[%c0_60, %c0_61, %c1], %115 {strides = array<i32>} : memref<1x8x4xf32, #tpu.memory_space<vmem>>, vector<1x8x1xf32>,
    %116 = arith.mulf %108, %108 : vector<8x8xf32>
    %cst_62 = arith.constant dense<0.000000e+00> : vector<8xf32>
    %117 = vector.multi_reduction <add>, %116, %cst_62 [1] : vector<8x8xf32> to vector<8xf32>
    %118 = vector.shape_cast %117 : vector<8xf32> to vector<8x1xf32>
    %119 = math.sqrt %118 : vector<8x1xf32>
    %c0_63 = arith.constant 0 : index
    %c0_64 = arith.constant 0 : index
    %c1_65 = arith.constant 1 : index
    %120 = vector.load %arg10[%c0_63, %c0_64, %c1_65] : memref<1x8x4xf32, #tpu.memory_space<vmem>>, vector<1x8x1xf32>
    %121 = vector.shape_cast %120 : vector<1x8x1xf32> to vector<8x1xf32>
    %122 = vector.shape_cast %119 : vector<8x1xf32> to vector<1x8x1xf32>
    tpu.vector_store %arg10[%c0_63, %c0_64, %c1_65], %122 {strides = array<i32>} : memref<1x8x4xf32, #tpu.memory_space<vmem>>, vector<1x8x1xf32>,
    %cst_66 = arith.constant 0.353553385 : f32
    %123 = vector.broadcast %cst_66 : f32 to vector<8x8xf32>
    %124 = arith.mulf %96, %123 : vector<8x8xf32>
    %125 = arith.truncf %124 : vector<8x8xf32> to vector<8x8xbf16>
    %126 = arith.truncf %108 : vector<8x8xf32> to vector<8x8xbf16>
    %c0_67 = arith.constant 0 : index
    %c0_68 = arith.constant 0 : index
    %c0_69 = arith.constant 0 : index
    %c8_70 = arith.constant 8 : index
    %127 = vector.load %arg5[%c0_67, %c0_68, %c0_69, %c8_70] : memref<1x1x8x32xbf16, #tpu.memory_space<vmem>>, vector<1x1x8x8xbf16>
    %128 = vector.shape_cast %127 : vector<1x1x8x8xbf16> to vector<8x8xbf16>
    %cst_71 = arith.constant dense<0.000000e+00> : vector<8x8xf32>
    %129 = tpu.matmul %125, %126, %cst_71 {dimension_numbers = #tpu.dot_dimension_numbers<[1], [1], [0], [0], [0, 0, 1, 0], [], []>} : vector<8x8xbf16>, vector<8x8xbf16>, vector<8x8xf32> -> vector<8x8xf32>
    %c0_72 = arith.constant 0 : index
    %c1_73 = arith.constant 1 : index
    %130 = vector.load %arg11[%c0_72, %c1_73] : memref<8x4xf32, #tpu.memory_space<vmem>>, vector<8x1xf32>
    %cst_74 = arith.constant dense<0xFF800000> : vector<8xf32>
    %131 = vector.multi_reduction <maximumf>, %129, %cst_74 [1] : vector<8x8xf32> to vector<8xf32>
    %132 = vector.shape_cast %131 : vector<8xf32> to vector<8x1xf32>
    %133 = arith.maximumf %130, %132 : vector<8x1xf32>
    %134 = arith.subf %130, %133 : vector<8x1xf32>
    %135 = math.exp %134 : vector<8x1xf32>
    %136 = vector.broadcast %133 : vector<8x1xf32> to vector<8x8xf32>
    %137 = arith.subf %129, %136 : vector<8x8xf32>
    %138 = math.exp %137 : vector<8x8xf32>
    %c0_75 = arith.constant 0 : index
    %c1_76 = arith.constant 1 : index
    %139 = vector.load %arg12[%c0_75, %c1_76] : memref<8x4xf32, #tpu.memory_space<vmem>>, vector<8x1xf32>
    %140 = arith.mulf %135, %139 : vector<8x1xf32>
    %cst_77 = arith.constant dense<0.000000e+00> : vector<8xf32>
    %141 = vector.multi_reduction <add>, %138, %cst_77 [1] : vector<8x8xf32> to vector<8xf32>
    %142 = vector.shape_cast %141 : vector<8xf32> to vector<8x1xf32>
    %143 = arith.addf %140, %142 : vector<8x1xf32>
    %c0_78 = arith.constant 0 : index
    %c1_79 = arith.constant 1 : index
    %144 = vector.load %arg12[%c0_78, %c1_79] : memref<8x4xf32, #tpu.memory_space<vmem>>, vector<8x1xf32>
    tpu.vector_store %arg12[%c0_78, %c1_79], %143 {strides = array<i32>} : memref<8x4xf32, #tpu.memory_space<vmem>>, vector<8x1xf32>,
    %c0_80 = arith.constant 0 : index
    %c8_81 = arith.constant 8 : index
    %145 = vector.load %arg13[%c0_80, %c8_81] : memref<8x32xf32, #tpu.memory_space<vmem>>, vector<8x8xf32>
    %146 = vector.broadcast %135 : vector<8x1xf32> to vector<8x8xf32>
    %147 = arith.mulf %146, %145 : vector<8x8xf32>
    %148 = arith.truncf %138 : vector<8x8xf32> to vector<8x8xbf16>
    %cst_82 = arith.constant dense<0.000000e+00> : vector<8x8xf32>
    %149 = tpu.matmul %148, %128, %cst_82 {dimension_numbers = #tpu.dot_dimension_numbers<[1], [0], [0], [1], [0, 0, 1, 1], [], []>} : vector<8x8xbf16>, vector<8x8xbf16>, vector<8x8xf32> -> vector<8x8xf32>
    %150 = arith.addf %147, %149 : vector<8x8xf32>
    %c0_83 = arith.constant 0 : index
    %c8_84 = arith.constant 8 : index
    %151 = vector.load %arg13[%c0_83, %c8_84] : memref<8x32xf32, #tpu.memory_space<vmem>>, vector<8x8xf32>
    tpu.vector_store %arg13[%c0_83, %c8_84], %150 {strides = array<i32>} : memref<8x32xf32, #tpu.memory_space<vmem>>, vector<8x8xf32>,
    %c0_85 = arith.constant 0 : index
    %c1_86 = arith.constant 1 : index
    %152 = vector.load %arg11[%c0_85, %c1_86] : memref<8x4xf32, #tpu.memory_space<vmem>>, vector<8x1xf32>
    tpu.vector_store %arg11[%c0_85, %c1_86], %133 {strides = array<i32>} : memref<8x4xf32, #tpu.memory_space<vmem>>, vector<8x1xf32>,
    %c0_87 = arith.constant 0 : index
    %c0_88 = arith.constant 0 : index
    %c0_89 = arith.constant 0 : index
    %c16 = arith.constant 16 : index
    %153 = vector.load %arg3[%c0_87, %c0_88, %c0_89, %c16] : memref<1x1x8x32xbf16, #tpu.memory_space<vmem>>, vector<1x1x8x8xbf16>
    %154 = vector.shape_cast %153 : vector<1x1x8x8xbf16> to vector<8x8xbf16>
    %155 = arith.extf %154 : vector<8x8xbf16> to vector<8x8xf32>
    %c0_90 = arith.constant 0 : index
    %c0_91 = arith.constant 0 : index
    %c0_92 = arith.constant 0 : index
    %c16_93 = arith.constant 16 : index
    %156 = vector.load %arg4[%c0_90, %c0_91, %c0_92, %c16_93] : memref<1x1x8x32xbf16, #tpu.memory_space<vmem>>, vector<1x1x8x8xbf16>
    %157 = vector.shape_cast %156 : vector<1x1x8x8xbf16> to vector<8x8xbf16>
    %158 = arith.extf %157 : vector<8x8xbf16> to vector<8x8xf32>
    %159 = arith.mulf %155, %155 : vector<8x8xf32>
    %cst_94 = arith.constant dense<0.000000e+00> : vector<8xf32>
    %160 = vector.multi_reduction <add>, %159, %cst_94 [1] : vector<8x8xf32> to vector<8xf32>
    %161 = vector.shape_cast %160 : vector<8xf32> to vector<8x1xf32>
    %cst_95 = arith.constant 8.000000e+00 : f32
    %162 = vector.broadcast %cst_95 : f32 to vector<8x1xf32>
    %163 = arith.divf %161, %162 : vector<8x1xf32>
    %cst_96 = arith.constant 9.99999997E-7 : f32
    %164 = vector.broadcast %cst_96 : f32 to vector<8x1xf32>
    %165 = arith.addf %163, %164 : vector<8x1xf32>
    %166 = math.rsqrt %165 : vector<8x1xf32>
    %167 = vector.broadcast %166 : vector<8x1xf32> to vector<8x8xf32>
    %168 = arith.mulf %155, %167 : vector<8x8xf32>
    %169 = vector.broadcast %3 : vector<1x8xf32> to vector<8x8xf32>
    %170 = arith.mulf %168, %169 : vector<8x8xf32>
    %171 = arith.mulf %158, %158 : vector<8x8xf32>
    %cst_97 = arith.constant dense<0.000000e+00> : vector<8xf32>
    %172 = vector.multi_reduction <add>, %171, %cst_97 [1] : vector<8x8xf32> to vector<8xf32>
    %173 = vector.shape_cast %172 : vector<8xf32> to vector<8x1xf32>
    %cst_98 = arith.constant 8.000000e+00 : f32
    %174 = vector.broadcast %cst_98 : f32 to vector<8x1xf32>
    %175 = arith.divf %173, %174 : vector<8x1xf32>
    %cst_99 = arith.constant 9.99999997E-7 : f32
    %176 = vector.broadcast %cst_99 : f32 to vector<8x1xf32>
    %177 = arith.addf %175, %176 : vector<8x1xf32>
    %178 = math.rsqrt %177 : vector<8x1xf32>
    %179 = vector.broadcast %178 : vector<8x1xf32> to vector<8x8xf32>
    %180 = arith.mulf %158, %179 : vector<8x8xf32>
    %181 = vector.broadcast %4 : vector<1x8xf32> to vector<8x8xf32>
    %182 = arith.mulf %180, %181 : vector<8x8xf32>
    %183 = arith.mulf %170, %170 : vector<8x8xf32>
    %cst_100 = arith.constant dense<0.000000e+00> : vector<8xf32>
    %184 = vector.multi_reduction <add>, %183, %cst_100 [1] : vector<8x8xf32> to vector<8xf32>
    %185 = vector.shape_cast %184 : vector<8xf32> to vector<8x1xf32>
    %186 = math.sqrt %185 : vector<8x1xf32>
    %c0_101 = arith.constant 0 : index
    %c0_102 = arith.constant 0 : index
    %c2 = arith.constant 2 : index
    %187 = vector.load %arg9[%c0_101, %c0_102, %c2] : memref<1x8x4xf32, #tpu.memory_space<vmem>>, vector<1x8x1xf32>
    %188 = vector.shape_cast %187 : vector<1x8x1xf32> to vector<8x1xf32>
    %189 = vector.shape_cast %186 : vector<8x1xf32> to vector<1x8x1xf32>
    tpu.vector_store %arg9[%c0_101, %c0_102, %c2], %189 {strides = array<i32>} : memref<1x8x4xf32, #tpu.memory_space<vmem>>, vector<1x8x1xf32>,
    %190 = arith.mulf %182, %182 : vector<8x8xf32>
    %cst_103 = arith.constant dense<0.000000e+00> : vector<8xf32>
    %191 = vector.multi_reduction <add>, %190, %cst_103 [1] : vector<8x8xf32> to vector<8xf32>
    %192 = vector.shape_cast %191 : vector<8xf32> to vector<8x1xf32>
    %193 = math.sqrt %192 : vector<8x1xf32>
    %c0_104 = arith.constant 0 : index
    %c0_105 = arith.constant 0 : index
    %c2_106 = arith.constant 2 : index
    %194 = vector.load %arg10[%c0_104, %c0_105, %c2_106] : memref<1x8x4xf32, #tpu.memory_space<vmem>>, vector<1x8x1xf32>
    %195 = vector.shape_cast %194 : vector<1x8x1xf32> to vector<8x1xf32>
    %196 = vector.shape_cast %193 : vector<8x1xf32> to vector<1x8x1xf32>
    tpu.vector_store %arg10[%c0_104, %c0_105, %c2_106], %196 {strides = array<i32>} : memref<1x8x4xf32, #tpu.memory_space<vmem>>, vector<1x8x1xf32>,
    %cst_107 = arith.constant 0.353553385 : f32
    %197 = vector.broadcast %cst_107 : f32 to vector<8x8xf32>
    %198 = arith.mulf %170, %197 : vector<8x8xf32>
    %199 = arith.truncf %198 : vector<8x8xf32> to vector<8x8xbf16>
    %200 = arith.truncf %182 : vector<8x8xf32> to vector<8x8xbf16>
    %c0_108 = arith.constant 0 : index
    %c0_109 = arith.constant 0 : index
    %c0_110 = arith.constant 0 : index
    %c16_111 = arith.constant 16 : index
    %201 = vector.load %arg5[%c0_108, %c0_109, %c0_110, %c16_111] : memref<1x1x8x32xbf16, #tpu.memory_space<vmem>>, vector<1x1x8x8xbf16>
    %202 = vector.shape_cast %201 : vector<1x1x8x8xbf16> to vector<8x8xbf16>
    %cst_112 = arith.constant dense<0.000000e+00> : vector<8x8xf32>
    %203 = tpu.matmul %199, %200, %cst_112 {dimension_numbers = #tpu.dot_dimension_numbers<[1], [1], [0], [0], [0, 0, 1, 0], [], []>} : vector<8x8xbf16>, vector<8x8xbf16>, vector<8x8xf32> -> vector<8x8xf32>
    %c0_113 = arith.constant 0 : index
    %c2_114 = arith.constant 2 : index
    %204 = vector.load %arg11[%c0_113, %c2_114] : memref<8x4xf32, #tpu.memory_space<vmem>>, vector<8x1xf32>
    %cst_115 = arith.constant dense<0xFF800000> : vector<8xf32>
    %205 = vector.multi_reduction <maximumf>, %203, %cst_115 [1] : vector<8x8xf32> to vector<8xf32>
    %206 = vector.shape_cast %205 : vector<8xf32> to vector<8x1xf32>
    %207 = arith.maximumf %204, %206 : vector<8x1xf32>
    %208 = arith.subf %204, %207 : vector<8x1xf32>
    %209 = math.exp %208 : vector<8x1xf32>
    %210 = vector.broadcast %207 : vector<8x1xf32> to vector<8x8xf32>
    %211 = arith.subf %203, %210 : vector<8x8xf32>
    %212 = math.exp %211 : vector<8x8xf32>
    %c0_116 = arith.constant 0 : index
    %c2_117 = arith.constant 2 : index
    %213 = vector.load %arg12[%c0_116, %c2_117] : memref<8x4xf32, #tpu.memory_space<vmem>>, vector<8x1xf32>
    %214 = arith.mulf %209, %213 : vector<8x1xf32>
    %cst_118 = arith.constant dense<0.000000e+00> : vector<8xf32>
    %215 = vector.multi_reduction <add>, %212, %cst_118 [1] : vector<8x8xf32> to vector<8xf32>
    %216 = vector.shape_cast %215 : vector<8xf32> to vector<8x1xf32>
    %217 = arith.addf %214, %216 : vector<8x1xf32>
    %c0_119 = arith.constant 0 : index
    %c2_120 = arith.constant 2 : index
    %218 = vector.load %arg12[%c0_119, %c2_120] : memref<8x4xf32, #tpu.memory_space<vmem>>, vector<8x1xf32>
    tpu.vector_store %arg12[%c0_119, %c2_120], %217 {strides = array<i32>} : memref<8x4xf32, #tpu.memory_space<vmem>>, vector<8x1xf32>,
    %c0_121 = arith.constant 0 : index
    %c16_122 = arith.constant 16 : index
    %219 = vector.load %arg13[%c0_121, %c16_122] : memref<8x32xf32, #tpu.memory_space<vmem>>, vector<8x8xf32>
    %220 = vector.broadcast %209 : vector<8x1xf32> to vector<8x8xf32>
    %221 = arith.mulf %220, %219 : vector<8x8xf32>
    %222 = arith.truncf %212 : vector<8x8xf32> to vector<8x8xbf16>
    %cst_123 = arith.constant dense<0.000000e+00> : vector<8x8xf32>
    %223 = tpu.matmul %222, %202, %cst_123 {dimension_numbers = #tpu.dot_dimension_numbers<[1], [0], [0], [1], [0, 0, 1, 1], [], []>} : vector<8x8xbf16>, vector<8x8xbf16>, vector<8x8xf32> -> vector<8x8xf32>
    %224 = arith.addf %221, %223 : vector<8x8xf32>
    %c0_124 = arith.constant 0 : index
    %c16_125 = arith.constant 16 : index
    %225 = vector.load %arg13[%c0_124, %c16_125] : memref<8x32xf32, #tpu.memory_space<vmem>>, vector<8x8xf32>
    tpu.vector_store %arg13[%c0_124, %c16_125], %224 {strides = array<i32>} : memref<8x32xf32, #tpu.memory_space<vmem>>, vector<8x8xf32>,
    %c0_126 = arith.constant 0 : index
    %c2_127 = arith.constant 2 : index
    %226 = vector.load %arg11[%c0_126, %c2_127] : memref<8x4xf32, #tpu.memory_space<vmem>>, vector<8x1xf32>
    tpu.vector_store %arg11[%c0_126, %c2_127], %207 {strides = array<i32>} : memref<8x4xf32, #tpu.memory_space<vmem>>, vector<8x1xf32>,
    %c0_128 = arith.constant 0 : index
    %c0_129 = arith.constant 0 : index
    %c0_130 = arith.constant 0 : index
    %c24 = arith.constant 24 : index
    %227 = vector.load %arg3[%c0_128, %c0_129, %c0_130, %c24] : memref<1x1x8x32xbf16, #tpu.memory_space<vmem>>, vector<1x1x8x8xbf16>
    %228 = vector.shape_cast %227 : vector<1x1x8x8xbf16> to vector<8x8xbf16>
    %229 = arith.extf %228 : vector<8x8xbf16> to vector<8x8xf32>
    %c0_131 = arith.constant 0 : index
    %c0_132 = arith.constant 0 : index
    %c0_133 = arith.constant 0 : index
    %c24_134 = arith.constant 24 : index
    %230 = vector.load %arg4[%c0_131, %c0_132, %c0_133, %c24_134] : memref<1x1x8x32xbf16, #tpu.memory_space<vmem>>, vector<1x1x8x8xbf16>
    %231 = vector.shape_cast %230 : vector<1x1x8x8xbf16> to vector<8x8xbf16>
    %232 = arith.extf %231 : vector<8x8xbf16> to vector<8x8xf32>
    %233 = arith.mulf %229, %229 : vector<8x8xf32>
    %cst_135 = arith.constant dense<0.000000e+00> : vector<8xf32>
    %234 = vector.multi_reduction <add>, %233, %cst_135 [1] : vector<8x8xf32> to vector<8xf32>
    %235 = vector.shape_cast %234 : vector<8xf32> to vector<8x1xf32>
    %cst_136 = arith.constant 8.000000e+00 : f32
    %236 = vector.broadcast %cst_136 : f32 to vector<8x1xf32>
    %237 = arith.divf %235, %236 : vector<8x1xf32>
    %cst_137 = arith.constant 9.99999997E-7 : f32
    %238 = vector.broadcast %cst_137 : f32 to vector<8x1xf32>
    %239 = arith.addf %237, %238 : vector<8x1xf32>
    %240 = math.rsqrt %239 : vector<8x1xf32>
    %241 = vector.broadcast %240 : vector<8x1xf32> to vector<8x8xf32>
    %242 = arith.mulf %229, %241 : vector<8x8xf32>
    %243 = vector.broadcast %3 : vector<1x8xf32> to vector<8x8xf32>
    %244 = arith.mulf %242, %243 : vector<8x8xf32>
    %245 = arith.mulf %232, %232 : vector<8x8xf32>
    %cst_138 = arith.constant dense<0.000000e+00> : vector<8xf32>
    %246 = vector.multi_reduction <add>, %245, %cst_138 [1] : vector<8x8xf32> to vector<8xf32>
    %247 = vector.shape_cast %246 : vector<8xf32> to vector<8x1xf32>
    %cst_139 = arith.constant 8.000000e+00 : f32
    %248 = vector.broadcast %cst_139 : f32 to vector<8x1xf32>
    %249 = arith.divf %247, %248 : vector<8x1xf32>
    %cst_140 = arith.constant 9.99999997E-7 : f32
    %250 = vector.broadcast %cst_140 : f32 to vector<8x1xf32>
    %251 = arith.addf %249, %250 : vector<8x1xf32>
    %252 = math.rsqrt %251 : vector<8x1xf32>
    %253 = vector.broadcast %252 : vector<8x1xf32> to vector<8x8xf32>
    %254 = arith.mulf %232, %253 : vector<8x8xf32>
    %255 = vector.broadcast %4 : vector<1x8xf32> to vector<8x8xf32>
    %256 = arith.mulf %254, %255 : vector<8x8xf32>
    %257 = arith.mulf %244, %244 : vector<8x8xf32>
    %cst_141 = arith.constant dense<0.000000e+00> : vector<8xf32>
    %258 = vector.multi_reduction <add>, %257, %cst_141 [1] : vector<8x8xf32> to vector<8xf32>
    %259 = vector.shape_cast %258 : vector<8xf32> to vector<8x1xf32>
    %260 = math.sqrt %259 : vector<8x1xf32>
    %c0_142 = arith.constant 0 : index
    %c0_143 = arith.constant 0 : index
    %c3 = arith.constant 3 : index
    %261 = vector.load %arg9[%c0_142, %c0_143, %c3] : memref<1x8x4xf32, #tpu.memory_space<vmem>>, vector<1x8x1xf32>
    %262 = vector.shape_cast %261 : vector<1x8x1xf32> to vector<8x1xf32>
    %263 = vector.shape_cast %260 : vector<8x1xf32> to vector<1x8x1xf32>
    tpu.vector_store %arg9[%c0_142, %c0_143, %c3], %263 {strides = array<i32>} : memref<1x8x4xf32, #tpu.memory_space<vmem>>, vector<1x8x1xf32>,
    %264 = arith.mulf %256, %256 : vector<8x8xf32>
    %cst_144 = arith.constant dense<0.000000e+00> : vector<8xf32>
    %265 = vector.multi_reduction <add>, %264, %cst_144 [1] : vector<8x8xf32> to vector<8xf32>
    %266 = vector.shape_cast %265 : vector<8xf32> to vector<8x1xf32>
    %267 = math.sqrt %266 : vector<8x1xf32>
    %c0_145 = arith.constant 0 : index
    %c0_146 = arith.constant 0 : index
    %c3_147 = arith.constant 3 : index
    %268 = vector.load %arg10[%c0_145, %c0_146, %c3_147] : memref<1x8x4xf32, #tpu.memory_space<vmem>>, vector<1x8x1xf32>
    %269 = vector.shape_cast %268 : vector<1x8x1xf32> to vector<8x1xf32>
    %270 = vector.shape_cast %267 : vector<8x1xf32> to vector<1x8x1xf32>
    tpu.vector_store %arg10[%c0_145, %c0_146, %c3_147], %270 {strides = array<i32>} : memref<1x8x4xf32, #tpu.memory_space<vmem>>, vector<1x8x1xf32>,
    %cst_148 = arith.constant 0.353553385 : f32
    %271 = vector.broadcast %cst_148 : f32 to vector<8x8xf32>
    %272 = arith.mulf %244, %271 : vector<8x8xf32>
    %273 = arith.truncf %272 : vector<8x8xf32> to vector<8x8xbf16>
    %274 = arith.truncf %256 : vector<8x8xf32> to vector<8x8xbf16>
    %c0_149 = arith.constant 0 : index
    %c0_150 = arith.constant 0 : index
    %c0_151 = arith.constant 0 : index
    %c24_152 = arith.constant 24 : index
    %275 = vector.load %arg5[%c0_149, %c0_150, %c0_151, %c24_152] : memref<1x1x8x32xbf16, #tpu.memory_space<vmem>>, vector<1x1x8x8xbf16>
    %276 = vector.shape_cast %275 : vector<1x1x8x8xbf16> to vector<8x8xbf16>
    %cst_153 = arith.constant dense<0.000000e+00> : vector<8x8xf32>
    %277 = tpu.matmul %273, %274, %cst_153 {dimension_numbers = #tpu.dot_dimension_numbers<[1], [1], [0], [0], [0, 0, 1, 0], [], []>} : vector<8x8xbf16>, vector<8x8xbf16>, vector<8x8xf32> -> vector<8x8xf32>
    %c0_154 = arith.constant 0 : index
    %c3_155 = arith.constant 3 : index
    %278 = vector.load %arg11[%c0_154, %c3_155] : memref<8x4xf32, #tpu.memory_space<vmem>>, vector<8x1xf32>
    %cst_156 = arith.constant dense<0xFF800000> : vector<8xf32>
    %279 = vector.multi_reduction <maximumf>, %277, %cst_156 [1] : vector<8x8xf32> to vector<8xf32>
    %280 = vector.shape_cast %279 : vector<8xf32> to vector<8x1xf32>
    %281 = arith.maximumf %278, %280 : vector<8x1xf32>
    %282 = arith.subf %278, %281 : vector<8x1xf32>
    %283 = math.exp %282 : vector<8x1xf32>
    %284 = vector.broadcast %281 : vector<8x1xf32> to vector<8x8xf32>
    %285 = arith.subf %277, %284 : vector<8x8xf32>
    %286 = math.exp %285 : vector<8x8xf32>
    %c0_157 = arith.constant 0 : index
    %c3_158 = arith.constant 3 : index
    %287 = vector.load %arg12[%c0_157, %c3_158] : memref<8x4xf32, #tpu.memory_space<vmem>>, vector<8x1xf32>
    %288 = arith.mulf %283, %287 : vector<8x1xf32>
    %cst_159 = arith.constant dense<0.000000e+00> : vector<8xf32>
    %289 = vector.multi_reduction <add>, %286, %cst_159 [1] : vector<8x8xf32> to vector<8xf32>
    %290 = vector.shape_cast %289 : vector<8xf32> to vector<8x1xf32>
    %291 = arith.addf %288, %290 : vector<8x1xf32>
    %c0_160 = arith.constant 0 : index
    %c3_161 = arith.constant 3 : index
    %292 = vector.load %arg12[%c0_160, %c3_161] : memref<8x4xf32, #tpu.memory_space<vmem>>, vector<8x1xf32>
    tpu.vector_store %arg12[%c0_160, %c3_161], %291 {strides = array<i32>} : memref<8x4xf32, #tpu.memory_space<vmem>>, vector<8x1xf32>,
    %c0_162 = arith.constant 0 : index
    %c24_163 = arith.constant 24 : index
    %293 = vector.load %arg13[%c0_162, %c24_163] : memref<8x32xf32, #tpu.memory_space<vmem>>, vector<8x8xf32>
    %294 = vector.broadcast %283 : vector<8x1xf32> to vector<8x8xf32>
    %295 = arith.mulf %294, %293 : vector<8x8xf32>
    %296 = arith.truncf %286 : vector<8x8xf32> to vector<8x8xbf16>
    %cst_164 = arith.constant dense<0.000000e+00> : vector<8x8xf32>
    %297 = tpu.matmul %296, %276, %cst_164 {dimension_numbers = #tpu.dot_dimension_numbers<[1], [0], [0], [1], [0, 0, 1, 1], [], []>} : vector<8x8xbf16>, vector<8x8xbf16>, vector<8x8xf32> -> vector<8x8xf32>
    %298 = arith.addf %295, %297 : vector<8x8xf32>
    %c0_165 = arith.constant 0 : index
    %c24_166 = arith.constant 24 : index
    %299 = vector.load %arg13[%c0_165, %c24_166] : memref<8x32xf32, #tpu.memory_space<vmem>>, vector<8x8xf32>
    tpu.vector_store %arg13[%c0_165, %c24_166], %298 {strides = array<i32>} : memref<8x32xf32, #tpu.memory_space<vmem>>, vector<8x8xf32>,
    %c0_167 = arith.constant 0 : index
    %c3_168 = arith.constant 3 : index
    %300 = vector.load %arg11[%c0_167, %c3_168] : memref<8x4xf32, #tpu.memory_space<vmem>>, vector<8x1xf32>
    tpu.vector_store %arg11[%c0_167, %c3_168], %281 {strides = array<i32>} : memref<8x4xf32, #tpu.memory_space<vmem>>, vector<8x1xf32>,
    %c0_i32_169 = arith.constant 0 : i32
    %301 = arith.cmpi eq, %arg2, %c0_i32_169 : i32
    %302 = arith.extui %301 : i1 to i32
    %c0_i32_170 = arith.constant 0 : i32
    %303 = arith.cmpi ne, %302, %c0_i32_170 : i32
    scf.if %303 {
      %c0_171 = arith.constant 0 : index
      %c0_172 = arith.constant 0 : index
      %304 = vector.load %arg12[%c0_171, %c0_172] : memref<8x4xf32, #tpu.memory_space<vmem>>, vector<8x1xf32>
      %305 = tpu.reciprocal %304 {approx = true} : vector<8x1xf32> -> vector<8x1xf32>
      %c0_173 = arith.constant 0 : index
      %c0_174 = arith.constant 0 : index
      %306 = vector.load %arg13[%c0_173, %c0_174] : memref<8x32xf32, #tpu.memory_space<vmem>>, vector<8x8xf32>
      %307 = vector.broadcast %305 : vector<8x1xf32> to vector<8x8xf32>
      %308 = arith.mulf %306, %307 : vector<8x8xf32>
      %309 = arith.truncf %308 : vector<8x8xf32> to vector<8x8xbf16>
      %c0_175 = arith.constant 0 : index
      %c0_176 = arith.constant 0 : index
      %c0_177 = arith.constant 0 : index
      %310 = vector.load %arg8[%c0_175, %c0_176, %c0_177] : memref<1x8x32xbf16, #tpu.memory_space<vmem>>, vector<1x8x8xbf16>
      %311 = vector.shape_cast %310 : vector<1x8x8xbf16> to vector<8x8xbf16>
      %312 = vector.shape_cast %309 : vector<8x8xbf16> to vector<1x8x8xbf16>
      tpu.vector_store %arg8[%c0_175, %c0_176, %c0_177], %312 {strides = array<i32>} : memref<1x8x32xbf16, #tpu.memory_space<vmem>>, vector<1x8x8xbf16>,
      %c0_178 = arith.constant 0 : index
      %c1_179 = arith.constant 1 : index
      %313 = vector.load %arg12[%c0_178, %c1_179] : memref<8x4xf32, #tpu.memory_space<vmem>>, vector<8x1xf32>
      %314 = tpu.reciprocal %313 {approx = true} : vector<8x1xf32> -> vector<8x1xf32>
      %c0_180 = arith.constant 0 : index
      %c8_181 = arith.constant 8 : index
      %315 = vector.load %arg13[%c0_180, %c8_181] : memref<8x32xf32, #tpu.memory_space<vmem>>, vector<8x8xf32>
      %316 = vector.broadcast %314 : vector<8x1xf32> to vector<8x8xf32>
      %317 = arith.mulf %315, %316 : vector<8x8xf32>
      %318 = arith.truncf %317 : vector<8x8xf32> to vector<8x8xbf16>
      %c0_182 = arith.constant 0 : index
      %c0_183 = arith.constant 0 : index
      %c8_184 = arith.constant 8 : index
      %319 = vector.load %arg8[%c0_182, %c0_183, %c8_184] : memref<1x8x32xbf16, #tpu.memory_space<vmem>>, vector<1x8x8xbf16>
      %320 = vector.shape_cast %319 : vector<1x8x8xbf16> to vector<8x8xbf16>
      %321 = vector.shape_cast %318 : vector<8x8xbf16> to vector<1x8x8xbf16>
      tpu.vector_store %arg8[%c0_182, %c0_183, %c8_184], %321 {strides = array<i32>} : memref<1x8x32xbf16, #tpu.memory_space<vmem>>, vector<1x8x8xbf16>,
      %c0_185 = arith.constant 0 : index
      %c2_186 = arith.constant 2 : index
      %322 = vector.load %arg12[%c0_185, %c2_186] : memref<8x4xf32, #tpu.memory_space<vmem>>, vector<8x1xf32>
      %323 = tpu.reciprocal %322 {approx = true} : vector<8x1xf32> -> vector<8x1xf32>
      %c0_187 = arith.constant 0 : index
      %c16_188 = arith.constant 16 : index
      %324 = vector.load %arg13[%c0_187, %c16_188] : memref<8x32xf32, #tpu.memory_space<vmem>>, vector<8x8xf32>
      %325 = vector.broadcast %323 : vector<8x1xf32> to vector<8x8xf32>
      %326 = arith.mulf %324, %325 : vector<8x8xf32>
      %327 = arith.truncf %326 : vector<8x8xf32> to vector<8x8xbf16>
      %c0_189 = arith.constant 0 : index
      %c0_190 = arith.constant 0 : index
      %c16_191 = arith.constant 16 : index
      %328 = vector.load %arg8[%c0_189, %c0_190, %c16_191] : memref<1x8x32xbf16, #tpu.memory_space<vmem>>, vector<1x8x8xbf16>
      %329 = vector.shape_cast %328 : vector<1x8x8xbf16> to vector<8x8xbf16>
      %330 = vector.shape_cast %327 : vector<8x8xbf16> to vector<1x8x8xbf16>
      tpu.vector_store %arg8[%c0_189, %c0_190, %c16_191], %330 {strides = array<i32>} : memref<1x8x32xbf16, #tpu.memory_space<vmem>>, vector<1x8x8xbf16>,
      %c0_192 = arith.constant 0 : index
      %c3_193 = arith.constant 3 : index
      %331 = vector.load %arg12[%c0_192, %c3_193] : memref<8x4xf32, #tpu.memory_space<vmem>>, vector<8x1xf32>
      %332 = tpu.reciprocal %331 {approx = true} : vector<8x1xf32> -> vector<8x1xf32>
      %c0_194 = arith.constant 0 : index
      %c24_195 = arith.constant 24 : index
      %333 = vector.load %arg13[%c0_194, %c24_195] : memref<8x32xf32, #tpu.memory_space<vmem>>, vector<8x8xf32>
      %334 = vector.broadcast %332 : vector<8x1xf32> to vector<8x8xf32>
      %335 = arith.mulf %333, %334 : vector<8x8xf32>
      %336 = arith.truncf %335 : vector<8x8xf32> to vector<8x8xbf16>
      %c0_196 = arith.constant 0 : index
      %c0_197 = arith.constant 0 : index
      %c24_198 = arith.constant 24 : index
      %337 = vector.load %arg8[%c0_196, %c0_197, %c24_198] : memref<1x8x32xbf16, #tpu.memory_space<vmem>>, vector<1x8x8xbf16>
      %338 = vector.shape_cast %337 : vector<1x8x8xbf16> to vector<8x8xbf16>
      %339 = vector.shape_cast %336 : vector<8x8xbf16> to vector<1x8x8xbf16>
      tpu.vector_store %arg8[%c0_196, %c0_197, %c24_198], %339 {strides = array<i32>} : memref<1x8x32xbf16, #tpu.memory_space<vmem>>, vector<1x8x8xbf16>,
    } else {
    }
    return
  }
  func.func @transform_0(%arg0: i32, %arg1: i32, %arg2: i32) -> (i32, i32, i32, i32) {
    %c0_i32 = arith.constant 0 : i32
    %c0_i32_0 = arith.constant 0 : i32
    %c0_i32_1 = arith.constant 0 : i32
    return %arg0, %c0_i32, %arg1, %c0_i32_0 : i32, i32, i32, i32
  }
  func.func @transform_1(%arg0: i32, %arg1: i32, %arg2: i32) -> (i32, i32, i32, i32) {
    %c1_i32 = arith.constant 1 : i32
    %c0_i32 = arith.constant 0 : i32
    %c0_i32_0 = arith.constant 0 : i32
    return %arg0, %c1_i32, %arg2, %c0_i32 : i32, i32, i32, i32
  }
  func.func @transform_2(%arg0: i32, %arg1: i32, %arg2: i32) -> (i32, i32, i32, i32) {
    %c2_i32 = arith.constant 2 : i32
    %c0_i32 = arith.constant 0 : i32
    %c0_i32_0 = arith.constant 0 : i32
    return %arg0, %c2_i32, %arg2, %c0_i32 : i32, i32, i32, i32
  }
  func.func @transform_3(%arg0: i32, %arg1: i32, %arg2: i32) -> (i32, i32) {
    %c0_i32 = arith.constant 0 : i32
    %c0_i32_0 = arith.constant 0 : i32
    %c0_i32_1 = arith.constant 0 : i32
    return %c0_i32, %c0_i32_0 : i32, i32
  }
  func.func @transform_4(%arg0: i32, %arg1: i32, %arg2: i32) -> (i32, i32) {
    %c0_i32 = arith.constant 0 : i32
    %c0_i32_0 = arith.constant 0 : i32
    %c0_i32_1 = arith.constant 0 : i32
    return %c0_i32, %c0_i32_0 : i32, i32
  }
  func.func @transform_5(%arg0: i32, %arg1: i32, %arg2: i32) -> (i32, i32, i32) {
    %c0_i32 = arith.constant 0 : i32
    %c0_i32_0 = arith.constant 0 : i32
    return %arg0, %arg1, %c0_i32 : i32, i32, i32
  }
  func.func @transform_6(%arg0: i32, %arg1: i32, %arg2: i32) -> (i32, i32, i32) {
    %c0_i32 = arith.constant 0 : i32
    %c0_i32_0 = arith.constant 0 : i32
    return %arg0, %arg1, %c0_i32 : i32, i32, i32
  }
  func.func @transform_7(%arg0: i32, %arg1: i32, %arg2: i32) -> (i32, i32, i32) {
    %c0_i32 = arith.constant 0 : i32
    %c0_i32_0 = arith.constant 0 : i32
    return %arg0, %arg2, %c0_i32 : i32, i32, i32
  }
}

</mosaic_0001>

<llo_original>
// kernel: attention_forward.3
$region0: #{attention_forward.3}
  #allocation0 [shape = 'u32[]', space=smem, size = 0x4, offset = 0x4, fixed_abs, tag = 'smem constant byte address 0x4 - core index']
  #allocation1 [shape = 'u32[144,128]{1,0:T(1,128)}', space=vmem, size = 0x12000, scoped, tag = 'internal scratch']
  %s0 = inlined_call_operand.vmem [shape: bf16[2,8,32], index: 0, kind: input, shape index: {}]
  %s1 = inlined_call_operand.vmem [shape: bf16[3,32,32], index: 1, kind: input, shape index: {}]
  %s2 = inlined_call_operand.vmem [shape: f32[3,1,32], index: 2, kind: input, shape index: {}]
  %s3 = inlined_call_operand.vmem [shape: bf16[2,3,8,32], index: 3, kind: output, shape index: {}]
  %s4 = sld [smem:[#allocation0]]
  $region45: #{attention_forward.3} parent=0
    _
  %s6 = ssub.s32 1, %s4
  %s7 = scalar_select 0, %s6, %s4
  loop: start=0, step=1, limit=8
  $region2: #{attention_forward.3} parent=0 // loop_pre_header
    _
  $region3: #{attention_forward.3} parent=0 // loop_header
    %s9 = sphi 0, %s13
    %p10 = scmp.ge.s32.totalorder %s9, 8
    %s16 = sphi 0, %s42
    %s17 = sphi 0, %s38
    %s18 = sphi 0, %s34
    %s19 = sphi 0, %s30
    %s20 = sphi 0, %s16
    %s21 = sphi 0, %s17
    %s22 = sphi 0, %s18
    %s23 = sphi 0, %s19
    %s24 = sphi 0, %s20
    %s25 = sphi 0, %s21
    %s26 = sphi 0, %s22
    %s27 = sphi 0, %s23
    %s47 = sphi 0, %s49
    %s50 = sphi 0, %s47
    %s51 = sphi 0, %s50
    %s67 = sphi 0, %s51
    %s75 = sphi 0, %s77
    %s78 = sphi 0, %s75
    %s79 = sphi 0, %s78
    %s95 = sphi 0, %s79
    %s103 = sphi 0, %s105
    %s106 = sphi 0, %s103
    %s107 = sphi 0, %s106
    %s123 = sphi 0, %s107
    %s135 = sphi 0, %s137
    %s138 = sphi 0, %s135
    %s139 = sphi 0, %s138
    %s155 = sphi 0, %s139
  $region4: #{attention_forward.3} parent=0 // loop_header_branch
    %12 = sbr.rel (%p10) target = $region8
  $region5: #{attention_forward.3} parent=0 // loop_body
    %s14 = ssub.s32 %s9, 1
    %s15 = ssub.s32 %s9, 2
    %s28 = sadd.s32 1, %s19
    %p29 = scmp.ge.s32.totalorder %s28, 1
    %s30 = scalar_select %p29, 0, %s28
    %s31 = sadd.s32 1, %s18
    %s32 = scalar_select %p29, %s31, %s18
    %p33 = scmp.ge.s32.totalorder %s32, 2
    %s34 = scalar_select %p33, 0, %s32
    %s35 = sadd.s32 1, %s17
    %s36 = scalar_select %p33, %s35, %s17
    %p37 = scmp.ge.s32.totalorder %s36, 1
    %s38 = scalar_select %p37, 0, %s36
    %s39 = sadd.s32 1, %s16
    %s40 = scalar_select %p37, %s39, %s16
    %p41 = scmp.ge.s32.totalorder %s40, 3
    %s42 = scalar_select %p41, 0, %s40
    %s43 = ssub.s32 %s18, %s34
    %s44 = ssub.s32 %s19, %s30
    %s45 = sor.u32 %s43, %s44
    %p46 = scmp.eq.s32.totalorder %s45, 0
    %s48 = sadd.s32 %s47, 1
    %s49 = scalar_select %p46, %s47, %s48
    %p52 = pneg %p46
    %p53 = scmp.eq.s32.totalorder %s9, 5
    %p54 = por %p52, %p53
    %p55 = scmp.ne.s32.totalorder %s47, %s50
    %p56 = scmp.eq.s32.totalorder %s9, 0
    %p57 = por %p55, %p56
    %p58 = scmp.ne.s32.totalorder %s47, %s50
    %p59 = scmp.eq.s32.totalorder %s14, 5
    %p60 = por %p58, %p59
    %p61 = scmp.ne.s32.totalorder %s50, %s51
    %p62 = scmp.eq.s32.totalorder %s14, 0
    %p63 = por %p61, %p62
    %p64 = scmp.ne.s32.totalorder %s50, %s51
    %p65 = scmp.eq.s32.totalorder %s15, 5
    %p66 = por %p64, %p65
    %p68 = scmp.ne.s32.totalorder %s51, %s67
    %p69 = scmp.eq.s32.totalorder %s15, 0
    %p70 = por %p68, %p69
    %s71 = ssub.s32 %s16, %s42
    %s72 = ssub.s32 %s17, %s38
    %s73 = sor.u32 %s71, %s72
    %p74 = scmp.eq.s32.totalorder %s73, 0
    %s76 = sadd.s32 %s75, 1
    %s77 = scalar_select %p74, %s75, %s76
    %p80 = pneg %p74
    %p81 = scmp.eq.s32.totalorder %s9, 5
    %p82 = por %p80, %p81
    %p83 = scmp.ne.s32.totalorder %s75, %s78
    %p84 = scmp.eq.s32.totalorder %s9, 0
    %p85 = por %p83, %p84
    %p86 = scmp.ne.s32.totalorder %s75, %s78
    %p87 = scmp.eq.s32.totalorder %s14, 5
    %p88 = por %p86, %p87
    %p89 = scmp.ne.s32.totalorder %s78, %s79
    %p90 = scmp.eq.s32.totalorder %s14, 0
    %p91 = por %p89, %p90
    %p92 = scmp.ne.s32.totalorder %s78, %s79
    %p93 = scmp.eq.s32.totalorder %s15, 5
    %p94 = por %p92, %p93
    %p96 = scmp.ne.s32.totalorder %s79, %s95
    %p97 = scmp.eq.s32.totalorder %s15, 0
    %p98 = por %p96, %p97
    %s99 = ssub.s32 %s16, %s42
    %s100 = ssub.s32 %s17, %s38
    %s101 = sor.u32 %s99, %s100
    %p102 = scmp.eq.s32.totalorder %s101, 0
    %s104 = sadd.s32 %s103, 1
    %s105 = scalar_select %p102, %s103, %s104
    %p108 = pneg %p102
    %p109 = scmp.eq.s32.totalorder %s9, 5
    %p110 = por %p108, %p109
    %p111 = scmp.ne.s32.totalorder %s103, %s106
    %p112 = scmp.eq.s32.totalorder %s9, 0
    %p113 = por %p111, %p112
    %p114 = scmp.ne.s32.totalorder %s103, %s106
    %p115 = scmp.eq.s32.totalorder %s14, 5
    %p116 = por %p114, %p115
    %p117 = scmp.ne.s32.totalorder %s106, %s107
    %p118 = scmp.eq.s32.totalorder %s14, 0
    %p119 = por %p117, %p118
    %p120 = scmp.ne.s32.totalorder %s106, %s107
    %p121 = scmp.eq.s32.totalorder %s15, 5
    %p122 = por %p120, %p121
    %p124 = scmp.ne.s32.totalorder %s107, %s123
    %p125 = scmp.eq.s32.totalorder %s15, 0
    %p126 = por %p124, %p125
    %s127 = ssub.s32 %s18, %s34
    %s128 = ssub.s32 %s16, %s42
    %s129 = sor.u32 %s127, %s128
    %s130 = ssub.s32 %s19, %s30
    %s131 = sor.u32 %s129, %s130
    %s132 = ssub.s32 %s17, %s38
    %s133 = sor.u32 %s131, %s132
    %p134 = scmp.eq.s32.totalorder %s133, 0
    %s136 = sadd.s32 %s135, 1
    %s137 = scalar_select %p134, %s135, %s136
    %p140 = pneg %p134
    %p141 = scmp.eq.s32.totalorder %s9, 5
    %p142 = por %p140, %p141
    %p143 = scmp.ne.s32.totalorder %s135, %s138
    %p144 = scmp.eq.s32.totalorder %s9, 0
    %p145 = por %p143, %p144
    %p146 = scmp.ne.s32.totalorder %s135, %s138
    %p147 = scmp.eq.s32.totalorder %s14, 5
    %p148 = por %p146, %p147
    %p149 = scmp.ne.s32.totalorder %s138, %s139
    %p150 = scmp.eq.s32.totalorder %s14, 0
    %p151 = por %p149, %p150
    %p152 = scmp.ne.s32.totalorder %s138, %s139
    %p153 = scmp.eq.s32.totalorder %s15, 5
    %p154 = por %p152, %p153
    %p156 = scmp.ne.s32.totalorder %s139, %s155
    %p157 = scmp.eq.s32.totalorder %s15, 0
    %p158 = por %p156, %p157
    %p159 = scmp.le.s32.totalorder 1, %s9
    %p160 = scmp.lt.s32.totalorder %s9, 7
    %p161 = pnand %p159, %p160
    %p162 = pneg %p161
    // Predicated region
    $region9: #{attention_forward.3} parent=5 // pred_check
      _
    $region10: #{attention_forward.3} parent=5 // pred_check_branch
      %164 = sbr.rel (%p161) target = $region12
    $region11: #{attention_forward.3} parent=5 // pred_region
      %s165 = ssub.s32 %s9, 1
    $region12: #{attention_forward.3} parent=5 // pred_fallthru
      _
    %p166 = scmp.lt.s32.totalorder %s9, 6
    // Predicated region
    $region13: #{attention_forward.3} parent=5 // pred_check
      %p167 = pneg %p166
    $region14: #{attention_forward.3} parent=5 // pred_check_branch
      %169 = sbr.rel (%p167) target = $region16
    $region15: #{attention_forward.3} parent=5 // pred_region
      // Predicated region
      $region17: #{attention_forward.3} parent=15 // pred_check
        %p170 = pneg %p57
      $region18: #{attention_forward.3} parent=15 // pred_check_branch
        %172 = sbr.rel (%p170) target = $region20
      $region19: #{attention_forward.3} parent=15 // pred_region
        %p173 = scmp.lt.s32.totalorder %s18, 1
        %s174 = scalar_select %p173, %s18, 1
        %p175 = scmp.lt.s32.totalorder %s19, 0
        %s176 = scalar_select %p175, %s19, 0
        %s177 = sadd.s32 %s176, %s174
        %s178 = smul.addr %s177, 4
        %s179 = scalar_lea.vmem %s0, %s178
      $region20: #{attention_forward.3} parent=15 // pred_fallthru
        _
      // Predicated region
      $region21: #{attention_forward.3} parent=15 // pred_check
        %p180 = pneg %p85
      $region22: #{attention_forward.3} parent=15 // pred_check_branch
        %182 = sbr.rel (%p180) target = $region24
      $region23: #{attention_forward.3} parent=15 // pred_region
        %p183 = scmp.lt.s32.totalorder %s16, 2
        %s184 = scalar_select %p183, %s16, 2
        %p185 = scmp.lt.s32.totalorder %s17, 0
        %s186 = scalar_select %p185, %s17, 0
        %s187 = smul.addr %s184, 4
        %s188 = sadd.s32 %s186, %s187
        %s189 = smul.addr %s188, 4
        %s190 = scalar_lea.vmem %s1, %s189
      $region24: #{attention_forward.3} parent=15 // pred_fallthru
        _
      // Predicated region
      $region25: #{attention_forward.3} parent=15 // pred_check
        %p191 = pneg %p113
      $region26: #{attention_forward.3} parent=15 // pred_check_branch
        %193 = sbr.rel (%p191) target = $region28
      $region27: #{attention_forward.3} parent=15 // pred_region
        %p194 = scmp.lt.s32.totalorder %s16, 2
        %s195 = scalar_select %p194, %s16, 2
        %p196 = scmp.lt.s32.totalorder %s17, 0
        %s197 = scalar_select %p196, %s17, 0
        %s198 = sadd.s32 %s197, %s195
        %s199 = scalar_lea.vmem %s2, %s198
      $region28: #{attention_forward.3} parent=15 // pred_fallthru
        _
    $region16: #{attention_forward.3} parent=5 // pred_fallthru
      _
    %p200 = scmp.le.s32.totalorder 1, %s9
    %p201 = scmp.lt.s32.totalorder %s9, 7
    %p202 = pnand %p200, %p201
    %p203 = pneg %p202
    // Predicated region
    $region29: #{attention_forward.3} parent=5 // pred_check
      _
    $region30: #{attention_forward.3} parent=5 // pred_check_branch
      %205 = sbr.rel (%p202) target = $region32
    $region31: #{attention_forward.3} parent=5 // pred_region
      %s206 = ssub.s32 %s9, 1
      %p207 = scmp.lt.s32.totalorder %s22, 1
      %s208 = scalar_select %p207, %s22, 1
      %p209 = scmp.lt.s32.totalorder %s23, 0
      %s210 = scalar_select %p209, %s23, 0
      %s211 = sadd.s32 %s210, %s208
      %s212 = smul.addr %s211, 4
      %s213 = scalar_lea.vmem %s0, %s212
      %p214 = pneg %p63
      %p215 = pneg %p60
      %p216 = scmp.lt.s32.totalorder %s20, 2
      %s217 = scalar_select %p216, %s20, 2
      %p218 = scmp.lt.s32.totalorder %s21, 0
      %s219 = scalar_select %p218, %s21, 0
      %s220 = smul.addr %s217, 4
      %s221 = sadd.s32 %s219, %s220
      %s222 = smul.addr %s221, 4
      %s223 = scalar_lea.vmem %s1, %s222
      %p224 = pneg %p91
      %p225 = pneg %p88
      %p226 = scmp.lt.s32.totalorder %s20, 2
      %s227 = scalar_select %p226, %s20, 2
      %p228 = scmp.lt.s32.totalorder %s21, 0
      %s229 = scalar_select %p228, %s21, 0
      %s230 = sadd.s32 %s229, %s227
      %s231 = scalar_lea.vmem %s2, %s230
      %p232 = pneg %p119
      %p233 = pneg %p116
      %p234 = pneg %p151
      %p235 = pneg %p148
      %p236 = scmp.lt.s32.totalorder %s22, 1
      %s237 = scalar_select %p236, %s22, 1
      %p238 = scmp.lt.s32.totalorder %s20, 2
      %s239 = scalar_select %p238, %s20, 2
      %p240 = scmp.lt.s32.totalorder %s23, 0
      %s241 = scalar_select %p240, %s23, 0
      %p242 = scmp.lt.s32.totalorder %s21, 0
      %s243 = scalar_select %p242, %s21, 0
      %s244 = sadd.s32 %s243, %s241
      %s245 = sadd.s32 %s244, %s239
      %s246 = smul.addr %s237, 3
      %s247 = sadd.s32 %s245, %s246
      %s248 = smul.addr %s247, 4
      %s249 = scalar_lea.vmem %s3, %s248
      %p250 = scmp.lt.s32.totalorder %s22, 1
      %s251 = scalar_select %p250, %s22, 1
      %p252 = scmp.lt.s32.totalorder %s23, 0
      %s253 = scalar_select %p252, %s23, 0
      %s254 = sadd.s32 %s253, %s251
      %s255 = smul.addr %s254, 4
      %s256 = scalar_lea.vmem %s0, %s255
      %p257 = scmp.lt.s32.totalorder %s20, 2
      %s258 = scalar_select %p257, %s20, 2
      %p259 = scmp.lt.s32.totalorder %s21, 0
      %s260 = scalar_select %p259, %s21, 0
      %s261 = smul.addr %s258, 4
      %s262 = sadd.s32 %s260, %s261
      %s263 = smul.addr %s262, 4
      %s264 = scalar_lea.vmem %s1, %s263
      %p265 = scmp.lt.s32.totalorder %s20, 2
      %s266 = scalar_select %p265, %s20, 2
      %p267 = scmp.lt.s32.totalorder %s21, 0
      %s268 = scalar_select %p267, %s21, 0
      %s269 = sadd.s32 %s268, %s266
      %s270 = scalar_lea.vmem %s2, %s269
      %p271 = scmp.lt.s32.totalorder %s22, 1
      %s272 = scalar_select %p271, %s22, 1
      %p273 = scmp.lt.s32.totalorder %s20, 2
      %s274 = scalar_select %p273, %s20, 2
      %p275 = scmp.lt.s32.totalorder %s23, 0
      %s276 = scalar_select %p275, %s23, 0
      %p277 = scmp.lt.s32.totalorder %s21, 0
      %s278 = scalar_select %p277, %s21, 0
      %s279 = sadd.s32 %s278, %s276
      %s280 = sadd.s32 %s279, %s274
      %s281 = smul.addr %s272, 3
      %s282 = sadd.s32 %s280, %s281
      %s283 = smul.addr %s282, 4
      %s284 = scalar_lea.vmem %s3, %s283
      %v286 = vld [vmem:[%s256] sm:$0xf]
      %v287 = vld [vmem:[%s264] sm:$0xf]
      %v288 = vld [vmem:[%s264 + $0x4] sm:$0xf]
      %v289 = vld [vmem:[%s264 + $0x8] sm:$0xf]
      %v290 = vld [vmem:[%s264 + $0xc] sm:$0xf]
      %v291 = vld [vmem:[%s270] sm:$0x1]
      %v293 = vlaneseq
      %v294 = vshrl.u32 %v293, 7
      %v295 = vsub.s32 0, %v294
      %v296 = vrot.slane %v291, %v295
      %v302 = vunpack.c.l.b16 %v287
      %v303 = vunpack.c.l.b16 %v288
      %v304 = vunpack.c.l.b16 %v289
      %v305 = vunpack.c.l.b16 %v290
      %v306 = vpack.c.b16 %v303, %v302
      %v307 = vpack.c.b16 %v305, %v304
      %vm310 = vcmask 261120
      %v312 = vsel %vm310, %v286, 0
      %314 = vmatprep.subr.bf16.mxu0 0
      %315 = vmatpush1.bf16.msra.mxu0 0
      %316 = vmatprep.subr.bf16.mxu0 0
      %317 = vmatpush1.bf16.msra.mxu0 0
      %318 = vmatprep.subr.bf16.mxu0 0
      %319 = vmatpush1.bf16.msra.mxu0 0
      %320 = vmatprep.subr.bf16.mxu0 0
      %321 = vmatpush1.bf16.msra.mxu0 0
      %322 = vmatprep.subr.bf16.mxu0 0
      %323 = vmatpush1.bf16.msra.mxu0 0
      %324 = vmatprep.subr.bf16.mxu0 0
      %325 = vmatpush1.bf16.msra.mxu0 0
      %326 = vmatprep.subr.bf16.mxu0 0
      %327 = vmatpush1.bf16.msra.mxu0 %v307
      %328 = vmatprep.subr.bf16.mxu0 0
      %329 = vmatpush1.bf16.msra.mxu0 %v306
      %330 = vmatprep.subr.bf16.mxu0 0
      %331 = vmatpush2.bf16.msra.mxu0 0
      %332 = vmatprep.subr.bf16.mxu0 0
      %333 = vmatpush2.bf16.msra.mxu0 0
      %334 = vmatprep.subr.bf16.mxu0 0
      %335 = vmatpush2.bf16.msra.mxu0 0
      %336 = vmatprep.subr.bf16.mxu0 0
      %337 = vmatpush2.bf16.msra.mxu0 0
      %338 = vmatprep.subr.bf16.mxu0 0
      %339 = vmatpush2.bf16.msra.mxu0 0
      %340 = vmatprep.subr.bf16.mxu0 0
      %341 = vmatpush2.bf16.msra.mxu0 0
      %342 = vmatprep.subr.bf16.mxu0 0
      %343 = vmatpush2.bf16.msra.mxu0 0
      %344 = vmatprep.subr.bf16.mxu0 0
      %345 = vmatpush2.bf16.msra.mxu0 0
      %346 = vmatprep.mubr.bf16.mxu0 0
      %347 = vmatmul.mubr.bf16.gmra.mxu0 %v312
      %v348 = vpop.f32.mrf.mxu0
      %v349 = vadd.f32 %v296, %v348
      %v350 = vpop.f32.mrf.mxu0
      %v351 = vpop.f32.mrf.mxu0
      %v352 = vpop.f32.mrf.mxu0
      %353 = vdwg.mxu0
      %v354 = vpack.c.bf16 %v349, %v349
      %vm355 = vcmask 257024
      %356 = vst.msk [vmem:[%s284] sm:$0xf] %vm355, %v354
      %p357 = scmp.lt.s32.totalorder %s22, 1
      %s358 = scalar_select %p357, %s22, 1
      %p359 = scmp.lt.s32.totalorder %s20, 2
      %s360 = scalar_select %p359, %s20, 2
      %p361 = scmp.lt.s32.totalorder %s23, 0
      %s362 = scalar_select %p361, %s23, 0
      %p363 = scmp.lt.s32.totalorder %s21, 0
      %s364 = scalar_select %p363, %s21, 0
      %s365 = sadd.s32 %s364, %s362
      %s366 = sadd.s32 %s365, %s360
      %s367 = smul.addr %s358, 3
      %s368 = sadd.s32 %s366, %s367
      %s369 = smul.addr %s368, 4
      %s370 = scalar_lea.vmem %s3, %s369
      // Predicated region
      $region33: #{attention_forward.3} parent=31 // pred_check
        %p371 = pneg %p148
      $region34: #{attention_forward.3} parent=31 // pred_check_branch
        %373 = sbr.rel (%p371) target = $region36
      $region35: #{attention_forward.3} parent=31 // pred_region
        _
      $region36: #{attention_forward.3} parent=31 // pred_fallthru
        _
    $region32: #{attention_forward.3} parent=5 // pred_fallthru
      _
    %p374 = scmp.le.s32.totalorder 2, %s9
    // Predicated region
    $region37: #{attention_forward.3} parent=5 // pred_check
      %p375 = pneg %p374
    $region38: #{attention_forward.3} parent=5 // pred_check_branch
      %377 = sbr.rel (%p375) target = $region40
    $region39: #{attention_forward.3} parent=5 // pred_region
      %s378 = ssub.s32 %s9, 2
      // Predicated region
      $region41: #{attention_forward.3} parent=39 // pred_check
        %p379 = pneg %p154
      $region42: #{attention_forward.3} parent=39 // pred_check_branch
        %381 = sbr.rel (%p379) target = $region44
      $region43: #{attention_forward.3} parent=39 // pred_region
        %p382 = scmp.lt.s32.totalorder %s26, 1
        %s383 = scalar_select %p382, %s26, 1
        %p384 = scmp.lt.s32.totalorder %s24, 2
        %s385 = scalar_select %p384, %s24, 2
        %p386 = scmp.lt.s32.totalorder %s27, 0
        %s387 = scalar_select %p386, %s27, 0
        %p388 = scmp.lt.s32.totalorder %s25, 0
        %s389 = scalar_select %p388, %s25, 0
        %s390 = sadd.s32 %s389, %s387
        %s391 = sadd.s32 %s390, %s385
        %s392 = smul.addr %s383, 3
        %s393 = sadd.s32 %s391, %s392
        %s394 = smul.addr %s393, 4
        %s395 = scalar_lea.vmem %s3, %s394
      $region44: #{attention_forward.3} parent=39 // pred_fallthru
        _
    $region40: #{attention_forward.3} parent=5 // pred_fallthru
      _
  $region6: #{attention_forward.3} parent=0 // loop_footer
    %s13 = sadd.s32 1, %s9
  $region7: #{attention_forward.3} parent=0 // loop_footer_branch
    %8 = sbr.rel target = $region3
  $region8: #{attention_forward.3} parent=0 // loop_exit
    _

// kernel: attention_forward.5
$region0: #{attention_forward.5}
  #allocation0 [shape = 'u32[]', space=smem, size = 0x4, offset = 0x4, fixed_abs, tag = 'smem constant byte address 0x4 - core index']
  #allocation1 [shape = 'u32[144,128]{1,0:T(1,128)}', space=vmem, size = 0x12000, scoped, tag = 'internal scratch']
  %s0 = inlined_call_operand.vmem [shape: bf16[2,8,32], index: 0, kind: input, shape index: {}]
  %s1 = inlined_call_operand.vmem [shape: bf16[1,32,32], index: 1, kind: input, shape index: {}]
  %s2 = inlined_call_operand.vmem [shape: f32[1,1,32], index: 2, kind: input, shape index: {}]
  %s3 = inlined_call_operand.vmem [shape: f32[2,1,8,32], index: 3, kind: output, shape index: {}]
  %s4 = sld [smem:[#allocation0]]
  $region45: #{attention_forward.5} parent=0
    _
  %s6 = ssub.s32 1, %s4
  %s7 = scalar_select 0, %s6, %s4
  loop: start=0, step=1, limit=4
  $region2: #{attention_forward.5} parent=0 // loop_pre_header
    _
  $region3: #{attention_forward.5} parent=0 // loop_header
    %s9 = sphi 0, %s13
    %p10 = scmp.ge.s32.totalorder %s9, 4
    %s16 = sphi 0, %s42
    %s17 = sphi 0, %s38
    %s18 = sphi 0, %s34
    %s19 = sphi 0, %s30
    %s20 = sphi 0, %s16
    %s21 = sphi 0, %s17
    %s22 = sphi 0, %s18
    %s23 = sphi 0, %s19
    %s24 = sphi 0, %s20
    %s25 = sphi 0, %s21
    %s26 = sphi 0, %s22
    %s27 = sphi 0, %s23
    %s47 = sphi 0, %s49
    %s50 = sphi 0, %s47
    %s51 = sphi 0, %s50
    %s67 = sphi 0, %s51
    %s75 = sphi 0, %s77
    %s78 = sphi 0, %s75
    %s79 = sphi 0, %s78
    %s95 = sphi 0, %s79
    %s103 = sphi 0, %s105
    %s106 = sphi 0, %s103
    %s107 = sphi 0, %s106
    %s123 = sphi 0, %s107
    %s135 = sphi 0, %s137
    %s138 = sphi 0, %s135
    %s139 = sphi 0, %s138
    %s155 = sphi 0, %s139
  $region4: #{attention_forward.5} parent=0 // loop_header_branch
    %12 = sbr.rel (%p10) target = $region8
  $region5: #{attention_forward.5} parent=0 // loop_body
    %s14 = ssub.s32 %s9, 1
    %s15 = ssub.s32 %s9, 2
    %s28 = sadd.s32 1, %s19
    %p29 = scmp.ge.s32.totalorder %s28, 1
    %s30 = scalar_select %p29, 0, %s28
    %s31 = sadd.s32 1, %s18
    %s32 = scalar_select %p29, %s31, %s18
    %p33 = scmp.ge.s32.totalorder %s32, 2
    %s34 = scalar_select %p33, 0, %s32
    %s35 = sadd.s32 1, %s17
    %s36 = scalar_select %p33, %s35, %s17
    %p37 = scmp.ge.s32.totalorder %s36, 1
    %s38 = scalar_select %p37, 0, %s36
    %s39 = sadd.s32 1, %s16
    %s40 = scalar_select %p37, %s39, %s16
    %p41 = scmp.ge.s32.totalorder %s40, 1
    %s42 = scalar_select %p41, 0, %s40
    %s43 = ssub.s32 %s18, %s34
    %s44 = ssub.s32 %s19, %s30
    %s45 = sor.u32 %s43, %s44
    %p46 = scmp.eq.s32.totalorder %s45, 0
    %s48 = sadd.s32 %s47, 1
    %s49 = scalar_select %p46, %s47, %s48
    %p52 = pneg %p46
    %p53 = scmp.eq.s32.totalorder %s9, 1
    %p54 = por %p52, %p53
    %p55 = scmp.ne.s32.totalorder %s47, %s50
    %p56 = scmp.eq.s32.totalorder %s9, 0
    %p57 = por %p55, %p56
    %p58 = scmp.ne.s32.totalorder %s47, %s50
    %p59 = scmp.eq.s32.totalorder %s14, 1
    %p60 = por %p58, %p59
    %p61 = scmp.ne.s32.totalorder %s50, %s51
    %p62 = scmp.eq.s32.totalorder %s14, 0
    %p63 = por %p61, %p62
    %p64 = scmp.ne.s32.totalorder %s50, %s51
    %p65 = scmp.eq.s32.totalorder %s15, 1
    %p66 = por %p64, %p65
    %p68 = scmp.ne.s32.totalorder %s51, %s67
    %p69 = scmp.eq.s32.totalorder %s15, 0
    %p70 = por %p68, %p69
    %s71 = ssub.s32 %s16, %s42
    %s72 = ssub.s32 %s17, %s38
    %s73 = sor.u32 %s71, %s72
    %p74 = scmp.eq.s32.totalorder %s73, 0
    %s76 = sadd.s32 %s75, 1
    %s77 = scalar_select %p74, %s75, %s76
    %p80 = pneg %p74
    %p81 = scmp.eq.s32.totalorder %s9, 1
    %p82 = por %p80, %p81
    %p83 = scmp.ne.s32.totalorder %s75, %s78
    %p84 = scmp.eq.s32.totalorder %s9, 0
    %p85 = por %p83, %p84
    %p86 = scmp.ne.s32.totalorder %s75, %s78
    %p87 = scmp.eq.s32.totalorder %s14, 1
    %p88 = por %p86, %p87
    %p89 = scmp.ne.s32.totalorder %s78, %s79
    %p90 = scmp.eq.s32.totalorder %s14, 0
    %p91 = por %p89, %p90
    %p92 = scmp.ne.s32.totalorder %s78, %s79
    %p93 = scmp.eq.s32.totalorder %s15, 1
    %p94 = por %p92, %p93
    %p96 = scmp.ne.s32.totalorder %s79, %s95
    %p97 = scmp.eq.s32.totalorder %s15, 0
    %p98 = por %p96, %p97
    %s99 = ssub.s32 %s16, %s42
    %s100 = ssub.s32 %s17, %s38
    %s101 = sor.u32 %s99, %s100
    %p102 = scmp.eq.s32.totalorder %s101, 0
    %s104 = sadd.s32 %s103, 1
    %s105 = scalar_select %p102, %s103, %s104
    %p108 = pneg %p102
    %p109 = scmp.eq.s32.totalorder %s9, 1
    %p110 = por %p108, %p109
    %p111 = scmp.ne.s32.totalorder %s103, %s106
    %p112 = scmp.eq.s32.totalorder %s9, 0
    %p113 = por %p111, %p112
    %p114 = scmp.ne.s32.totalorder %s103, %s106
    %p115 = scmp.eq.s32.totalorder %s14, 1
    %p116 = por %p114, %p115
    %p117 = scmp.ne.s32.totalorder %s106, %s107
    %p118 = scmp.eq.s32.totalorder %s14, 0
    %p119 = por %p117, %p118
    %p120 = scmp.ne.s32.totalorder %s106, %s107
    %p121 = scmp.eq.s32.totalorder %s15, 1
    %p122 = por %p120, %p121
    %p124 = scmp.ne.s32.totalorder %s107, %s123
    %p125 = scmp.eq.s32.totalorder %s15, 0
    %p126 = por %p124, %p125
    %s127 = ssub.s32 %s18, %s34
    %s128 = ssub.s32 %s16, %s42
    %s129 = sor.u32 %s127, %s128
    %s130 = ssub.s32 %s19, %s30
    %s131 = sor.u32 %s129, %s130
    %s132 = ssub.s32 %s17, %s38
    %s133 = sor.u32 %s131, %s132
    %p134 = scmp.eq.s32.totalorder %s133, 0
    %s136 = sadd.s32 %s135, 1
    %s137 = scalar_select %p134, %s135, %s136
    %p140 = pneg %p134
    %p141 = scmp.eq.s32.totalorder %s9, 1
    %p142 = por %p140, %p141
    %p143 = scmp.ne.s32.totalorder %s135, %s138
    %p144 = scmp.eq.s32.totalorder %s9, 0
    %p145 = por %p143, %p144
    %p146 = scmp.ne.s32.totalorder %s135, %s138
    %p147 = scmp.eq.s32.totalorder %s14, 1
    %p148 = por %p146, %p147
    %p149 = scmp.ne.s32.totalorder %s138, %s139
    %p150 = scmp.eq.s32.totalorder %s14, 0
    %p151 = por %p149, %p150
    %p152 = scmp.ne.s32.totalorder %s138, %s139
    %p153 = scmp.eq.s32.totalorder %s15, 1
    %p154 = por %p152, %p153
    %p156 = scmp.ne.s32.totalorder %s139, %s155
    %p157 = scmp.eq.s32.totalorder %s15, 0
    %p158 = por %p156, %p157
    %p159 = scmp.le.s32.totalorder 1, %s9
    %p160 = scmp.lt.s32.totalorder %s9, 3
    %p161 = pnand %p159, %p160
    %p162 = pneg %p161
    // Predicated region
    $region9: #{attention_forward.5} parent=5 // pred_check
      _
    $region10: #{attention_forward.5} parent=5 // pred_check_branch
      %164 = sbr.rel (%p161) target = $region12
    $region11: #{attention_forward.5} parent=5 // pred_region
      %s165 = ssub.s32 %s9, 1
      // Predicated region
      $region13: #{attention_forward.5} parent=11 // pred_check
        %p166 = pneg %p91
      $region14: #{attention_forward.5} parent=11 // pred_check_branch
        %168 = sbr.rel (%p166) target = $region16
      $region15: #{attention_forward.5} parent=11 // pred_region
        %p169 = scmp.lt.s32.totalorder %s20, 0
        %s170 = scalar_select %p169, %s20, 0
        %p171 = scmp.lt.s32.totalorder %s21, 0
        %s172 = scalar_select %p171, %s21, 0
        %s173 = smul.addr %s170, 4
        %s174 = sadd.s32 %s172, %s173
        %s175 = smul.addr %s174, 4
        %s176 = scalar_lea.vmem %s1, %s175
      $region16: #{attention_forward.5} parent=11 // pred_fallthru
        _
      // Predicated region
      $region17: #{attention_forward.5} parent=11 // pred_check
        %p177 = pneg %p119
      $region18: #{attention_forward.5} parent=11 // pred_check_branch
        %179 = sbr.rel (%p177) target = $region20
      $region19: #{attention_forward.5} parent=11 // pred_region
        %p180 = scmp.lt.s32.totalorder %s20, 0
        %s181 = scalar_select %p180, %s20, 0
        %p182 = scmp.lt.s32.totalorder %s21, 0
        %s183 = scalar_select %p182, %s21, 0
        %s184 = sadd.s32 %s183, %s181
        %s185 = scalar_lea.vmem %s2, %s184
      $region20: #{attention_forward.5} parent=11 // pred_fallthru
        _
    $region12: #{attention_forward.5} parent=5 // pred_fallthru
      _
    %p186 = scmp.lt.s32.totalorder %s9, 2
    // Predicated region
    $region21: #{attention_forward.5} parent=5 // pred_check
      %p187 = pneg %p186
    $region22: #{attention_forward.5} parent=5 // pred_check_branch
      %189 = sbr.rel (%p187) target = $region24
    $region23: #{attention_forward.5} parent=5 // pred_region
      // Predicated region
      $region25: #{attention_forward.5} parent=23 // pred_check
        %p190 = pneg %p57
      $region26: #{attention_forward.5} parent=23 // pred_check_branch
        %192 = sbr.rel (%p190) target = $region28
      $region27: #{attention_forward.5} parent=23 // pred_region
        %p193 = scmp.lt.s32.totalorder %s18, 1
        %s194 = scalar_select %p193, %s18, 1
        %p195 = scmp.lt.s32.totalorder %s19, 0
        %s196 = scalar_select %p195, %s19, 0
        %s197 = sadd.s32 %s196, %s194
        %s198 = smul.addr %s197, 4
        %s199 = scalar_lea.vmem %s0, %s198
      $region28: #{attention_forward.5} parent=23 // pred_fallthru
        _
    $region24: #{attention_forward.5} parent=5 // pred_fallthru
      _
    %p200 = scmp.le.s32.totalorder 1, %s9
    %p201 = scmp.lt.s32.totalorder %s9, 3
    %p202 = pnand %p200, %p201
    %p203 = pneg %p202
    // Predicated region
    $region29: #{attention_forward.5} parent=5 // pred_check
      _
    $region30: #{attention_forward.5} parent=5 // pred_check_branch
      %205 = sbr.rel (%p202) target = $region32
    $region31: #{attention_forward.5} parent=5 // pred_region
      %s206 = ssub.s32 %s9, 1
      %p207 = scmp.lt.s32.totalorder %s22, 1
      %s208 = scalar_select %p207, %s22, 1
      %p209 = scmp.lt.s32.totalorder %s23, 0
      %s210 = scalar_select %p209, %s23, 0
      %s211 = sadd.s32 %s210, %s208
      %s212 = smul.addr %s211, 4
      %s213 = scalar_lea.vmem %s0, %s212
      %p214 = pneg %p63
      %p215 = pneg %p60
      %p216 = scmp.lt.s32.totalorder %s20, 0
      %s217 = scalar_select %p216, %s20, 0
      %p218 = scmp.lt.s32.totalorder %s21, 0
      %s219 = scalar_select %p218, %s21, 0
      %s220 = smul.addr %s217, 4
      %s221 = sadd.s32 %s219, %s220
      %s222 = smul.addr %s221, 4
      %s223 = scalar_lea.vmem %s1, %s222
      %p224 = pneg %p91
      %p225 = pneg %p88
      %p226 = scmp.lt.s32.totalorder %s20, 0
      %s227 = scalar_select %p226, %s20, 0
      %p228 = scmp.lt.s32.totalorder %s21, 0
      %s229 = scalar_select %p228, %s21, 0
      %s230 = sadd.s32 %s229, %s227
      %s231 = scalar_lea.vmem %s2, %s230
      %p232 = pneg %p119
      %p233 = pneg %p116
      %p234 = pneg %p151
      %p235 = pneg %p148
      %p236 = scmp.lt.s32.totalorder %s22, 1
      %s237 = scalar_select %p236, %s22, 1
      %p238 = scmp.lt.s32.totalorder %s20, 0
      %s239 = scalar_select %p238, %s20, 0
      %p240 = scmp.lt.s32.totalorder %s23, 0
      %s241 = scalar_select %p240, %s23, 0
      %p242 = scmp.lt.s32.totalorder %s21, 0
      %s243 = scalar_select %p242, %s21, 0
      %s244 = sadd.s32 %s243, %s241
      %s245 = sadd.s32 %s244, %s239
      %s246 = sadd.s32 %s245, %s237
      %s247 = smul.addr %s246, 8
      %s248 = scalar_lea.vmem %s3, %s247
      %p249 = scmp.lt.s32.totalorder %s22, 1
      %s250 = scalar_select %p249, %s22, 1
      %p251 = scmp.lt.s32.totalorder %s23, 0
      %s252 = scalar_select %p251, %s23, 0
      %s253 = sadd.s32 %s252, %s250
      %s254 = smul.addr %s253, 4
      %s255 = scalar_lea.vmem %s0, %s254
      %p256 = scmp.lt.s32.totalorder %s20, 0
      %s257 = scalar_select %p256, %s20, 0
      %p258 = scmp.lt.s32.totalorder %s21, 0
      %s259 = scalar_select %p258, %s21, 0
      %s260 = smul.addr %s257, 4
      %s261 = sadd.s32 %s259, %s260
      %s262 = smul.addr %s261, 4
      %s263 = scalar_lea.vmem %s1, %s262
      %p264 = scmp.lt.s32.totalorder %s20, 0
      %s265 = scalar_select %p264, %s20, 0
      %p266 = scmp.lt.s32.totalorder %s21, 0
      %s267 = scalar_select %p266, %s21, 0
      %s268 = sadd.s32 %s267, %s265
      %s269 = scalar_lea.vmem %s2, %s268
      %p270 = scmp.lt.s32.totalorder %s22, 1
      %s271 = scalar_select %p270, %s22, 1
      %p272 = scmp.lt.s32.totalorder %s20, 0
      %s273 = scalar_select %p272, %s20, 0
      %p274 = scmp.lt.s32.totalorder %s23, 0
      %s275 = scalar_select %p274, %s23, 0
      %p276 = scmp.lt.s32.totalorder %s21, 0
      %s277 = scalar_select %p276, %s21, 0
      %s278 = sadd.s32 %s277, %s275
      %s279 = sadd.s32 %s278, %s273
      %s280 = sadd.s32 %s279, %s271
      %s281 = smul.addr %s280, 8
      %s282 = scalar_lea.vmem %s3, %s281
      %v284 = vld [vmem:[%s255] sm:$0xf]
      %v285 = vld [vmem:[%s263] sm:$0xf]
      %v286 = vld [vmem:[%s263 + $0x4] sm:$0xf]
      %v287 = vld [vmem:[%s263 + $0x8] sm:$0xf]
      %v288 = vld [vmem:[%s263 + $0xc] sm:$0xf]
      %v289 = vld [vmem:[%s269] sm:$0x1]
      %v291 = vlaneseq
      %v292 = vshrl.u32 %v291, 7
      %v293 = vsub.s32 0, %v292
      %v294 = vrot.slane %v289, %v293
      %v300 = vunpack.c.l.b16 %v285
      %v301 = vunpack.c.l.b16 %v286
      %v302 = vunpack.c.l.b16 %v287
      %v303 = vunpack.c.l.b16 %v288
      %v304 = vpack.c.b16 %v301, %v300
      %v305 = vpack.c.b16 %v303, %v302
      %vm308 = vcmask 261120
      %v310 = vsel %vm308, %v284, 0
      %312 = vmatprep.subr.bf16.mxu0 0
      %313 = vmatpush1.bf16.msra.mxu0 0
      %314 = vmatprep.subr.bf16.mxu0 0
      %315 = vmatpush1.bf16.msra.mxu0 0
      %316 = vmatprep.subr.bf16.mxu0 0
      %317 = vmatpush1.bf16.msra.mxu0 0
      %318 = vmatprep.subr.bf16.mxu0 0
      %319 = vmatpush1.bf16.msra.mxu0 0
      %320 = vmatprep.subr.bf16.mxu0 0
      %321 = vmatpush1.bf16.msra.mxu0 0
      %322 = vmatprep.subr.bf16.mxu0 0
      %323 = vmatpush1.bf16.msra.mxu0 0
      %324 = vmatprep.subr.bf16.mxu0 0
      %325 = vmatpush1.bf16.msra.mxu0 %v305
      %326 = vmatprep.subr.bf16.mxu0 0
      %327 = vmatpush1.bf16.msra.mxu0 %v304
      %328 = vmatprep.subr.bf16.mxu0 0
      %329 = vmatpush2.bf16.msra.mxu0 0
      %330 = vmatprep.subr.bf16.mxu0 0
      %331 = vmatpush2.bf16.msra.mxu0 0
      %332 = vmatprep.subr.bf16.mxu0 0
      %333 = vmatpush2.bf16.msra.mxu0 0
      %334 = vmatprep.subr.bf16.mxu0 0
      %335 = vmatpush2.bf16.msra.mxu0 0
      %336 = vmatprep.subr.bf16.mxu0 0
      %337 = vmatpush2.bf16.msra.mxu0 0
      %338 = vmatprep.subr.bf16.mxu0 0
      %339 = vmatpush2.bf16.msra.mxu0 0
      %340 = vmatprep.subr.bf16.mxu0 0
      %341 = vmatpush2.bf16.msra.mxu0 0
      %342 = vmatprep.subr.bf16.mxu0 0
      %343 = vmatpush2.bf16.msra.mxu0 0
      %344 = vmatprep.mubr.bf16.mxu0 0
      %345 = vmatmul.mubr.bf16.gmra.mxu0 %v310
      %v346 = vpop.f32.mrf.mxu0
      %v347 = vadd.f32 %v294, %v346
      %v348 = vpop.f32.mrf.mxu0
      %v349 = vpop.f32.mrf.mxu0
      %v350 = vpop.f32.mrf.mxu0
      %351 = vdwg.mxu0
      %352 = vst.msk [vmem:[%s282] sm:$0xff] %vm308, %v347
      %p353 = scmp.lt.s32.totalorder %s22, 1
      %s354 = scalar_select %p353, %s22, 1
      %p355 = scmp.lt.s32.totalorder %s20, 0
      %s356 = scalar_select %p355, %s20, 0
      %p357 = scmp.lt.s32.totalorder %s23, 0
      %s358 = scalar_select %p357, %s23, 0
      %p359 = scmp.lt.s32.totalorder %s21, 0
      %s360 = scalar_select %p359, %s21, 0
      %s361 = sadd.s32 %s360, %s358
      %s362 = sadd.s32 %s361, %s356
      %s363 = sadd.s32 %s362, %s354
      %s364 = smul.addr %s363, 8
      %s365 = scalar_lea.vmem %s3, %s364
      // Predicated region
      $region33: #{attention_forward.5} parent=31 // pred_check
        %p366 = pneg %p148
      $region34: #{attention_forward.5} parent=31 // pred_check_branch
        %368 = sbr.rel (%p366) target = $region36
      $region35: #{attention_forward.5} parent=31 // pred_region
        _
      $region36: #{attention_forward.5} parent=31 // pred_fallthru
        _
    $region32: #{attention_forward.5} parent=5 // pred_fallthru
      _
    %p369 = scmp.le.s32.totalorder 2, %s9
    // Predicated region
    $region37: #{attention_forward.5} parent=5 // pred_check
      %p370 = pneg %p369
    $region38: #{attention_forward.5} parent=5 // pred_check_branch
      %372 = sbr.rel (%p370) target = $region40
    $region39: #{attention_forward.5} parent=5 // pred_region
      %s373 = ssub.s32 %s9, 2
      // Predicated region
      $region41: #{attention_forward.5} parent=39 // pred_check
        %p374 = pneg %p154
      $region42: #{attention_forward.5} parent=39 // pred_check_branch
        %376 = sbr.rel (%p374) target = $region44
      $region43: #{attention_forward.5} parent=39 // pred_region
        %p377 = scmp.lt.s32.totalorder %s26, 1
        %s378 = scalar_select %p377, %s26, 1
        %p379 = scmp.lt.s32.totalorder %s24, 0
        %s380 = scalar_select %p379, %s24, 0
        %p381 = scmp.lt.s32.totalorder %s27, 0
        %s382 = scalar_select %p381, %s27, 0
        %p383 = scmp.lt.s32.totalorder %s25, 0
        %s384 = scalar_select %p383, %s25, 0
        %s385 = sadd.s32 %s384, %s382
        %s386 = sadd.s32 %s385, %s380
        %s387 = sadd.s32 %s386, %s378
        %s388 = smul.addr %s387, 8
        %s389 = scalar_lea.vmem %s3, %s388
      $region44: #{attention_forward.5} parent=39 // pred_fallthru
        _
    $region40: #{attention_forward.5} parent=5 // pred_fallthru
      _
  $region6: #{attention_forward.5} parent=0 // loop_footer
    %s13 = sadd.s32 1, %s9
  $region7: #{attention_forward.5} parent=0 // loop_footer_branch
    %8 = sbr.rel target = $region3
  $region8: #{attention_forward.5} parent=0 // loop_exit
    _

// kernel: attention_forward.4
$region0: #{attention_forward.4}
  #allocation0 [shape = 'u32[]', space=smem, size = 0x4, offset = 0x4, fixed_abs, tag = 'smem constant byte address 0x4 - core index']
  #allocation1 [shape = 'u32[144,128]{1,0:T(1,128)}', space=vmem, size = 0x12000, scoped, tag = 'internal scratch']
  #allocation2 [shape = 'f32[8,4]{1,0:T(8,128)}', space=vmem, size = 0x1000, scoped, tag = 'scratch operand']
  #allocation3 [shape = 'f32[8,4]{1,0:T(8,128)}', space=vmem, size = 0x1000, scoped, tag = 'scratch operand']
  #allocation4 [shape = 'f32[8,32]{1,0:T(8,128)}', space=vmem, size = 0x1000, scoped, tag = 'scratch operand']
  %s0 = inlined_call_operand.vmem [shape: bf16[2,3,8,32], index: 0, kind: input, shape index: {}, may-alias: {0,1,2}]
  %s1 = inlined_call_operand.vmem [shape: bf16[2,3,8,32], index: 1, kind: input, shape index: {}, may-alias: {0,1,2}]
  %s2 = inlined_call_operand.vmem [shape: bf16[2,3,8,32], index: 2, kind: input, shape index: {}, may-alias: {0,1,2}]
  %s3 = inlined_call_operand.vmem [shape: f32[1,8], index: 3, kind: input, shape index: {}]
  %s4 = inlined_call_operand.vmem [shape: f32[1,8], index: 4, kind: input, shape index: {}]
  %s5 = inlined_call_operand.vmem [shape: bf16[2,8,32], index: 5, kind: output, shape index: {0}]
  %s6 = inlined_call_operand.vmem [shape: f32[2,8,4], index: 6, kind: output, shape index: {1}]
  %s7 = inlined_call_operand.vmem [shape: f32[2,8,4], index: 7, kind: output, shape index: {2}]
  %8 = xla_tuple %s5, %s6, %s7
  %s9 = sld [smem:[#allocation0]]
  $region77: #{attention_forward.4} parent=0
    _
  %s11 = ssub.s32 1, %s9
  %s12 = scalar_select 0, %s11, %s9
  loop: start=0, step=1, limit=4
  $region2: #{attention_forward.4} parent=0 // loop_pre_header
    _
  $region3: #{attention_forward.4} parent=0 // loop_header
    %s14 = sphi 0, %s18
    %p15 = scmp.ge.s32.totalorder %s14, 4
    %s21 = sphi 0, %s40
    %s22 = sphi 0, %s36
    %s23 = sphi 0, %s32
    %s24 = sphi 0, %s21
    %s25 = sphi 0, %s22
    %s26 = sphi 0, %s23
    %s27 = sphi 0, %s24
    %s28 = sphi 0, %s25
    %s29 = sphi 0, %s26
    %s45 = sphi 0, %s47
    %s48 = sphi 0, %s45
    %s49 = sphi 0, %s48
    %s65 = sphi 0, %s49
    %s73 = sphi 0, %s75
    %s76 = sphi 0, %s73
    %s77 = sphi 0, %s76
    %s93 = sphi 0, %s77
    %s101 = sphi 0, %s103
    %s104 = sphi 0, %s101
    %s105 = sphi 0, %s104
    %s121 = sphi 0, %s105
    %s125 = sphi 0, %s125
    %s127 = sphi 0, %s125
    %s128 = sphi 0, %s127
    %s142 = sphi 0, %s128
    %s146 = sphi 0, %s146
    %s148 = sphi 0, %s146
    %s149 = sphi 0, %s148
    %s163 = sphi 0, %s149
    %s171 = sphi 0, %s173
    %s174 = sphi 0, %s171
    %s175 = sphi 0, %s174
    %s191 = sphi 0, %s175
    %s199 = sphi 0, %s201
    %s202 = sphi 0, %s199
    %s203 = sphi 0, %s202
    %s219 = sphi 0, %s203
    %s227 = sphi 0, %s229
    %s230 = sphi 0, %s227
    %s231 = sphi 0, %s230
    %s247 = sphi 0, %s231
  $region4: #{attention_forward.4} parent=0 // loop_header_branch
    %17 = sbr.rel (%p15) target = $region8
  $region5: #{attention_forward.4} parent=0 // loop_body
    %s19 = ssub.s32 %s14, 1
    %s20 = ssub.s32 %s14, 2
    %s30 = sadd.s32 1, %s23
    %p31 = scmp.ge.s32.totalorder %s30, 1
    %s32 = scalar_select %p31, 0, %s30
    %s33 = sadd.s32 1, %s22
    %s34 = scalar_select %p31, %s33, %s22
    %p35 = scmp.ge.s32.totalorder %s34, 1
    %s36 = scalar_select %p35, 0, %s34
    %s37 = sadd.s32 1, %s21
    %s38 = scalar_select %p35, %s37, %s21
    %p39 = scmp.ge.s32.totalorder %s38, 2
    %s40 = scalar_select %p39, 0, %s38
    %s41 = ssub.s32 %s21, %s40
    %s42 = ssub.s32 %s22, %s36
    %s43 = sor.u32 %s41, %s42
    %p44 = scmp.eq.s32.totalorder %s43, 0
    %s46 = sadd.s32 %s45, 1
    %s47 = scalar_select %p44, %s45, %s46
    %p50 = pneg %p44
    %p51 = scmp.eq.s32.totalorder %s14, 1
    %p52 = por %p50, %p51
    %p53 = scmp.ne.s32.totalorder %s45, %s48
    %p54 = scmp.eq.s32.totalorder %s14, 0
    %p55 = por %p53, %p54
    %p56 = scmp.ne.s32.totalorder %s45, %s48
    %p57 = scmp.eq.s32.totalorder %s19, 1
    %p58 = por %p56, %p57
    %p59 = scmp.ne.s32.totalorder %s48, %s49
    %p60 = scmp.eq.s32.totalorder %s19, 0
    %p61 = por %p59, %p60
    %p62 = scmp.ne.s32.totalorder %s48, %s49
    %p63 = scmp.eq.s32.totalorder %s20, 1
    %p64 = por %p62, %p63
    %p66 = scmp.ne.s32.totalorder %s49, %s65
    %p67 = scmp.eq.s32.totalorder %s20, 0
    %p68 = por %p66, %p67
    %s69 = ssub.s32 %s21, %s40
    %s70 = ssub.s32 %s23, %s32
    %s71 = sor.u32 %s69, %s70
    %p72 = scmp.eq.s32.totalorder %s71, 0
    %s74 = sadd.s32 %s73, 1
    %s75 = scalar_select %p72, %s73, %s74
    %p78 = pneg %p72
    %p79 = scmp.eq.s32.totalorder %s14, 1
    %p80 = por %p78, %p79
    %p81 = scmp.ne.s32.totalorder %s73, %s76
    %p82 = scmp.eq.s32.totalorder %s14, 0
    %p83 = por %p81, %p82
    %p84 = scmp.ne.s32.totalorder %s73, %s76
    %p85 = scmp.eq.s32.totalorder %s19, 1
    %p86 = por %p84, %p85
    %p87 = scmp.ne.s32.totalorder %s76, %s77
    %p88 = scmp.eq.s32.totalorder %s19, 0
    %p89 = por %p87, %p88
    %p90 = scmp.ne.s32.totalorder %s76, %s77
    %p91 = scmp.eq.s32.totalorder %s20, 1
    %p92 = por %p90, %p91
    %p94 = scmp.ne.s32.totalorder %s77, %s93
    %p95 = scmp.eq.s32.totalorder %s20, 0
    %p96 = por %p94, %p95
    %s97 = ssub.s32 %s21, %s40
    %s98 = ssub.s32 %s23, %s32
    %s99 = sor.u32 %s97, %s98
    %p100 = scmp.eq.s32.totalorder %s99, 0
    %s102 = sadd.s32 %s101, 1
    %s103 = scalar_select %p100, %s101, %s102
    %p106 = pneg %p100
    %p107 = scmp.eq.s32.totalorder %s14, 1
    %p108 = por %p106, %p107
    %p109 = scmp.ne.s32.totalorder %s101, %s104
    %p110 = scmp.eq.s32.totalorder %s14, 0
    %p111 = por %p109, %p110
    %p112 = scmp.ne.s32.totalorder %s101, %s104
    %p113 = scmp.eq.s32.totalorder %s19, 1
    %p114 = por %p112, %p113
    %p115 = scmp.ne.s32.totalorder %s104, %s105
    %p116 = scmp.eq.s32.totalorder %s19, 0
    %p117 = por %p115, %p116
    %p118 = scmp.ne.s32.totalorder %s104, %s105
    %p119 = scmp.eq.s32.totalorder %s20, 1
    %p120 = por %p118, %p119
    %p122 = scmp.ne.s32.totalorder %s105, %s121
    %p123 = scmp.eq.s32.totalorder %s20, 0
    %p124 = por %p122, %p123
    %s126 = sadd.s32 %s125, 1
    %p129 = scmp.eq.s32.totalorder %s14, 1
    %p130 = scmp.ne.s32.totalorder %s125, %s127
    %p131 = scmp.eq.s32.totalorder %s14, 0
    %p132 = por %p130, %p131
    %p133 = scmp.ne.s32.totalorder %s125, %s127
    %p134 = scmp.eq.s32.totalorder %s19, 1
    %p135 = por %p133, %p134
    %p136 = scmp.ne.s32.totalorder %s127, %s128
    %p137 = scmp.eq.s32.totalorder %s19, 0
    %p138 = por %p136, %p137
    %p139 = scmp.ne.s32.totalorder %s127, %s128
    %p140 = scmp.eq.s32.totalorder %s20, 1
    %p141 = por %p139, %p140
    %p143 = scmp.ne.s32.totalorder %s128, %s142
    %p144 = scmp.eq.s32.totalorder %s20, 0
    %p145 = por %p143, %p144
    %s147 = sadd.s32 %s146, 1
    %p150 = scmp.eq.s32.totalorder %s14, 1
    %p151 = scmp.ne.s32.totalorder %s146, %s148
    %p152 = scmp.eq.s32.totalorder %s14, 0
    %p153 = por %p151, %p152
    %p154 = scmp.ne.s32.totalorder %s146, %s148
    %p155 = scmp.eq.s32.totalorder %s19, 1
    %p156 = por %p154, %p155
    %p157 = scmp.ne.s32.totalorder %s148, %s149
    %p158 = scmp.eq.s32.totalorder %s19, 0
    %p159 = por %p157, %p158
    %p160 = scmp.ne.s32.totalorder %s148, %s149
    %p161 = scmp.eq.s32.totalorder %s20, 1
    %p162 = por %p160, %p161
    %p164 = scmp.ne.s32.totalorder %s149, %s163
    %p165 = scmp.eq.s32.totalorder %s20, 0
    %p166 = por %p164, %p165
    %s167 = ssub.s32 %s21, %s40
    %s168 = ssub.s32 %s22, %s36
    %s169 = sor.u32 %s167, %s168
    %p170 = scmp.eq.s32.totalorder %s169, 0
    %s172 = sadd.s32 %s171, 1
    %s173 = scalar_select %p170, %s171, %s172
    %p176 = pneg %p170
    %p177 = scmp.eq.s32.totalorder %s14, 1
    %p178 = por %p176, %p177
    %p179 = scmp.ne.s32.totalorder %s171, %s174
    %p180 = scmp.eq.s32.totalorder %s14, 0
    %p181 = por %p179, %p180
    %p182 = scmp.ne.s32.totalorder %s171, %s174
    %p183 = scmp.eq.s32.totalorder %s19, 1
    %p184 = por %p182, %p183
    %p185 = scmp.ne.s32.totalorder %s174, %s175
    %p186 = scmp.eq.s32.totalorder %s19, 0
    %p187 = por %p185, %p186
    %p188 = scmp.ne.s32.totalorder %s174, %s175
    %p189 = scmp.eq.s32.totalorder %s20, 1
    %p190 = por %p188, %p189
    %p192 = scmp.ne.s32.totalorder %s175, %s191
    %p193 = scmp.eq.s32.totalorder %s20, 0
    %p194 = por %p192, %p193
    %s195 = ssub.s32 %s21, %s40
    %s196 = ssub.s32 %s22, %s36
    %s197 = sor.u32 %s195, %s196
    %p198 = scmp.eq.s32.totalorder %s197, 0
    %s200 = sadd.s32 %s199, 1
    %s201 = scalar_select %p198, %s199, %s200
    %p204 = pneg %p198
    %p205 = scmp.eq.s32.totalorder %s14, 1
    %p206 = por %p204, %p205
    %p207 = scmp.ne.s32.totalorder %s199, %s202
    %p208 = scmp.eq.s32.totalorder %s14, 0
    %p209 = por %p207, %p208
    %p210 = scmp.ne.s32.totalorder %s199, %s202
    %p211 = scmp.eq.s32.totalorder %s19, 1
    %p212 = por %p210, %p211
    %p213 = scmp.ne.s32.totalorder %s202, %s203
    %p214 = scmp.eq.s32.totalorder %s19, 0
    %p215 = por %p213, %p214
    %p216 = scmp.ne.s32.totalorder %s202, %s203
    %p217 = scmp.eq.s32.totalorder %s20, 1
    %p218 = por %p216, %p217
    %p220 = scmp.ne.s32.totalorder %s203, %s219
    %p221 = scmp.eq.s32.totalorder %s20, 0
    %p222 = por %p220, %p221
    %s223 = ssub.s32 %s21, %s40
    %s224 = ssub.s32 %s23, %s32
    %s225 = sor.u32 %s223, %s224
    %p226 = scmp.eq.s32.totalorder %s225, 0
    %s228 = sadd.s32 %s227, 1
    %s229 = scalar_select %p226, %s227, %s228
    %p232 = pneg %p226
    %p233 = scmp.eq.s32.totalorder %s14, 1
    %p234 = por %p232, %p233
    %p235 = scmp.ne.s32.totalorder %s227, %s230
    %p236 = scmp.eq.s32.totalorder %s14, 0
    %p237 = por %p235, %p236
    %p238 = scmp.ne.s32.totalorder %s227, %s230
    %p239 = scmp.eq.s32.totalorder %s19, 1
    %p240 = por %p238, %p239
    %p241 = scmp.ne.s32.totalorder %s230, %s231
    %p242 = scmp.eq.s32.totalorder %s19, 0
    %p243 = por %p241, %p242
    %p244 = scmp.ne.s32.totalorder %s230, %s231
    %p245 = scmp.eq.s32.totalorder %s20, 1
    %p246 = por %p244, %p245
    %p248 = scmp.ne.s32.totalorder %s231, %s247
    %p249 = scmp.eq.s32.totalorder %s20, 0
    %p250 = por %p248, %p249
    %p251 = scmp.le.s32.totalorder 1, %s14
    %p252 = scmp.lt.s32.totalorder %s14, 3
    %p253 = pnand %p251, %p252
    %p254 = pneg %p253
    // Predicated region
    $region9: #{attention_forward.4} parent=5 // pred_check
      _
    $region10: #{attention_forward.4} parent=5 // pred_check_branch
      %256 = sbr.rel (%p253) target = $region12
    $region11: #{attention_forward.4} parent=5 // pred_region
      %s257 = ssub.s32 %s14, 1
      // Predicated region
      $region13: #{attention_forward.4} parent=11 // pred_check
        %p258 = pneg %p138
      $region14: #{attention_forward.4} parent=11 // pred_check_branch
        %260 = sbr.rel (%p258) target = $region16
      $region15: #{attention_forward.4} parent=11 // pred_region
        _
      $region16: #{attention_forward.4} parent=11 // pred_fallthru
        _
      // Predicated region
      $region17: #{attention_forward.4} parent=11 // pred_check
        %p261 = pneg %p159
      $region18: #{attention_forward.4} parent=11 // pred_check_branch
        %263 = sbr.rel (%p261) target = $region20
      $region19: #{attention_forward.4} parent=11 // pred_region
        _
      $region20: #{attention_forward.4} parent=11 // pred_fallthru
        _
    $region12: #{attention_forward.4} parent=5 // pred_fallthru
      _
    %p264 = scmp.lt.s32.totalorder %s14, 2
    // Predicated region
    $region21: #{attention_forward.4} parent=5 // pred_check
      %p265 = pneg %p264
    $region22: #{attention_forward.4} parent=5 // pred_check_branch
      %267 = sbr.rel (%p265) target = $region24
    $region23: #{attention_forward.4} parent=5 // pred_region
      // Predicated region
      $region25: #{attention_forward.4} parent=23 // pred_check
        %p268 = pneg %p55
      $region26: #{attention_forward.4} parent=23 // pred_check_branch
        %270 = sbr.rel (%p268) target = $region28
      $region27: #{attention_forward.4} parent=23 // pred_region
        %p271 = scmp.lt.s32.totalorder %s21, 1
        %s272 = scalar_select %p271, %s21, 1
        %p273 = scmp.lt.s32.totalorder %s22, 0
        %s274 = scalar_select %p273, %s22, 0
        %s275 = smul.addr %s272, 3
        %s276 = sadd.s32 %s274, %s275
        %s277 = smul.addr %s276, 4
        %s278 = scalar_lea.vmem %s0, %s277
      $region28: #{attention_forward.4} parent=23 // pred_fallthru
        _
      // Predicated region
      $region29: #{attention_forward.4} parent=23 // pred_check
        %p279 = pneg %p83
      $region30: #{attention_forward.4} parent=23 // pred_check_branch
        %281 = sbr.rel (%p279) target = $region32
      $region31: #{attention_forward.4} parent=23 // pred_region
        %p282 = scmp.lt.s32.totalorder %s21, 1
        %s283 = scalar_select %p282, %s21, 1
        %p284 = scmp.lt.s32.totalorder %s23, 0
        %s285 = scalar_select %p284, %s23, 0
        %s286 = sadd.s32 %s285, 1
        %s287 = smul.addr %s283, 3
        %s288 = sadd.s32 %s286, %s287
        %s289 = smul.addr %s288, 4
        %s290 = scalar_lea.vmem %s1, %s289
      $region32: #{attention_forward.4} parent=23 // pred_fallthru
        _
      // Predicated region
      $region33: #{attention_forward.4} parent=23 // pred_check
        %p291 = pneg %p111
      $region34: #{attention_forward.4} parent=23 // pred_check_branch
        %293 = sbr.rel (%p291) target = $region36
      $region35: #{attention_forward.4} parent=23 // pred_region
        %p294 = scmp.lt.s32.totalorder %s21, 1
        %s295 = scalar_select %p294, %s21, 1
        %p296 = scmp.lt.s32.totalorder %s23, 0
        %s297 = scalar_select %p296, %s23, 0
        %s298 = sadd.s32 %s297, 2
        %s299 = smul.addr %s295, 3
        %s300 = sadd.s32 %s298, %s299
        %s301 = smul.addr %s300, 4
        %s302 = scalar_lea.vmem %s2, %s301
      $region36: #{attention_forward.4} parent=23 // pred_fallthru
        _
    $region24: #{attention_forward.4} parent=5 // pred_fallthru
      _
    %p303 = scmp.le.s32.totalorder 1, %s14
    %p304 = scmp.lt.s32.totalorder %s14, 3
    %p305 = pnand %p303, %p304
    %p306 = pneg %p305
    // Predicated region
    $region37: #{attention_forward.4} parent=5 // pred_check
      _
    $region38: #{attention_forward.4} parent=5 // pred_check_branch
      %308 = sbr.rel (%p305) target = $region40
    $region39: #{attention_forward.4} parent=5 // pred_region
      %s309 = ssub.s32 %s14, 1
      %p310 = scmp.lt.s32.totalorder %s24, 1
      %s311 = scalar_select %p310, %s24, 1
      %p312 = scmp.lt.s32.totalorder %s25, 0
      %s313 = scalar_select %p312, %s25, 0
      %s314 = smul.addr %s311, 3
      %s315 = sadd.s32 %s313, %s314
      %s316 = smul.addr %s315, 4
      %s317 = scalar_lea.vmem %s0, %s316
      %p318 = pneg %p61
      %p319 = pneg %p58
      %p320 = scmp.lt.s32.totalorder %s24, 1
      %s321 = scalar_select %p320, %s24, 1
      %p322 = scmp.lt.s32.totalorder %s26, 0
      %s323 = scalar_select %p322, %s26, 0
      %s324 = sadd.s32 %s323, 1
      %s325 = smul.addr %s321, 3
      %s326 = sadd.s32 %s324, %s325
      %s327 = smul.addr %s326, 4
      %s328 = scalar_lea.vmem %s1, %s327
      %p329 = pneg %p89
      %p330 = pneg %p86
      %p331 = scmp.lt.s32.totalorder %s24, 1
      %s332 = scalar_select %p331, %s24, 1
      %p333 = scmp.lt.s32.totalorder %s26, 0
      %s334 = scalar_select %p333, %s26, 0
      %s335 = sadd.s32 %s334, 2
      %s336 = smul.addr %s332, 3
      %s337 = sadd.s32 %s335, %s336
      %s338 = smul.addr %s337, 4
      %s339 = scalar_lea.vmem %s2, %s338
      %p340 = pneg %p117
      %p341 = pneg %p114
      %p342 = pneg %p138
      %p343 = pneg %p135
      %p344 = pneg %p159
      %p345 = pneg %p156
      %p346 = pneg %p187
      %p347 = pneg %p184
      %p348 = scmp.lt.s32.totalorder %s24, 1
      %s349 = scalar_select %p348, %s24, 1
      %p350 = scmp.lt.s32.totalorder %s25, 0
      %s351 = scalar_select %p350, %s25, 0
      %s352 = sadd.s32 %s351, %s349
      %s353 = smul.addr %s352, 4
      %s354 = scalar_lea.vmem %s5, %s353
      %p355 = pneg %p215
      %p356 = pneg %p212
      %p357 = scmp.lt.s32.totalorder %s24, 1
      %s358 = scalar_select %p357, %s24, 1
      %p359 = scmp.lt.s32.totalorder %s25, 0
      %s360 = scalar_select %p359, %s25, 0
      %s361 = sadd.s32 %s360, %s358
      %s362 = smul.addr %s361, 8
      %s363 = scalar_lea.vmem %s6, %s362
      %p364 = pneg %p243
      %p365 = pneg %p240
      %p366 = scmp.lt.s32.totalorder %s24, 1
      %s367 = scalar_select %p366, %s24, 1
      %p368 = scmp.lt.s32.totalorder %s26, 0
      %s369 = scalar_select %p368, %s26, 0
      %s370 = sadd.s32 %s369, %s367
      %s371 = smul.addr %s370, 8
      %s372 = scalar_lea.vmem %s7, %s371
      %p373 = scmp.lt.s32.totalorder %s24, 1
      %s374 = scalar_select %p373, %s24, 1
      %p375 = scmp.lt.s32.totalorder %s25, 0
      %s376 = scalar_select %p375, %s25, 0
      %s377 = smul.addr %s374, 3
      %s378 = sadd.s32 %s376, %s377
      %s379 = smul.addr %s378, 4
      %s380 = scalar_lea.vmem %s0, %s379
      %p381 = scmp.lt.s32.totalorder %s24, 1
      %s382 = scalar_select %p381, %s24, 1
      %p383 = scmp.lt.s32.totalorder %s26, 0
      %s384 = scalar_select %p383, %s26, 0
      %s385 = sadd.s32 %s384, 1
      %s386 = smul.addr %s382, 3
      %s387 = sadd.s32 %s385, %s386
      %s388 = smul.addr %s387, 4
      %s389 = scalar_lea.vmem %s1, %s388
      %p390 = scmp.lt.s32.totalorder %s24, 1
      %s391 = scalar_select %p390, %s24, 1
      %p392 = scmp.lt.s32.totalorder %s26, 0
      %s393 = scalar_select %p392, %s26, 0
      %s394 = sadd.s32 %s393, 2
      %s395 = smul.addr %s391, 3
      %s396 = sadd.s32 %s394, %s395
      %s397 = smul.addr %s396, 4
      %s398 = scalar_lea.vmem %s2, %s397
      %p399 = scmp.lt.s32.totalorder %s24, 1
      %s400 = scalar_select %p399, %s24, 1
      %p401 = scmp.lt.s32.totalorder %s25, 0
      %s402 = scalar_select %p401, %s25, 0
      %s403 = sadd.s32 %s402, %s400
      %s404 = smul.addr %s403, 4
      %s405 = scalar_lea.vmem %s5, %s404
      %p406 = scmp.lt.s32.totalorder %s24, 1
      %s407 = scalar_select %p406, %s24, 1
      %p408 = scmp.lt.s32.totalorder %s25, 0
      %s409 = scalar_select %p408, %s25, 0
      %s410 = sadd.s32 %s409, %s407
      %s411 = smul.addr %s410, 8
      %s412 = scalar_lea.vmem %s6, %s411
      %p413 = scmp.lt.s32.totalorder %s24, 1
      %s414 = scalar_select %p413, %s24, 1
      %p415 = scmp.lt.s32.totalorder %s26, 0
      %s416 = scalar_select %p415, %s26, 0
      %s417 = sadd.s32 %s416, %s414
      %s418 = smul.addr %s417, 8
      %s419 = scalar_lea.vmem %s7, %s418
      %p421 = scmp.eq.s32.totalorder %s26, 0
      // Predicated region
      $region41: #{attention_forward.4} parent=39 // pred_check
        %p422 = pneg %p421
      $region42: #{attention_forward.4} parent=39 // pred_check_branch
        %424 = sbr.rel (%p422) target = $region44
      $region43: #{attention_forward.4} parent=39 // pred_region
        %vm425 = vcmask 31744
        %426 = vst.msk [vmem:[#allocation2] sm:$0xff] %vm425, -inf
        %427 = vst.msk [vmem:[#allocation3] sm:$0xff] %vm425, 0.0
        %vm428 = vcmask 261120
        %429 = vst.msk [vmem:[#allocation4] sm:$0xff] %vm428, 0.0
      $region44: #{attention_forward.4} parent=39 // pred_fallthru
        _
      %v430 = vld [vmem:[%s3] sm:$0x1]
      %v431 = vld [vmem:[%s4] sm:$0x1]
      %v432 = vld [vmem:[%s380] sm:$0xf]
      %v433 = vunpack.c.l.bf16 %v432
      %v434 = vld [vmem:[%s389] sm:$0xf]
      %v435 = vunpack.c.l.bf16 %v434
      %v436 = vmul.f32 %v433, %v433
      %vm437 = vcmask 64512
      %v438 = vsel %vm437, %v436, 0.0
      %439 = vadd.xlane.f32.xlu0 %v438
      %v440 = vpop.xlane.xlu0 %439
      %v441 = vrcp.pop 8.0
      %v442 = vmul.f32 %v440, %v441
      %v443 = vadd.f32 %v442, 1e-06
      %v444 = vrsqrt.pop %v443
      %v445 = vmul.f32 %v433, %v444
      %v447 = vlaneseq
      %v448 = vshrl.u32 %v447, 7
      %v449 = vsub.s32 0, %v448
      %v450 = vrot.slane %v430, %v449
      %v452 = vmul.f32 %v445, %v450
      %v453 = vmul.f32 %v435, %v435
      %v454 = vsel %vm437, %v453, 0.0
      %455 = vadd.xlane.f32.xlu0 %v454
      %v456 = vpop.xlane.xlu0 %455
      %v457 = vmul.f32 %v456, %v441
      %v458 = vadd.f32 %v457, 1e-06
      %v459 = vrsqrt.pop %v458
      %v460 = vmul.f32 %v435, %v459
      %v462 = vlaneseq
      %v463 = vshrl.u32 %v462, 7
      %v464 = vsub.s32 0, %v463
      %v465 = vrot.slane %v431, %v464
      %v467 = vmul.f32 %v460, %v465
      %v468 = vmul.f32 %v452, %v452
      %v469 = vsel %vm437, %v468, 0.0
      %470 = vadd.xlane.f32.xlu0 %v469
      %v471 = vpop.xlane.xlu0 %470
      %v472 = vrsqrt.pop %v471
      %v473 = vmul.f32 %v471, %v472
      %vm474 = vcmp.eq.f32.partialorder %v471, inf
      %v475 = vsel %vm474, %v471, %v473
      %vm476 = vcmp.eq.f32.partialorder %v471, 0.0
      %v477 = vand.u32 %v471, 2147483648
      %v478 = vsel %vm476, %v477, %v475
      %vm479 = vcmask 7168
      %480 = vst.msk [vmem:[%s412] sm:$0xff] %vm479, %v478
      %v481 = vmul.f32 %v467, %v467
      %v482 = vsel %vm437, %v481, 0.0
      %483 = vadd.xlane.f32.xlu0 %v482
      %v484 = vpop.xlane.xlu0 %483
      %v485 = vrsqrt.pop %v484
      %v486 = vmul.f32 %v484, %v485
      %vm487 = vcmp.eq.f32.partialorder %v484, inf
      %v488 = vsel %vm487, %v484, %v486
      %vm489 = vcmp.eq.f32.partialorder %v484, 0.0
      %v490 = vand.u32 %v484, 2147483648
      %v491 = vsel %vm489, %v490, %v488
      %492 = vst.msk [vmem:[%s419] sm:$0xff] %vm479, %v491
      %v493 = vmul.f32 %v452, 0.35355338
      %v494 = vpack.c.bf16 %v493, %v493
      %v495 = vpack.c.bf16 %v467, %v467
      %v496 = vld [vmem:[%s398] sm:$0xf]
      %v498 = vsel %vm437, %v494, 0
      %v501 = vsel %vm437, %v495, 0
      %503 = vmatprep.subr.bf16.mxu0 0
      %504 = vmatpush1.bf16.xpose.msra.mxu0 0
      %505 = vmatprep.subr.bf16.mxu0 0
      %506 = vmatpush1.bf16.xpose.msra.mxu0 0
      %507 = vmatprep.subr.bf16.mxu0 0
      %508 = vmatpush1.bf16.xpose.msra.mxu0 0
      %509 = vmatprep.subr.bf16.mxu0 0
      %510 = vmatpush1.bf16.xpose.msra.mxu0 0
      %511 = vmatprep.subr.bf16.mxu0 0
      %512 = vmatpush1.bf16.xpose.msra.mxu0 0
      %513 = vmatprep.subr.bf16.mxu0 0
      %514 = vmatpush1.bf16.xpose.msra.mxu0 0
      %515 = vmatprep.subr.bf16.mxu0 0
      %516 = vmatpush1.bf16.xpose.msra.mxu0 0
      %517 = vmatprep.subr.bf16.mxu0 0
      %518 = vmatpush1.bf16.xpose.msra.mxu0 %v501
      %519 = vmatprep.subr.bf16.mxu0 0
      %520 = vmatpush2.bf16.xpose.msra.mxu0 0
      %521 = vmatprep.subr.bf16.mxu0 0
      %522 = vmatpush2.bf16.xpose.msra.mxu0 0
      %523 = vmatprep.subr.bf16.mxu0 0
      %524 = vmatpush2.bf16.xpose.msra.mxu0 0
      %525 = vmatprep.subr.bf16.mxu0 0
      %526 = vmatpush2.bf16.xpose.msra.mxu0 0
      %527 = vmatprep.subr.bf16.mxu0 0
      %528 = vmatpush2.bf16.xpose.msra.mxu0 0
      %529 = vmatprep.subr.bf16.mxu0 0
      %530 = vmatpush2.bf16.xpose.msra.mxu0 0
      %531 = vmatprep.subr.bf16.mxu0 0
      %532 = vmatpush2.bf16.xpose.msra.mxu0 0
      %533 = vmatprep.subr.bf16.mxu0 0
      %534 = vmatpush2.bf16.xpose.msra.mxu0 0
      %535 = vmatprep.mubr.bf16.mxu0 0
      %536 = vmatmul.mubr.bf16.gmra.mxu0 %v498
      %v537 = vpop.f32.mrf.mxu0
      %v538 = vadd.f32 0.0, %v537
      %v539 = vpop.f32.mrf.mxu0
      %v540 = vpop.f32.mrf.mxu0
      %v541 = vpop.f32.mrf.mxu0
      %542 = vdwg.mxu0
      %v543 = vld [vmem:[#allocation2] sm:$0xff]
      %v544 = vsel %vm437, %v538, -inf
      %545 = vmax.xlane.f32.xlu0 %v544
      %v546 = vpop.xlane.xlu0 %545
      %v547 = vmax.f32 %v543, %v546
      %v548 = vsub.f32 %v543, %v547
      %v549 = vmul.f32 %v548, 1.442695
      %v550 = vpow.pop %v549
      %552 = vset.pattern.permute.xlu0 0
      %553 = vperm.xlu0 %552, %v547
      %v554 = vpop.permute.xlu0 %553
      %v556 = vsub.f32 %v538, %v554
      %v557 = vmul.f32 %v556, 1.442695
      %v558 = vpow.pop %v557
      %v559 = vld [vmem:[#allocation3] sm:$0xff]
      %v560 = vmul.f32 %v550, %v559
      %v561 = vsel %vm437, %v558, 0.0
      %562 = vadd.xlane.f32.xlu0 %v561
      %v563 = vpop.xlane.xlu0 %562
      %v564 = vadd.f32 %v560, %v563
      %565 = vst.msk [vmem:[#allocation3] sm:$0xff] %vm479, %v564
      %v566 = vld [vmem:[#allocation4] sm:$0xff]
      %568 = vset.pattern.permute.xlu0 0
      %569 = vperm.xlu0 %568, %v550
      %v570 = vpop.permute.xlu0 %569
      %v572 = vmul.f32 %v570, %v566
      %v573 = vpack.c.bf16 %v558, %v558
      %v575 = vsel %vm437, %v573, 0
      %vm577 = vcmask 1043456
      %v579 = vsel %vm577, %v496, 0
      %581 = vmatprep.subr.bf16.mxu0 0
      %582 = vmatpush1.bf16.msra.mxu0 0
      %583 = vmatprep.subr.bf16.mxu0 0
      %584 = vmatpush1.bf16.msra.mxu0 0
      %585 = vmatprep.subr.bf16.mxu0 0
      %586 = vmatpush1.bf16.msra.mxu0 0
      %587 = vmatprep.subr.bf16.mxu0 0
      %588 = vmatpush1.bf16.msra.mxu0 0
      %589 = vmatprep.subr.bf16.mxu0 0
      %590 = vmatpush1.bf16.msra.mxu0 0
      %591 = vmatprep.subr.bf16.mxu0 0
      %592 = vmatpush1.bf16.msra.mxu0 0
      %593 = vmatprep.subr.bf16.mxu0 0
      %594 = vmatpush1.bf16.msra.mxu0 0
      %595 = vmatprep.subr.bf16.mxu0 0
      %596 = vmatpush1.bf16.msra.mxu0 %v579
      %597 = vmatprep.subr.bf16.mxu0 0
      %598 = vmatpush2.bf16.msra.mxu0 0
      %599 = vmatprep.subr.bf16.mxu0 0
      %600 = vmatpush2.bf16.msra.mxu0 0
      %601 = vmatprep.subr.bf16.mxu0 0
      %602 = vmatpush2.bf16.msra.mxu0 0
      %603 = vmatprep.subr.bf16.mxu0 0
      %604 = vmatpush2.bf16.msra.mxu0 0
      %605 = vmatprep.subr.bf16.mxu0 0
      %606 = vmatpush2.bf16.msra.mxu0 0
      %607 = vmatprep.subr.bf16.mxu0 0
      %608 = vmatpush2.bf16.msra.mxu0 0
      %609 = vmatprep.subr.bf16.mxu0 0
      %610 = vmatpush2.bf16.msra.mxu0 0
      %611 = vmatprep.subr.bf16.mxu0 0
      %612 = vmatpush2.bf16.msra.mxu0 0
      %613 = vmatprep.mubr.bf16.mxu0 0
      %614 = vmatmul.mubr.bf16.gmra.mxu0 %v575
      %v615 = vpop.f32.mrf.mxu0
      %v616 = vadd.f32 0.0, %v615
      %v617 = vpop.f32.mrf.mxu0
      %v618 = vpop.f32.mrf.mxu0
      %v619 = vpop.f32.mrf.mxu0
      %620 = vdwg.mxu0
      %v621 = vadd.f32 %v572, %v616
      %622 = vst.msk [vmem:[#allocation4] sm:$0xff] %vm437, %v621
      %623 = vst.msk [vmem:[#allocation2] sm:$0xff] %vm479, %v547
      %v624 = vld [vmem:[%s380] sm:$0xf]
      %v625 = vunpack.c.l.bf16 %v624
      %v626 = vld [vmem:[%s389] sm:$0xf]
      %v627 = vunpack.c.l.bf16 %v626
      %v628 = vmul.f32 %v625, %v625
      %630 = vrot.lane.b32.xlu0 %v628, 120
      %v631 = vpop.permute.xlu0 %630
      %v633 = vsel %vm437, %v631, 0.0
      %634 = vadd.xlane.f32.xlu0 %v633
      %v635 = vpop.xlane.xlu0 %634
      %v636 = vmul.f32 %v635, %v441
      %v637 = vadd.f32 %v636, 1e-06
      %v638 = vrsqrt.pop %v637
      %v639 = vmul.f32 %v625, %v638
      %640 = vrot.lane.b32.xlu0 %v450, 8
      %v641 = vpop.permute.xlu0 %640
      %v643 = vmul.f32 %v639, %v641
      %v644 = vmul.f32 %v627, %v627
      %646 = vrot.lane.b32.xlu0 %v644, 120
      %v647 = vpop.permute.xlu0 %646
      %v649 = vsel %vm437, %v647, 0.0
      %650 = vadd.xlane.f32.xlu0 %v649
      %v651 = vpop.xlane.xlu0 %650
      %v652 = vmul.f32 %v651, %v441
      %v653 = vadd.f32 %v652, 1e-06
      %v654 = vrsqrt.pop %v653
      %v655 = vmul.f32 %v627, %v654
      %656 = vrot.lane.b32.xlu0 %v465, 8
      %v657 = vpop.permute.xlu0 %656
      %v659 = vmul.f32 %v655, %v657
      %v660 = vmul.f32 %v643, %v643
      %662 = vrot.lane.b32.xlu0 %v660, 120
      %v663 = vpop.permute.xlu0 %662
      %v665 = vsel %vm437, %v663, 0.0
      %666 = vadd.xlane.f32.xlu0 %v665
      %v667 = vpop.xlane.xlu0 %666
      %v668 = vrsqrt.pop %v667
      %v669 = vmul.f32 %v667, %v668
      %vm670 = vcmp.eq.f32.partialorder %v667, inf
      %v671 = vsel %vm670, %v667, %v669
      %vm672 = vcmp.eq.f32.partialorder %v667, 0.0
      %v673 = vand.u32 %v667, 2147483648
      %v674 = vsel %vm672, %v673, %v671
      %vm675 = vcmask 15368
      %676 = vst.msk [vmem:[%s412] sm:$0xff] %vm675, %v674
      %v677 = vmul.f32 %v659, %v659
      %679 = vrot.lane.b32.xlu0 %v677, 120
      %v680 = vpop.permute.xlu0 %679
      %v682 = vsel %vm437, %v680, 0.0
      %683 = vadd.xlane.f32.xlu0 %v682
      %v684 = vpop.xlane.xlu0 %683
      %v685 = vrsqrt.pop %v684
      %v686 = vmul.f32 %v684, %v685
      %vm687 = vcmp.eq.f32.partialorder %v684, inf
      %v688 = vsel %vm687, %v684, %v686
      %vm689 = vcmp.eq.f32.partialorder %v684, 0.0
      %v690 = vand.u32 %v684, 2147483648
      %v691 = vsel %vm689, %v690, %v688
      %692 = vst.msk [vmem:[%s419] sm:$0xff] %vm675, %v691
      %v693 = vmul.f32 %v643, 0.35355338
      %v694 = vpack.c.bf16 %v693, %v693
      %v695 = vpack.c.bf16 %v659, %v659
      %v696 = vld [vmem:[%s398] sm:$0xf]
      %698 = vrot.lane.b32.xlu0 %v694, 120
      %v699 = vpop.permute.xlu0 %698
      %701 = vrot.lane.b32.xlu0 %v695, 120
      %v702 = vpop.permute.xlu0 %701
      %v704 = vsel %vm437, %v699, 0
      %v707 = vsel %vm437, %v702, 0
      %709 = vmatprep.subr.bf16.mxu0 0
      %710 = vmatpush1.bf16.xpose.msra.mxu0 0
      %711 = vmatprep.subr.bf16.mxu0 0
      %712 = vmatpush1.bf16.xpose.msra.mxu0 0
      %713 = vmatprep.subr.bf16.mxu0 0
      %714 = vmatpush1.bf16.xpose.msra.mxu0 0
      %715 = vmatprep.subr.bf16.mxu0 0
      %716 = vmatpush1.bf16.xpose.msra.mxu0 0
      %717 = vmatprep.subr.bf16.mxu0 0
      %718 = vmatpush1.bf16.xpose.msra.mxu0 0
      %719 = vmatprep.subr.bf16.mxu0 0
      %720 = vmatpush1.bf16.xpose.msra.mxu0 0
      %721 = vmatprep.subr.bf16.mxu0 0
      %722 = vmatpush1.bf16.xpose.msra.mxu0 0
      %723 = vmatprep.subr.bf16.mxu0 0
      %724 = vmatpush1.bf16.xpose.msra.mxu0 %v707
      %725 = vmatprep.subr.bf16.mxu0 0
      %726 = vmatpush2.bf16.xpose.msra.mxu0 0
      %727 = vmatprep.subr.bf16.mxu0 0
      %728 = vmatpush2.bf16.xpose.msra.mxu0 0
      %729 = vmatprep.subr.bf16.mxu0 0
      %730 = vmatpush2.bf16.xpose.msra.mxu0 0
      %731 = vmatprep.subr.bf16.mxu0 0
      %732 = vmatpush2.bf16.xpose.msra.mxu0 0
      %733 = vmatprep.subr.bf16.mxu0 0
      %734 = vmatpush2.bf16.xpose.msra.mxu0 0
      %735 = vmatprep.subr.bf16.mxu0 0
      %736 = vmatpush2.bf16.xpose.msra.mxu0 0
      %737 = vmatprep.subr.bf16.mxu0 0
      %738 = vmatpush2.bf16.xpose.msra.mxu0 0
      %739 = vmatprep.subr.bf16.mxu0 0
      %740 = vmatpush2.bf16.xpose.msra.mxu0 0
      %741 = vmatprep.mubr.bf16.mxu0 0
      %742 = vmatmul.mubr.bf16.gmra.mxu0 %v704
      %v743 = vpop.f32.mrf.mxu0
      %v744 = vadd.f32 0.0, %v743
      %v745 = vpop.f32.mrf.mxu0
      %v746 = vpop.f32.mrf.mxu0
      %v747 = vpop.f32.mrf.mxu0
      %748 = vdwg.mxu0
      %v749 = vld [vmem:[#allocation2] sm:$0xff]
      %v750 = vsel %vm437, %v744, -inf
      %751 = vmax.xlane.f32.xlu0 %v750
      %v752 = vpop.xlane.xlu0 %751
      %v753 = vmax.f32 %v749, %v752
      %v754 = vsub.f32 %v749, %v753
      %v755 = vmul.f32 %v754, 1.442695
      %v756 = vpow.pop %v755
      %758 = vset.pattern.permute.xlu0 1
      %759 = vperm.xlu0 %758, %v753
      %v760 = vpop.permute.xlu0 %759
      %v762 = vsub.f32 %v744, %v760
      %v763 = vmul.f32 %v762, 1.442695
      %v764 = vpow.pop %v763
      %v765 = vld [vmem:[#allocation3] sm:$0xff]
      %v766 = vmul.f32 %v756, %v765
      %v767 = vsel %vm437, %v764, 0.0
      %768 = vadd.xlane.f32.xlu0 %v767
      %v769 = vpop.xlane.xlu0 %768
      %v770 = vadd.f32 %v766, %v769
      %771 = vst.msk [vmem:[#allocation3] sm:$0xff] %vm675, %v770
      %v772 = vld [vmem:[#allocation4] sm:$0xff]
      %774 = vset.pattern.permute.xlu0 1
      %775 = vperm.xlu0 %774, %v756
      %v776 = vpop.permute.xlu0 %775
      %v778 = vmul.f32 %v776, %v772
      %v779 = vpack.c.bf16 %v764, %v764
      %v781 = vunpack.c.l.b16 %v696
      %v782 = vpack.c.b16 %v781, %v781
      %783 = vrot.lane.b32.xlu0 %v782, 120
      %v784 = vpop.permute.xlu0 %783
      %v786 = vsel %vm437, %v779, 0
      %v789 = vsel %vm577, %v784, 0
      %791 = vmatprep.subr.bf16.mxu0 0
      %792 = vmatpush1.bf16.msra.mxu0 0
      %793 = vmatprep.subr.bf16.mxu0 0
      %794 = vmatpush1.bf16.msra.mxu0 0
      %795 = vmatprep.subr.bf16.mxu0 0
      %796 = vmatpush1.bf16.msra.mxu0 0
      %797 = vmatprep.subr.bf16.mxu0 0
      %798 = vmatpush1.bf16.msra.mxu0 0
      %799 = vmatprep.subr.bf16.mxu0 0
      %800 = vmatpush1.bf16.msra.mxu0 0
      %801 = vmatprep.subr.bf16.mxu0 0
      %802 = vmatpush1.bf16.msra.mxu0 0
      %803 = vmatprep.subr.bf16.mxu0 0
      %804 = vmatpush1.bf16.msra.mxu0 0
      %805 = vmatprep.subr.bf16.mxu0 0
      %806 = vmatpush1.bf16.msra.mxu0 %v789
      %807 = vmatprep.subr.bf16.mxu0 0
      %808 = vmatpush2.bf16.msra.mxu0 0
      %809 = vmatprep.subr.bf16.mxu0 0
      %810 = vmatpush2.bf16.msra.mxu0 0
      %811 = vmatprep.subr.bf16.mxu0 0
      %812 = vmatpush2.bf16.msra.mxu0 0
      %813 = vmatprep.subr.bf16.mxu0 0
      %814 = vmatpush2.bf16.msra.mxu0 0
      %815 = vmatprep.subr.bf16.mxu0 0
      %816 = vmatpush2.bf16.msra.mxu0 0
      %817 = vmatprep.subr.bf16.mxu0 0
      %818 = vmatpush2.bf16.msra.mxu0 0
      %819 = vmatprep.subr.bf16.mxu0 0
      %820 = vmatpush2.bf16.msra.mxu0 0
      %821 = vmatprep.subr.bf16.mxu0 0
      %822 = vmatpush2.bf16.msra.mxu0 0
      %823 = vmatprep.mubr.bf16.mxu0 0
      %824 = vmatmul.mubr.bf16.gmra.mxu0 %v786
      %v825 = vpop.f32.mrf.mxu0
      %v826 = vadd.f32 0.0, %v825
      %v827 = vpop.f32.mrf.mxu0
      %v828 = vpop.f32.mrf.mxu0
      %v829 = vpop.f32.mrf.mxu0
      %830 = vdwg.mxu0
      %832 = vrot.lane.b32.xlu0 %v826, 8
      %v833 = vpop.permute.xlu0 %832
      %v835 = vadd.f32 %v778, %v833
      %vm836 = vcmask 130112
      %837 = vst.msk [vmem:[#allocation4] sm:$0xff] %vm836, %v835
      %838 = vst.msk [vmem:[#allocation2] sm:$0xff] %vm675, %v753
      %v839 = vld [vmem:[%s380] sm:$0xf]
      %v840 = vunpack.c.l.bf16 %v839
      %v841 = vld [vmem:[%s389] sm:$0xf]
      %v842 = vunpack.c.l.bf16 %v841
      %v843 = vmul.f32 %v840, %v840
      %845 = vrot.lane.b32.xlu0 %v843, 112
      %v846 = vpop.permute.xlu0 %845
      %v848 = vsel %vm437, %v846, 0.0
      %849 = vadd.xlane.f32.xlu0 %v848
      %v850 = vpop.xlane.xlu0 %849
      %v851 = vmul.f32 %v850, %v441
      %v852 = vadd.f32 %v851, 1e-06
      %v853 = vrsqrt.pop %v852
      %v854 = vmul.f32 %v840, %v853
      %855 = vrot.lane.b32.xlu0 %v450, 16
      %v856 = vpop.permute.xlu0 %855
      %v858 = vmul.f32 %v854, %v856
      %v859 = vmul.f32 %v842, %v842
      %861 = vrot.lane.b32.xlu0 %v859, 112
      %v862 = vpop.permute.xlu0 %861
      %v864 = vsel %vm437, %v862, 0.0
      %865 = vadd.xlane.f32.xlu0 %v864
      %v866 = vpop.xlane.xlu0 %865
      %v867 = vmul.f32 %v866, %v441
      %v868 = vadd.f32 %v867, 1e-06
      %v869 = vrsqrt.pop %v868
      %v870 = vmul.f32 %v842, %v869
      %871 = vrot.lane.b32.xlu0 %v465, 16
      %v872 = vpop.permute.xlu0 %871
      %v874 = vmul.f32 %v870, %v872
      %v875 = vmul.f32 %v858, %v858
      %877 = vrot.lane.b32.xlu0 %v875, 112
      %v878 = vpop.permute.xlu0 %877
      %v880 = vsel %vm437, %v878, 0.0
      %881 = vadd.xlane.f32.xlu0 %v880
      %v882 = vpop.xlane.xlu0 %881
      %v883 = vrsqrt.pop %v882
      %v884 = vmul.f32 %v882, %v883
      %vm885 = vcmp.eq.f32.partialorder %v882, inf
      %v886 = vsel %vm885, %v882, %v884
      %vm887 = vcmp.eq.f32.partialorder %v882, 0.0
      %v888 = vand.u32 %v882, 2147483648
      %v889 = vsel %vm887, %v888, %v886
      %vm890 = vcmask 23568
      %891 = vst.msk [vmem:[%s412] sm:$0xff] %vm890, %v889
      %v892 = vmul.f32 %v874, %v874
      %894 = vrot.lane.b32.xlu0 %v892, 112
      %v895 = vpop.permute.xlu0 %894
      %v897 = vsel %vm437, %v895, 0.0
      %898 = vadd.xlane.f32.xlu0 %v897
      %v899 = vpop.xlane.xlu0 %898
      %v900 = vrsqrt.pop %v899
      %v901 = vmul.f32 %v899, %v900
      %vm902 = vcmp.eq.f32.partialorder %v899, inf
      %v903 = vsel %vm902, %v899, %v901
      %vm904 = vcmp.eq.f32.partialorder %v899, 0.0
      %v905 = vand.u32 %v899, 2147483648
      %v906 = vsel %vm904, %v905, %v903
      %907 = vst.msk [vmem:[%s419] sm:$0xff] %vm890, %v906
      %v908 = vmul.f32 %v858, 0.35355338
      %v909 = vpack.c.bf16 %v908, %v908
      %v910 = vpack.c.bf16 %v874, %v874
      %v911 = vld [vmem:[%s398] sm:$0xf]
      %913 = vrot.lane.b32.xlu0 %v909, 112
      %v914 = vpop.permute.xlu0 %913
      %916 = vrot.lane.b32.xlu0 %v910, 112
      %v917 = vpop.permute.xlu0 %916
      %v919 = vsel %vm437, %v914, 0
      %v922 = vsel %vm437, %v917, 0
      %924 = vmatprep.subr.bf16.mxu0 0
      %925 = vmatpush1.bf16.xpose.msra.mxu0 0
      %926 = vmatprep.subr.bf16.mxu0 0
      %927 = vmatpush1.bf16.xpose.msra.mxu0 0
      %928 = vmatprep.subr.bf16.mxu0 0
      %929 = vmatpush1.bf16.xpose.msra.mxu0 0
      %930 = vmatprep.subr.bf16.mxu0 0
      %931 = vmatpush1.bf16.xpose.msra.mxu0 0
      %932 = vmatprep.subr.bf16.mxu0 0
      %933 = vmatpush1.bf16.xpose.msra.mxu0 0
      %934 = vmatprep.subr.bf16.mxu0 0
      %935 = vmatpush1.bf16.xpose.msra.mxu0 0
      %936 = vmatprep.subr.bf16.mxu0 0
      %937 = vmatpush1.bf16.xpose.msra.mxu0 0
      %938 = vmatprep.subr.bf16.mxu0 0
      %939 = vmatpush1.bf16.xpose.msra.mxu0 %v922
      %940 = vmatprep.subr.bf16.mxu0 0
      %941 = vmatpush2.bf16.xpose.msra.mxu0 0
      %942 = vmatprep.subr.bf16.mxu0 0
      %943 = vmatpush2.bf16.xpose.msra.mxu0 0
      %944 = vmatprep.subr.bf16.mxu0 0
      %945 = vmatpush2.bf16.xpose.msra.mxu0 0
      %946 = vmatprep.subr.bf16.mxu0 0
      %947 = vmatpush2.bf16.xpose.msra.mxu0 0
      %948 = vmatprep.subr.bf16.mxu0 0
      %949 = vmatpush2.bf16.xpose.msra.mxu0 0
      %950 = vmatprep.subr.bf16.mxu0 0
      %951 = vmatpush2.bf16.xpose.msra.mxu0 0
      %952 = vmatprep.subr.bf16.mxu0 0
      %953 = vmatpush2.bf16.xpose.msra.mxu0 0
      %954 = vmatprep.subr.bf16.mxu0 0
      %955 = vmatpush2.bf16.xpose.msra.mxu0 0
      %956 = vmatprep.mubr.bf16.mxu0 0
      %957 = vmatmul.mubr.bf16.gmra.mxu0 %v919
      %v958 = vpop.f32.mrf.mxu0
      %v959 = vadd.f32 0.0, %v958
      %v960 = vpop.f32.mrf.mxu0
      %v961 = vpop.f32.mrf.mxu0
      %v962 = vpop.f32.mrf.mxu0
      %963 = vdwg.mxu0
      %v964 = vld [vmem:[#allocation2] sm:$0xff]
      %v965 = vsel %vm437, %v959, -inf
      %966 = vmax.xlane.f32.xlu0 %v965
      %v967 = vpop.xlane.xlu0 %966
      %v968 = vmax.f32 %v964, %v967
      %v969 = vsub.f32 %v964, %v968
      %v970 = vmul.f32 %v969, 1.442695
      %v971 = vpow.pop %v970
      %973 = vset.pattern.permute.xlu0 2
      %974 = vperm.xlu0 %973, %v968
      %v975 = vpop.permute.xlu0 %974
      %v977 = vsub.f32 %v959, %v975
      %v978 = vmul.f32 %v977, 1.442695
      %v979 = vpow.pop %v978
      %v980 = vld [vmem:[#allocation3] sm:$0xff]
      %v981 = vmul.f32 %v971, %v980
      %v982 = vsel %vm437, %v979, 0.0
      %983 = vadd.xlane.f32.xlu0 %v982
      %v984 = vpop.xlane.xlu0 %983
      %v985 = vadd.f32 %v981, %v984
      %986 = vst.msk [vmem:[#allocation3] sm:$0xff] %vm890, %v985
      %v987 = vld [vmem:[#allocation4] sm:$0xff]
      %989 = vset.pattern.permute.xlu0 2
      %990 = vperm.xlu0 %989, %v971
      %v991 = vpop.permute.xlu0 %990
      %v993 = vmul.f32 %v991, %v987
      %v994 = vpack.c.bf16 %v979, %v979
      %v996 = vunpack.c.l.b16 %v911
      %v997 = vpack.c.b16 %v996, %v996
      %998 = vrot.lane.b32.xlu0 %v997, 112
      %v999 = vpop.permute.xlu0 %998
      %v1001 = vsel %vm437, %v994, 0
      %v1004 = vsel %vm577, %v999, 0
      %1006 = vmatprep.subr.bf16.mxu0 0
      %1007 = vmatpush1.bf16.msra.mxu0 0
      %1008 = vmatprep.subr.bf16.mxu0 0
      %1009 = vmatpush1.bf16.msra.mxu0 0
      %1010 = vmatprep.subr.bf16.mxu0 0
      %1011 = vmatpush1.bf16.msra.mxu0 0
      %1012 = vmatprep.subr.bf16.mxu0 0
      %1013 = vmatpush1.bf16.msra.mxu0 0
      %1014 = vmatprep.subr.bf16.mxu0 0
      %1015 = vmatpush1.bf16.msra.mxu0 0
      %1016 = vmatprep.subr.bf16.mxu0 0
      %1017 = vmatpush1.bf16.msra.mxu0 0
      %1018 = vmatprep.subr.bf16.mxu0 0
      %1019 = vmatpush1.bf16.msra.mxu0 0
      %1020 = vmatprep.subr.bf16.mxu0 0
      %1021 = vmatpush1.bf16.msra.mxu0 %v1004
      %1022 = vmatprep.subr.bf16.mxu0 0
      %1023 = vmatpush2.bf16.msra.mxu0 0
      %1024 = vmatprep.subr.bf16.mxu0 0
      %1025 = vmatpush2.bf16.msra.mxu0 0
      %1026 = vmatprep.subr.bf16.mxu0 0
      %1027 = vmatpush2.bf16.msra.mxu0 0
      %1028 = vmatprep.subr.bf16.mxu0 0
      %1029 = vmatpush2.bf16.msra.mxu0 0
      %1030 = vmatprep.subr.bf16.mxu0 0
      %1031 = vmatpush2.bf16.msra.mxu0 0
      %1032 = vmatprep.subr.bf16.mxu0 0
      %1033 = vmatpush2.bf16.msra.mxu0 0
      %1034 = vmatprep.subr.bf16.mxu0 0
      %1035 = vmatpush2.bf16.msra.mxu0 0
      %1036 = vmatprep.subr.bf16.mxu0 0
      %1037 = vmatpush2.bf16.msra.mxu0 0
      %1038 = vmatprep.mubr.bf16.mxu0 0
      %1039 = vmatmul.mubr.bf16.gmra.mxu0 %v1001
      %v1040 = vpop.f32.mrf.mxu0
      %v1041 = vadd.f32 0.0, %v1040
      %v1042 = vpop.f32.mrf.mxu0
      %v1043 = vpop.f32.mrf.mxu0
      %v1044 = vpop.f32.mrf.mxu0
      %1045 = vdwg.mxu0
      %1047 = vrot.lane.b32.xlu0 %v1041, 16
      %v1048 = vpop.permute.xlu0 %1047
      %v1050 = vadd.f32 %v993, %v1048
      %vm1051 = vcmask 195712
      %1052 = vst.msk [vmem:[#allocation4] sm:$0xff] %vm1051, %v1050
      %1053 = vst.msk [vmem:[#allocation2] sm:$0xff] %vm890, %v968
      %v1054 = vld [vmem:[%s380] sm:$0xf]
      %v1055 = vunpack.c.l.bf16 %v1054
      %v1056 = vld [vmem:[%s389] sm:$0xf]
      %v1057 = vunpack.c.l.bf16 %v1056
      %v1058 = vmul.f32 %v1055, %v1055
      %1060 = vrot.lane.b32.xlu0 %v1058, 104
      %v1061 = vpop.permute.xlu0 %1060
      %v1063 = vsel %vm437, %v1061, 0.0
      %1064 = vadd.xlane.f32.xlu0 %v1063
      %v1065 = vpop.xlane.xlu0 %1064
      %v1066 = vmul.f32 %v1065, %v441
      %v1067 = vadd.f32 %v1066, 1e-06
      %v1068 = vrsqrt.pop %v1067
      %v1069 = vmul.f32 %v1055, %v1068
      %1070 = vrot.lane.b32.xlu0 %v450, 24
      %v1071 = vpop.permute.xlu0 %1070
      %v1073 = vmul.f32 %v1069, %v1071
      %v1074 = vmul.f32 %v1057, %v1057
      %1076 = vrot.lane.b32.xlu0 %v1074, 104
      %v1077 = vpop.permute.xlu0 %1076
      %v1079 = vsel %vm437, %v1077, 0.0
      %1080 = vadd.xlane.f32.xlu0 %v1079
      %v1081 = vpop.xlane.xlu0 %1080
      %v1082 = vmul.f32 %v1081, %v441
      %v1083 = vadd.f32 %v1082, 1e-06
      %v1084 = vrsqrt.pop %v1083
      %v1085 = vmul.f32 %v1057, %v1084
      %1086 = vrot.lane.b32.xlu0 %v465, 24
      %v1087 = vpop.permute.xlu0 %1086
      %v1089 = vmul.f32 %v1085, %v1087
      %v1090 = vmul.f32 %v1073, %v1073
      %1092 = vrot.lane.b32.xlu0 %v1090, 104
      %v1093 = vpop.permute.xlu0 %1092
      %v1095 = vsel %vm437, %v1093, 0.0
      %1096 = vadd.xlane.f32.xlu0 %v1095
      %v1097 = vpop.xlane.xlu0 %1096
      %v1098 = vrsqrt.pop %v1097
      %v1099 = vmul.f32 %v1097, %v1098
      %vm1100 = vcmp.eq.f32.partialorder %v1097, inf
      %v1101 = vsel %vm1100, %v1097, %v1099
      %vm1102 = vcmp.eq.f32.partialorder %v1097, 0.0
      %v1103 = vand.u32 %v1097, 2147483648
      %v1104 = vsel %vm1102, %v1103, %v1101
      %vm1105 = vcmask 31768
      %1106 = vst.msk [vmem:[%s412] sm:$0xff] %vm1105, %v1104
      %v1107 = vmul.f32 %v1089, %v1089
      %1109 = vrot.lane.b32.xlu0 %v1107, 104
      %v1110 = vpop.permute.xlu0 %1109
      %v1112 = vsel %vm437, %v1110, 0.0
      %1113 = vadd.xlane.f32.xlu0 %v1112
      %v1114 = vpop.xlane.xlu0 %1113
      %v1115 = vrsqrt.pop %v1114
      %v1116 = vmul.f32 %v1114, %v1115
      %vm1117 = vcmp.eq.f32.partialorder %v1114, inf
      %v1118 = vsel %vm1117, %v1114, %v1116
      %vm1119 = vcmp.eq.f32.partialorder %v1114, 0.0
      %v1120 = vand.u32 %v1114, 2147483648
      %v1121 = vsel %vm1119, %v1120, %v1118
      %1122 = vst.msk [vmem:[%s419] sm:$0xff] %vm1105, %v1121
      %v1123 = vmul.f32 %v1073, 0.35355338
      %v1124 = vpack.c.bf16 %v1123, %v1123
      %v1125 = vpack.c.bf16 %v1089, %v1089
      %v1126 = vld [vmem:[%s398] sm:$0xf]
      %1128 = vrot.lane.b32.xlu0 %v1124, 104
      %v1129 = vpop.permute.xlu0 %1128
      %1131 = vrot.lane.b32.xlu0 %v1125, 104
      %v1132 = vpop.permute.xlu0 %1131
      %v1134 = vsel %vm437, %v1129, 0
      %v1137 = vsel %vm437, %v1132, 0
      %1139 = vmatprep.subr.bf16.mxu0 0
      %1140 = vmatpush1.bf16.xpose.msra.mxu0 0
      %1141 = vmatprep.subr.bf16.mxu0 0
      %1142 = vmatpush1.bf16.xpose.msra.mxu0 0
      %1143 = vmatprep.subr.bf16.mxu0 0
      %1144 = vmatpush1.bf16.xpose.msra.mxu0 0
      %1145 = vmatprep.subr.bf16.mxu0 0
      %1146 = vmatpush1.bf16.xpose.msra.mxu0 0
      %1147 = vmatprep.subr.bf16.mxu0 0
      %1148 = vmatpush1.bf16.xpose.msra.mxu0 0
      %1149 = vmatprep.subr.bf16.mxu0 0
      %1150 = vmatpush1.bf16.xpose.msra.mxu0 0
      %1151 = vmatprep.subr.bf16.mxu0 0
      %1152 = vmatpush1.bf16.xpose.msra.mxu0 0
      %1153 = vmatprep.subr.bf16.mxu0 0
      %1154 = vmatpush1.bf16.xpose.msra.mxu0 %v1137
      %1155 = vmatprep.subr.bf16.mxu0 0
      %1156 = vmatpush2.bf16.xpose.msra.mxu0 0
      %1157 = vmatprep.subr.bf16.mxu0 0
      %1158 = vmatpush2.bf16.xpose.msra.mxu0 0
      %1159 = vmatprep.subr.bf16.mxu0 0
      %1160 = vmatpush2.bf16.xpose.msra.mxu0 0
      %1161 = vmatprep.subr.bf16.mxu0 0
      %1162 = vmatpush2.bf16.xpose.msra.mxu0 0
      %1163 = vmatprep.subr.bf16.mxu0 0
      %1164 = vmatpush2.bf16.xpose.msra.mxu0 0
      %1165 = vmatprep.subr.bf16.mxu0 0
      %1166 = vmatpush2.bf16.xpose.msra.mxu0 0
      %1167 = vmatprep.subr.bf16.mxu0 0
      %1168 = vmatpush2.bf16.xpose.msra.mxu0 0
      %1169 = vmatprep.subr.bf16.mxu0 0
      %1170 = vmatpush2.bf16.xpose.msra.mxu0 0
      %1171 = vmatprep.mubr.bf16.mxu0 0
      %1172 = vmatmul.mubr.bf16.gmra.mxu0 %v1134
      %v1173 = vpop.f32.mrf.mxu0
      %v1174 = vadd.f32 0.0, %v1173
      %v1175 = vpop.f32.mrf.mxu0
      %v1176 = vpop.f32.mrf.mxu0
      %v1177 = vpop.f32.mrf.mxu0
      %1178 = vdwg.mxu0
      %v1179 = vld [vmem:[#allocation2] sm:$0xff]
      %v1180 = vsel %vm437, %v1174, -inf
      %1181 = vmax.xlane.f32.xlu0 %v1180
      %v1182 = vpop.xlane.xlu0 %1181
      %v1183 = vmax.f32 %v1179, %v1182
      %v1184 = vsub.f32 %v1179, %v1183
      %v1185 = vmul.f32 %v1184, 1.442695
      %v1186 = vpow.pop %v1185
      %1188 = vset.pattern.permute.xlu0 3
      %1189 = vperm.xlu0 %1188, %v1183
      %v1190 = vpop.permute.xlu0 %1189
      %v1192 = vsub.f32 %v1174, %v1190
      %v1193 = vmul.f32 %v1192, 1.442695
      %v1194 = vpow.pop %v1193
      %v1195 = vld [vmem:[#allocation3] sm:$0xff]
      %v1196 = vmul.f32 %v1186, %v1195
      %v1197 = vsel %vm437, %v1194, 0.0
      %1198 = vadd.xlane.f32.xlu0 %v1197
      %v1199 = vpop.xlane.xlu0 %1198
      %v1200 = vadd.f32 %v1196, %v1199
      %1201 = vst.msk [vmem:[#allocation3] sm:$0xff] %vm1105, %v1200
      %v1202 = vld [vmem:[#allocation4] sm:$0xff]
      %1204 = vset.pattern.permute.xlu0 3
      %1205 = vperm.xlu0 %1204, %v1186
      %v1206 = vpop.permute.xlu0 %1205
      %v1208 = vmul.f32 %v1206, %v1202
      %v1209 = vpack.c.bf16 %v1194, %v1194
      %v1211 = vunpack.c.l.b16 %v1126
      %v1212 = vpack.c.b16 %v1211, %v1211
      %1213 = vrot.lane.b32.xlu0 %v1212, 104
      %v1214 = vpop.permute.xlu0 %1213
      %v1216 = vsel %vm437, %v1209, 0
      %v1219 = vsel %vm577, %v1214, 0
      %1221 = vmatprep.subr.bf16.mxu0 0
      %1222 = vmatpush1.bf16.msra.mxu0 0
      %1223 = vmatprep.subr.bf16.mxu0 0
      %1224 = vmatpush1.bf16.msra.mxu0 0
      %1225 = vmatprep.subr.bf16.mxu0 0
      %1226 = vmatpush1.bf16.msra.mxu0 0
      %1227 = vmatprep.subr.bf16.mxu0 0
      %1228 = vmatpush1.bf16.msra.mxu0 0
      %1229 = vmatprep.subr.bf16.mxu0 0
      %1230 = vmatpush1.bf16.msra.mxu0 0
      %1231 = vmatprep.subr.bf16.mxu0 0
      %1232 = vmatpush1.bf16.msra.mxu0 0
      %1233 = vmatprep.subr.bf16.mxu0 0
      %1234 = vmatpush1.bf16.msra.mxu0 0
      %1235 = vmatprep.subr.bf16.mxu0 0
      %1236 = vmatpush1.bf16.msra.mxu0 %v1219
      %1237 = vmatprep.subr.bf16.mxu0 0
      %1238 = vmatpush2.bf16.msra.mxu0 0
      %1239 = vmatprep.subr.bf16.mxu0 0
      %1240 = vmatpush2.bf16.msra.mxu0 0
      %1241 = vmatprep.subr.bf16.mxu0 0
      %1242 = vmatpush2.bf16.msra.mxu0 0
      %1243 = vmatprep.subr.bf16.mxu0 0
      %1244 = vmatpush2.bf16.msra.mxu0 0
      %1245 = vmatprep.subr.bf16.mxu0 0
      %1246 = vmatpush2.bf16.msra.mxu0 0
      %1247 = vmatprep.subr.bf16.mxu0 0
      %1248 = vmatpush2.bf16.msra.mxu0 0
      %1249 = vmatprep.subr.bf16.mxu0 0
      %1250 = vmatpush2.bf16.msra.mxu0 0
      %1251 = vmatprep.subr.bf16.mxu0 0
      %1252 = vmatpush2.bf16.msra.mxu0 0
      %1253 = vmatprep.mubr.bf16.mxu0 0
      %1254 = vmatmul.mubr.bf16.gmra.mxu0 %v1216
      %v1255 = vpop.f32.mrf.mxu0
      %v1256 = vadd.f32 0.0, %v1255
      %v1257 = vpop.f32.mrf.mxu0
      %v1258 = vpop.f32.mrf.mxu0
      %v1259 = vpop.f32.mrf.mxu0
      %1260 = vdwg.mxu0
      %1262 = vrot.lane.b32.xlu0 %v1256, 24
      %v1263 = vpop.permute.xlu0 %1262
      %v1265 = vadd.f32 %v1208, %v1263
      %vm1266 = vcmask 261312
      %1267 = vst.msk [vmem:[#allocation4] sm:$0xff] %vm1266, %v1265
      %1268 = vst.msk [vmem:[#allocation2] sm:$0xff] %vm1105, %v1183
      // Predicated region
      $region45: #{attention_forward.4} parent=39 // pred_check
        %p1269 = pneg %p421
      $region46: #{attention_forward.4} parent=39 // pred_check_branch
        %1271 = sbr.rel (%p1269) target = $region48
      $region47: #{attention_forward.4} parent=39 // pred_region
        %v1272 = vld [vmem:[#allocation3] sm:$0xff]
        %v1273 = vrcp.pop %v1272
        %v1274 = vld [vmem:[#allocation4] sm:$0xff]
        %1276 = vset.pattern.permute.xlu0 0
        %1277 = vperm.xlu0 %1276, %v1273
        %v1278 = vpop.permute.xlu0 %1277
        %v1280 = vmul.f32 %v1274, %v1278
        %v1281 = vpack.c.bf16 %v1280, %v1280
        %vm1282 = vcmask 60416
        %1283 = vst.msk [vmem:[%s405] sm:$0xf] %vm1282, %v1281
        %v1284 = vld [vmem:[#allocation3] sm:$0xff]
        %v1285 = vrcp.pop %v1284
        %v1286 = vld [vmem:[#allocation4] sm:$0xff]
        %1288 = vset.pattern.permute.xlu0 1
        %1289 = vperm.xlu0 %1288, %v1285
        %v1290 = vpop.permute.xlu0 %1289
        %v1292 = vmul.f32 %v1286, %v1290
        %v1293 = vpack.c.bf16 %v1292, %v1292
        %vm1294 = vcmask 126016
        %1295 = vst.msk [vmem:[%s405] sm:$0xf] %vm1294, %v1293
        %v1296 = vld [vmem:[#allocation3] sm:$0xff]
        %v1297 = vrcp.pop %v1296
        %v1298 = vld [vmem:[#allocation4] sm:$0xff]
        %1300 = vset.pattern.permute.xlu0 2
        %1301 = vperm.xlu0 %1300, %v1297
        %v1302 = vpop.permute.xlu0 %1301
        %v1304 = vmul.f32 %v1298, %v1302
        %v1305 = vpack.c.bf16 %v1304, %v1304
        %vm1306 = vcmask 191616
        %1307 = vst.msk [vmem:[%s405] sm:$0xf] %vm1306, %v1305
        %v1308 = vld [vmem:[#allocation3] sm:$0xff]
        %v1309 = vrcp.pop %v1308
        %v1310 = vld [vmem:[#allocation4] sm:$0xff]
        %1312 = vset.pattern.permute.xlu0 3
        %1313 = vperm.xlu0 %1312, %v1309
        %v1314 = vpop.permute.xlu0 %1313
        %v1316 = vmul.f32 %v1310, %v1314
        %v1317 = vpack.c.bf16 %v1316, %v1316
        %vm1318 = vcmask 257216
        %1319 = vst.msk [vmem:[%s405] sm:$0xf] %vm1318, %v1317
      $region48: #{attention_forward.4} parent=39 // pred_fallthru
        _
      %p1320 = scmp.lt.s32.totalorder %s24, 1
      %s1321 = scalar_select %p1320, %s24, 1
      %p1322 = scmp.lt.s32.totalorder %s25, 0
      %s1323 = scalar_select %p1322, %s25, 0
      %s1324 = sadd.s32 %s1323, %s1321
      %s1325 = smul.addr %s1324, 4
      %s1326 = scalar_lea.vmem %s5, %s1325
      %p1327 = scmp.lt.s32.totalorder %s24, 1
      %s1328 = scalar_select %p1327, %s24, 1
      %p1329 = scmp.lt.s32.totalorder %s25, 0
      %s1330 = scalar_select %p1329, %s25, 0
      %s1331 = sadd.s32 %s1330, %s1328
      %s1332 = smul.addr %s1331, 8
      %s1333 = scalar_lea.vmem %s6, %s1332
      %p1334 = scmp.lt.s32.totalorder %s24, 1
      %s1335 = scalar_select %p1334, %s24, 1
      %p1336 = scmp.lt.s32.totalorder %s26, 0
      %s1337 = scalar_select %p1336, %s26, 0
      %s1338 = sadd.s32 %s1337, %s1335
      %s1339 = smul.addr %s1338, 8
      %s1340 = scalar_lea.vmem %s7, %s1339
      // Predicated region
      $region49: #{attention_forward.4} parent=39 // pred_check
        %p1341 = pneg %p184
      $region50: #{attention_forward.4} parent=39 // pred_check_branch
        %1343 = sbr.rel (%p1341) target = $region52
      $region51: #{attention_forward.4} parent=39 // pred_region
        _
      $region52: #{attention_forward.4} parent=39 // pred_fallthru
        _
      // Predicated region
      $region53: #{attention_forward.4} parent=39 // pred_check
        %p1344 = pneg %p212
      $region54: #{attention_forward.4} parent=39 // pred_check_branch
        %1346 = sbr.rel (%p1344) target = $region56
      $region55: #{attention_forward.4} parent=39 // pred_region
        _
      $region56: #{attention_forward.4} parent=39 // pred_fallthru
        _
      // Predicated region
      $region57: #{attention_forward.4} parent=39 // pred_check
        %p1347 = pneg %p240
      $region58: #{attention_forward.4} parent=39 // pred_check_branch
        %1349 = sbr.rel (%p1347) target = $region60
      $region59: #{attention_forward.4} parent=39 // pred_region
        _
      $region60: #{attention_forward.4} parent=39 // pred_fallthru
        _
    $region40: #{attention_forward.4} parent=5 // pred_fallthru
      _
    %p1350 = scmp.le.s32.totalorder 2, %s14
    // Predicated region
    $region61: #{attention_forward.4} parent=5 // pred_check
      %p1351 = pneg %p1350
    $region62: #{attention_forward.4} parent=5 // pred_check_branch
      %1353 = sbr.rel (%p1351) target = $region64
    $region63: #{attention_forward.4} parent=5 // pred_region
      %s1354 = ssub.s32 %s14, 2
      // Predicated region
      $region65: #{attention_forward.4} parent=63 // pred_check
        %p1355 = pneg %p190
      $region66: #{attention_forward.4} parent=63 // pred_check_branch
        %1357 = sbr.rel (%p1355) target = $region68
      $region67: #{attention_forward.4} parent=63 // pred_region
        %p1358 = scmp.lt.s32.totalorder %s27, 1
        %s1359 = scalar_select %p1358, %s27, 1
        %p1360 = scmp.lt.s32.totalorder %s28, 0
        %s1361 = scalar_select %p1360, %s28, 0
        %s1362 = sadd.s32 %s1361, %s1359
        %s1363 = smul.addr %s1362, 4
        %s1364 = scalar_lea.vmem %s5, %s1363
      $region68: #{attention_forward.4} parent=63 // pred_fallthru
        _
      // Predicated region
      $region69: #{attention_forward.4} parent=63 // pred_check
        %p1365 = pneg %p218
      $region70: #{attention_forward.4} parent=63 // pred_check_branch
        %1367 = sbr.rel (%p1365) target = $region72
      $region71: #{attention_forward.4} parent=63 // pred_region
        %p1368 = scmp.lt.s32.totalorder %s27, 1
        %s1369 = scalar_select %p1368, %s27, 1
        %p1370 = scmp.lt.s32.totalorder %s28, 0
        %s1371 = scalar_select %p1370, %s28, 0
        %s1372 = sadd.s32 %s1371, %s1369
        %s1373 = smul.addr %s1372, 8
        %s1374 = scalar_lea.vmem %s6, %s1373
      $region72: #{attention_forward.4} parent=63 // pred_fallthru
        _
      // Predicated region
      $region73: #{attention_forward.4} parent=63 // pred_check
        %p1375 = pneg %p246
      $region74: #{attention_forward.4} parent=63 // pred_check_branch
        %1377 = sbr.rel (%p1375) target = $region76
      $region75: #{attention_forward.4} parent=63 // pred_region
        %p1378 = scmp.lt.s32.totalorder %s27, 1
        %s1379 = scalar_select %p1378, %s27, 1
        %p1380 = scmp.lt.s32.totalorder %s29, 0
        %s1381 = scalar_select %p1380, %s29, 0
        %s1382 = sadd.s32 %s1381, %s1379
        %s1383 = smul.addr %s1382, 8
        %s1384 = scalar_lea.vmem %s7, %s1383
      $region76: #{attention_forward.4} parent=63 // pred_fallthru
        _
    $region64: #{attention_forward.4} parent=5 // pred_fallthru
      _
  $region6: #{attention_forward.4} parent=0 // loop_footer
    %s18 = sadd.s32 1, %s14
  $region7: #{attention_forward.4} parent=0 // loop_footer_branch
    %13 = sbr.rel target = $region3
  $region8: #{attention_forward.4} parent=0 // loop_exit
    _

</llo_original>
